<compile_context>
chip_gen: v5e
topology: v5e:2x2
jax: 0.10.0
libtpu: 0.0.40
codegen_flags: <defaults>
</compile_context>

<pallas_src>
import functools

import jax
import jax.numpy as jnp
from jax.experimental import pallas as pl
from jax.experimental.pallas import tpu as pltpu


# Whole-array-in-VMEM spec (no grid; the kernel is a single invocation).
_VMEM = pl.BlockSpec(memory_space=pltpu.MemorySpace.VMEM)


# ----------------------------------------------------------------------------
# Single fused CVAE forward kernel.
# Activations are kept per batch element as (N, L) tiles (B is small/static),
# so every matmul / slice is a plain aligned 2-D op.
# ----------------------------------------------------------------------------
def _cvae_kernel(xcat_ref, cond_ref, eps_ref,
                 w0e_ref, whd_ref, wo_ref, wres_ref,
                 ahead_ref, ares_ref, sthead_ref, stres_ref,
                 wwide_ref, mmask_ref, rsel_ref, bmv_ref, bo_ref,
                 out_ref, mv_ref,
                 *, B, N, dct, Z, n_res_enc, n_res_dec):
    f32 = jnp.float32

    def gcb(xb, w, att, scale, shift):
        # GraphConvBlock on one batch element:
        #   tanh( BN_affine( att @ (x @ W) + bias ) )
        # bias + eval-mode BN are folded into the (N, Lout) scale/shift.
        f = jnp.dot(xb, w, preferred_element_type=f32)
        y = jnp.dot(att, f, preferred_element_type=f32)
        return jnp.tanh(y * scale + shift)

    def layer(i):
        # Unpack one stacked ResGCB half-layer: W, att, scale, shift.
        st = stres_ref[i]
        return wres_ref[i], ares_ref[i], st[:N, :], st[N:, :]

    def head(w, a_idx, st_idx):
        st = sthead_ref[st_idx]
        return w, ahead_ref[a_idx], st[:N, :], st[N:, :]

    # ------------------ encoder: head GCB + n_res_enc ResGCBs ------------------
    w0, a0, sc0, sh0 = head(w0e_ref[...], 0, 0)
    xs = [gcb(xcat_ref[b], w0, a0, sc0, sh0) for b in range(B)]      # each (N, H)
    for l in range(n_res_enc):                                       # unrolled
        w1, a1, sc1, sh1 = layer(2 * l)
        w2, a2, sc2, sh2 = layer(2 * l + 1)
        hs = [gcb(x, w1, a1, sc1, sh1) for x in xs]
        xs = [gcb(h, w2, a2, sc2, sh2) + x for h, x in zip(hs, xs)]

    # --------- mean/logvar Linear over the flattened (N*H) feature ---------
    # mv[b, z] = sum_{n,h} feat_b[n,h] * Wmv[n*H+h, z], evaluated with aligned
    # full-tile ops only:
    #   Q = feat_b @ Wwide           with Wwide[h, n*2Z+z] = Wmv[n*H+h, z]
    #   t = sum_rows(Q * M)          M[m, n*2Z+z] = 1[m == n]   (block-diag pick)
    #   mv_b = t @ R + bmv           R[n*2Z+z, z'] = 1[z == z'] (lane fold)
    wwide = wwide_ref[...]
    mmask = mmask_ref[...]
    rsel = rsel_ref[...]
    bmv = bmv_ref[...]
    mv_rows = []
    for b in range(B):
        q = jnp.dot(xs[b], wwide, preferred_element_type=f32)        # (N, N*2Z)
        t = jnp.sum(q * mmask, axis=0, keepdims=True)                # (1, N*2Z)
        mv_rows.append(jnp.dot(t, rsel, preferred_element_type=f32) + bmv)
    mv = jnp.concatenate(mv_rows, axis=0)                            # (B, 2Z)
    mv_ref[...] = mv.astype(mv_ref.dtype)

    # ------------------ decoder head: [cond | z_rep] folded ------------------
    whd = whd_ref[...]
    wc, wz = whd[:dct, :], whd[dct:, :]          # split of the (dct+Z, H) weight
    _, a0d, sc0d, sh0d = head(None, 1, 1)
    ys = []
    for b in range(B):
        mv_b = mv_rows[b]                                            # (1, 2Z)
        # reparameterisation: z = exp(0.5*logvar) * eps + mean
        z_b = jnp.exp(0.5 * mv_b[:, Z:]) * eps_ref[b] + mv_b[:, :Z]  # (1, Z)
        f0 = (jnp.dot(cond_ref[b], wc, preferred_element_type=f32)   # (N, H)
              + jnp.dot(z_b, wz, preferred_element_type=f32))        # + (1, H) bcast
        y = jnp.dot(a0d, f0, preferred_element_type=f32)
        ys.append(jnp.tanh(y * sc0d + sh0d))

    # ------------------ decoder ResGCBs ------------------
    base = 2 * n_res_enc
    for l in range(n_res_dec):                                       # unrolled
        w1, a1, sc1, sh1 = layer(base + 2 * l)
        w2, a2, sc2, sh2 = layer(base + 2 * l + 1)
        hs = [gcb(y, w1, a1, sc1, sh1) for y in ys]
        ys = [gcb(h, w2, a2, sc2, sh2) + y for h, y in zip(hs, ys)]

    # --------- final GraphConv (no BN / activation) + residual condition ---------
    wo = wo_ref[...]
    ao = ahead_ref[2]
    bo = bo_ref[...]
    for b in range(B):
        fo = jnp.dot(ys[b], wo, preferred_element_type=f32)          # (N, dct)
        ob = jnp.dot(ao, fo, preferred_element_type=f32) + bo + cond_ref[b]
        out_ref[b] = ob.astype(out_ref.dtype)


# ----------------------------------------------------------------------------
# Parameter construction (deterministic, synthetic), in the "natural"
# per-layer layout of the PyTorch module.
# ----------------------------------------------------------------------------
def _make_gcb_params(key, N, Lin, Lout, with_bn=True):
    k1, k2, k3, k4, k5 = jax.random.split(key, 5)
    p = dict(
        w=0.1 * jax.random.normal(k1, (Lin, Lout), dtype=jnp.float32),
        att=0.1 * jax.random.normal(k2, (N, N), dtype=jnp.float32),
        b=0.1 * jax.random.normal(k3, (1, Lout), dtype=jnp.float32),
    )
    if with_bn:
        eps = 1e-5
        gamma = 1.0 + 0.01 * jax.random.normal(k4, (N, Lout), dtype=jnp.float32)
        beta = 0.01 * jax.random.normal(k5, (N, Lout), dtype=jnp.float32)
        # eval-mode BN: running_mean = 0, running_var = 1 folded into scale/shift
        p["scale"] = gamma / jnp.sqrt(1.0 + eps)
        p["shift"] = beta
    return p


def make_cvae_params(key, node_n, hidden_dim, z_dim, dct_n):
    keys = iter(jax.random.split(key, 64))
    params = {}

    # Encoder: GraphConvBlock(2*dct_n -> H) + 4 x ResGCB(H -> H)
    params["enc_head"] = _make_gcb_params(next(keys), node_n, 2 * dct_n, hidden_dim)
    params["enc_res"] = [
        dict(gcb1=_make_gcb_params(next(keys), node_n, hidden_dim, hidden_dim),
             gcb2=_make_gcb_params(next(keys), node_n, hidden_dim, hidden_dim))
        for _ in range(4)
    ]

    # mean / logvar Linear(H*N -> z_dim); stored as (in_features, z_dim) with the
    # input-feature index = n*H + h (row-major flatten, matching feature.view(b, -1)).
    F = hidden_dim * node_n
    params["mean_w"] = 0.02 * jax.random.normal(next(keys), (F, z_dim), dtype=jnp.float32)
    params["mean_b"] = 0.02 * jax.random.normal(next(keys), (1, z_dim), dtype=jnp.float32)
    params["logvar_w"] = 0.02 * jax.random.normal(next(keys), (F, z_dim), dtype=jnp.float32)
    params["logvar_b"] = 0.02 * jax.random.normal(next(keys), (1, z_dim), dtype=jnp.float32)

    # Decoder: GraphConvBlock(dct_n+z_dim -> H) + 4 x ResGCB + GraphConv(H -> dct_n)
    params["dec_head"] = _make_gcb_params(next(keys), node_n, dct_n + z_dim, hidden_dim)
    params["dec_res"] = [
        dict(gcb1=_make_gcb_params(next(keys), node_n, hidden_dim, hidden_dim),
             gcb2=_make_gcb_params(next(keys), node_n, hidden_dim, hidden_dim))
        for _ in range(4)
    ]
    params["dec_out"] = _make_gcb_params(next(keys), node_n, hidden_dim, dct_n,
                                         with_bn=False)
    return params


# ----------------------------------------------------------------------------
# One-time packing of the natural parameters into kernel-ready slabs.
# Run ONCE per parameter set (outside the jitted forward), never per call.
# ----------------------------------------------------------------------------
def prepare_params(params):
    def fold(p):
        # fold GraphConv bias into the eval-mode BN shift:
        #   (y + b)*scale + shift == y*scale + (b*scale + shift)
        scale = p["scale"]
        shift = p["b"] * p["scale"] + p["shift"]
        return p["w"], p["att"], jnp.concatenate([scale, shift], axis=0)   # (2N, Lout)

    w0e, a0e, st0e = fold(params["enc_head"])
    whd, a0d, st0d = fold(params["dec_head"])

    res_layers = ([g for p in params["enc_res"] for g in (p["gcb1"], p["gcb2"])] +
                  [g for p in params["dec_res"] for g in (p["gcb1"], p["gcb2"])])
    folded = [fold(g) for g in res_layers]
    w_res = jnp.stack([f[0] for f in folded])       # (16, H, H)
    a_res = jnp.stack([f[1] for f in folded])       # (16, N, N)
    st_res = jnp.stack([f[2] for f in folded])      # (16, 2N, H)

    do = params["dec_out"]

    N = params["enc_head"]["att"].shape[0]
    H = params["enc_head"]["w"].shape[1]
    Z = params["mean_w"].shape[1]
    # mean|logvar packed Linear, rearranged so the (N*H -> 2Z) contraction uses
    # only aligned full-tile matmuls inside the kernel:
    #   wwide[h, n*2Z + z] = Wmv[n*H + h, z]
    wmv = jnp.concatenate([params["mean_w"], params["logvar_w"]], axis=1)   # (N*H, 2Z)
    wwide = wmv.reshape(N, H, 2 * Z).transpose(1, 0, 2).reshape(H, N * 2 * Z)
    mmask = jnp.kron(jnp.eye(N, dtype=jnp.float32),
                     jnp.ones((1, 2 * Z), jnp.float32))                     # (N, N*2Z)
    rsel = jnp.kron(jnp.ones((N, 1), jnp.float32),
                    jnp.eye(2 * Z, dtype=jnp.float32))                      # (N*2Z, 2Z)
    bmv = jnp.concatenate([params["mean_b"], params["logvar_b"]], axis=1)   # (1, 2Z)

    return dict(
        w0e=w0e, whd=whd, wo=do["w"], w_res=w_res,
        a_head=jnp.stack([a0e, a0d, do["att"]]),    # (3, N, N)
        a_res=a_res,
        st_head=jnp.stack([st0e, st0d]),            # (2, 2N, H)
        st_res=st_res,
        wwide=wwide, mmask=mmask, rsel=rsel, bmv=bmv, bo=do["b"],
    )


# ----------------------------------------------------------------------------
# Forward pass (mirrors CVAE.forward) — exactly one pallas_call.
# ----------------------------------------------------------------------------
def cvae_forward(prep, condition, data, eps_noise):
    B, N, dct = condition.shape
    Z = prep["bmv"].shape[1] // 2
    # encoder and decoder have the same number of ResGCBs (as in the reference)
    n_res = prep["w_res"].shape[0] // 4

    xcat = jnp.concatenate([condition, data], axis=-1)    # (B, N, 2*dct)
    eps3 = eps_noise.reshape(B, 1, Z)                     # (B, 1, Z)

    kernel = functools.partial(_cvae_kernel, B=B, N=N, dct=dct, Z=Z,
                               n_res_enc=n_res, n_res_dec=n_res)

    out, mv = pl.pallas_call(
        kernel,
        out_shape=(jax.ShapeDtypeStruct((B, N, dct), jnp.float32),
                   jax.ShapeDtypeStruct((B, 2 * Z), jnp.float32)),
        in_specs=[_VMEM] * 16,
        out_specs=(_VMEM, _VMEM),
    )(xcat, condition, eps3,
      prep["w0e"], prep["whd"], prep["wo"], prep["w_res"],
      prep["a_head"], prep["a_res"], prep["st_head"], prep["st_res"],
      prep["wwide"], prep["mmask"], prep["rsel"], prep["bmv"], prep["bo"])

    mean = mv[:, :Z]
    logvar = mv[:, Z:]
    return out, mean, logvar


# ----------------------------------------------------------------------------
# Pure-JAX reference (no Pallas) used only for a correctness check in __main__.
# ----------------------------------------------------------------------------
def _reference_forward(params, condition, data, eps_noise):
    hp = jax.lax.Precision.HIGHEST

    def gcb(x, p):
        f = jnp.einsum("bnl,lo->bno", x, p["w"], precision=hp)
        y = jnp.einsum("nm,bmo->bno", p["att"], f, precision=hp) + p["b"]
        return jnp.tanh(y * p["scale"] + p["shift"])

    def res(x, p):
        return gcb(gcb(x, p["gcb1"]), p["gcb2"]) + x

    B, N, _ = condition.shape
    x = jnp.concatenate([condition, data], axis=-1)
    x = gcb(x, params["enc_head"])
    for p in params["enc_res"]:
        x = res(x, p)
    flat = x.reshape(B, -1)
    mean = jnp.dot(flat, params["mean_w"], precision=hp) + params["mean_b"]
    logvar = jnp.dot(flat, params["logvar_w"], precision=hp) + params["logvar_b"]
    z = jnp.exp(0.5 * logvar) * eps_noise + mean
    zrep = jnp.repeat(z[:, None, :], N, axis=1)
    y = jnp.concatenate([condition, zrep], axis=-1)
    y = gcb(y, params["dec_head"])
    for p in params["dec_res"]:
        y = res(y, p)
    po = params["dec_out"]
    f = jnp.einsum("bnl,lo->bno", y, po["w"], precision=hp)
    out = jnp.einsum("nm,bmo->bno", po["att"], f, precision=hp) + po["b"] + condition
    return out, mean, logvar


# ----------------------------------------------------------------------------
if __name__ == "__main__":
    # small, forward-consistent shapes
    B, NODE_N, HIDDEN, Z_DIM, DCT_N = 2, 16, 32, 8, 8

    key = jax.random.PRNGKey(0)
    k_params, k_cond, k_data, k_eps = jax.random.split(key, 4)

    params = make_cvae_params(k_params, NODE_N, HIDDEN, Z_DIM, DCT_N)
    prep = prepare_params(params)     # one-time packing, NOT per forward

    condition = jax.random.normal(k_cond, (B, NODE_N, DCT_N), dtype=jnp.float32)
    data = jax.random.normal(k_data, (B, NODE_N, DCT_N), dtype=jnp.float32)
    eps_noise = jax.random.normal(k_eps, (B, Z_DIM), dtype=jnp.float32)

    fwd = jax.jit(cvae_forward)
    out, mean, logvar = fwd(prep, condition, data, eps_noise)
    jax.block_until_ready((out, mean, logvar))

    assert out.shape == (B, NODE_N, DCT_N)
    assert mean.shape == (B, Z_DIM) and logvar.shape == (B, Z_DIM)
    assert bool(jnp.all(jnp.isfinite(out)))

    # correctness check vs. a pure-JAX reference (tolerance absorbs MXU vs XLA
    # f32 matmul precision differences; structural bugs would be O(0.1+))
    ref_out, ref_mean, ref_logvar = _reference_forward(params, condition, data, eps_noise)
    assert float(jnp.max(jnp.abs(out - ref_out))) < 5e-2
    assert float(jnp.max(jnp.abs(mean - ref_mean))) < 5e-2
    assert float(jnp.max(jnp.abs(logvar - ref_logvar))) < 5e-2

    print("KERNEL_OK")
</pallas_src>

<mosaic_0001>
module attributes {stable_mosaic.version = 11 : i64} {
  func.func @_cvae_kernel(%arg0: memref<2x16x16xf32, #tpu.memory_space<vmem>>, %arg1: memref<2x16x8xf32, #tpu.memory_space<vmem>>, %arg2: memref<2x1x8xf32, #tpu.memory_space<vmem>>, %arg3: memref<16x32xf32, #tpu.memory_space<vmem>>, %arg4: memref<16x32xf32, #tpu.memory_space<vmem>>, %arg5: memref<32x8xf32, #tpu.memory_space<vmem>>, %arg6: memref<16x32x32xf32, #tpu.memory_space<vmem>>, %arg7: memref<3x16x16xf32, #tpu.memory_space<vmem>>, %arg8: memref<16x16x16xf32, #tpu.memory_space<vmem>>, %arg9: memref<2x32x32xf32, #tpu.memory_space<vmem>>, %arg10: memref<16x32x32xf32, #tpu.memory_space<vmem>>, %arg11: memref<32x256xf32, #tpu.memory_space<vmem>>, %arg12: memref<16x256xf32, #tpu.memory_space<vmem>>, %arg13: memref<256x16xf32, #tpu.memory_space<vmem>>, %arg14: memref<1x16xf32, #tpu.memory_space<vmem>>, %arg15: memref<1x8xf32, #tpu.memory_space<vmem>>, %arg16: memref<2x16x8xf32, #tpu.memory_space<vmem>>, %arg17: memref<2x16xf32, #tpu.memory_space<vmem>>) attributes {dimension_semantics = [], scalar_prefetch = 0 : i64, scratch_operands = 0 : i64, tpu.core_type = #tpu.core_type<tc>} {
    %c0 = arith.constant 0 : index
    %c0_0 = arith.constant 0 : index
    %0 = vector.load %arg3[%c0, %c0_0] : memref<16x32xf32, #tpu.memory_space<vmem>>, vector<16x32xf32>
    %c0_1 = arith.constant 0 : index
    %c0_2 = arith.constant 0 : index
    %c0_3 = arith.constant 0 : index
    %1 = vector.load %arg9[%c0_1, %c0_2, %c0_3] : memref<2x32x32xf32, #tpu.memory_space<vmem>>, vector<1x32x32xf32>
    %2 = vector.shape_cast %1 : vector<1x32x32xf32> to vector<32x32xf32>
    %c0_4 = arith.constant 0 : index
    %c0_5 = arith.constant 0 : index
    %c0_6 = arith.constant 0 : index
    %3 = vector.load %arg7[%c0_4, %c0_5, %c0_6] : memref<3x16x16xf32, #tpu.memory_space<vmem>>, vector<1x16x16xf32>
    %4 = vector.shape_cast %3 : vector<1x16x16xf32> to vector<16x16xf32>
    %5 = vector.extract_strided_slice %2 {offsets = [0, 0], sizes = [16, 32], strides = [1, 1]} : vector<32x32xf32> to vector<16x32xf32>
    %6 = vector.extract_strided_slice %2 {offsets = [16, 0], sizes = [16, 32], strides = [1, 1]} : vector<32x32xf32> to vector<16x32xf32>
    %c0_7 = arith.constant 0 : index
    %c0_8 = arith.constant 0 : index
    %c0_9 = arith.constant 0 : index
    %7 = vector.load %arg0[%c0_7, %c0_8, %c0_9] : memref<2x16x16xf32, #tpu.memory_space<vmem>>, vector<1x16x16xf32>
    %8 = vector.shape_cast %7 : vector<1x16x16xf32> to vector<16x16xf32>
    %cst = arith.constant dense<0.000000e+00> : vector<16x32xf32>
    %9 = tpu.matmul %8, %0, %cst {dimension_numbers = #tpu.dot_dimension_numbers<[1], [0], [0], [1], [0, 0, 1, 1], [], []>} : vector<16x16xf32>, vector<16x32xf32>, vector<16x32xf32> -> vector<16x32xf32>
    %cst_10 = arith.constant dense<0.000000e+00> : vector<16x32xf32>
    %10 = tpu.matmul %4, %9, %cst_10 {dimension_numbers = #tpu.dot_dimension_numbers<[1], [0], [0], [1], [0, 0, 1, 1], [], []>} : vector<16x16xf32>, vector<16x32xf32>, vector<16x32xf32> -> vector<16x32xf32>
    %11 = arith.mulf %10, %5 : vector<16x32xf32>
    %12 = arith.addf %11, %6 : vector<16x32xf32>
    %13 = math.tanh %12 : vector<16x32xf32>
    %c1 = arith.constant 1 : index
    %c0_11 = arith.constant 0 : index
    %c0_12 = arith.constant 0 : index
    %14 = vector.load %arg0[%c1, %c0_11, %c0_12] : memref<2x16x16xf32, #tpu.memory_space<vmem>>, vector<1x16x16xf32>
    %15 = vector.shape_cast %14 : vector<1x16x16xf32> to vector<16x16xf32>
    %cst_13 = arith.constant dense<0.000000e+00> : vector<16x32xf32>
    %16 = tpu.matmul %15, %0, %cst_13 {dimension_numbers = #tpu.dot_dimension_numbers<[1], [0], [0], [1], [0, 0, 1, 1], [], []>} : vector<16x16xf32>, vector<16x32xf32>, vector<16x32xf32> -> vector<16x32xf32>
    %cst_14 = arith.constant dense<0.000000e+00> : vector<16x32xf32>
    %17 = tpu.matmul %4, %16, %cst_14 {dimension_numbers = #tpu.dot_dimension_numbers<[1], [0], [0], [1], [0, 0, 1, 1], [], []>} : vector<16x16xf32>, vector<16x32xf32>, vector<16x32xf32> -> vector<16x32xf32>
    %18 = arith.mulf %17, %5 : vector<16x32xf32>
    %19 = arith.addf %18, %6 : vector<16x32xf32>
    %20 = math.tanh %19 : vector<16x32xf32>
    %c0_15 = arith.constant 0 : index
    %c0_16 = arith.constant 0 : index
    %c0_17 = arith.constant 0 : index
    %21 = vector.load %arg10[%c0_15, %c0_16, %c0_17] : memref<16x32x32xf32, #tpu.memory_space<vmem>>, vector<1x32x32xf32>
    %22 = vector.shape_cast %21 : vector<1x32x32xf32> to vector<32x32xf32>
    %c0_18 = arith.constant 0 : index
    %c0_19 = arith.constant 0 : index
    %c0_20 = arith.constant 0 : index
    %23 = vector.load %arg6[%c0_18, %c0_19, %c0_20] : memref<16x32x32xf32, #tpu.memory_space<vmem>>, vector<1x32x32xf32>
    %24 = vector.shape_cast %23 : vector<1x32x32xf32> to vector<32x32xf32>
    %c0_21 = arith.constant 0 : index
    %c0_22 = arith.constant 0 : index
    %c0_23 = arith.constant 0 : index
    %25 = vector.load %arg8[%c0_21, %c0_22, %c0_23] : memref<16x16x16xf32, #tpu.memory_space<vmem>>, vector<1x16x16xf32>
    %26 = vector.shape_cast %25 : vector<1x16x16xf32> to vector<16x16xf32>
    %27 = vector.extract_strided_slice %22 {offsets = [0, 0], sizes = [16, 32], strides = [1, 1]} : vector<32x32xf32> to vector<16x32xf32>
    %28 = vector.extract_strided_slice %22 {offsets = [16, 0], sizes = [16, 32], strides = [1, 1]} : vector<32x32xf32> to vector<16x32xf32>
    %c1_24 = arith.constant 1 : index
    %c0_25 = arith.constant 0 : index
    %c0_26 = arith.constant 0 : index
    %29 = vector.load %arg10[%c1_24, %c0_25, %c0_26] : memref<16x32x32xf32, #tpu.memory_space<vmem>>, vector<1x32x32xf32>
    %30 = vector.shape_cast %29 : vector<1x32x32xf32> to vector<32x32xf32>
    %c1_27 = arith.constant 1 : index
    %c0_28 = arith.constant 0 : index
    %c0_29 = arith.constant 0 : index
    %31 = vector.load %arg6[%c1_27, %c0_28, %c0_29] : memref<16x32x32xf32, #tpu.memory_space<vmem>>, vector<1x32x32xf32>
    %32 = vector.shape_cast %31 : vector<1x32x32xf32> to vector<32x32xf32>
    %c1_30 = arith.constant 1 : index
    %c0_31 = arith.constant 0 : index
    %c0_32 = arith.constant 0 : index
    %33 = vector.load %arg8[%c1_30, %c0_31, %c0_32] : memref<16x16x16xf32, #tpu.memory_space<vmem>>, vector<1x16x16xf32>
    %34 = vector.shape_cast %33 : vector<1x16x16xf32> to vector<16x16xf32>
    %35 = vector.extract_strided_slice %30 {offsets = [0, 0], sizes = [16, 32], strides = [1, 1]} : vector<32x32xf32> to vector<16x32xf32>
    %36 = vector.extract_strided_slice %30 {offsets = [16, 0], sizes = [16, 32], strides = [1, 1]} : vector<32x32xf32> to vector<16x32xf32>
    %cst_33 = arith.constant dense<0.000000e+00> : vector<16x32xf32>
    %37 = tpu.matmul %13, %24, %cst_33 {dimension_numbers = #tpu.dot_dimension_numbers<[1], [0], [0], [1], [0, 0, 1, 1], [], []>} : vector<16x32xf32>, vector<32x32xf32>, vector<16x32xf32> -> vector<16x32xf32>
    %cst_34 = arith.constant dense<0.000000e+00> : vector<16x32xf32>
    %38 = tpu.matmul %26, %37, %cst_34 {dimension_numbers = #tpu.dot_dimension_numbers<[1], [0], [0], [1], [0, 0, 1, 1], [], []>} : vector<16x16xf32>, vector<16x32xf32>, vector<16x32xf32> -> vector<16x32xf32>
    %39 = arith.mulf %38, %27 : vector<16x32xf32>
    %40 = arith.addf %39, %28 : vector<16x32xf32>
    %41 = math.tanh %40 : vector<16x32xf32>
    %cst_35 = arith.constant dense<0.000000e+00> : vector<16x32xf32>
    %42 = tpu.matmul %20, %24, %cst_35 {dimension_numbers = #tpu.dot_dimension_numbers<[1], [0], [0], [1], [0, 0, 1, 1], [], []>} : vector<16x32xf32>, vector<32x32xf32>, vector<16x32xf32> -> vector<16x32xf32>
    %cst_36 = arith.constant dense<0.000000e+00> : vector<16x32xf32>
    %43 = tpu.matmul %26, %42, %cst_36 {dimension_numbers = #tpu.dot_dimension_numbers<[1], [0], [0], [1], [0, 0, 1, 1], [], []>} : vector<16x16xf32>, vector<16x32xf32>, vector<16x32xf32> -> vector<16x32xf32>
    %44 = arith.mulf %43, %27 : vector<16x32xf32>
    %45 = arith.addf %44, %28 : vector<16x32xf32>
    %46 = math.tanh %45 : vector<16x32xf32>
    %cst_37 = arith.constant dense<0.000000e+00> : vector<16x32xf32>
    %47 = tpu.matmul %41, %32, %cst_37 {dimension_numbers = #tpu.dot_dimension_numbers<[1], [0], [0], [1], [0, 0, 1, 1], [], []>} : vector<16x32xf32>, vector<32x32xf32>, vector<16x32xf32> -> vector<16x32xf32>
    %cst_38 = arith.constant dense<0.000000e+00> : vector<16x32xf32>
    %48 = tpu.matmul %34, %47, %cst_38 {dimension_numbers = #tpu.dot_dimension_numbers<[1], [0], [0], [1], [0, 0, 1, 1], [], []>} : vector<16x16xf32>, vector<16x32xf32>, vector<16x32xf32> -> vector<16x32xf32>
    %49 = arith.mulf %48, %35 : vector<16x32xf32>
    %50 = arith.addf %49, %36 : vector<16x32xf32>
    %51 = math.tanh %50 : vector<16x32xf32>
    %52 = arith.addf %51, %13 : vector<16x32xf32>
    %cst_39 = arith.constant dense<0.000000e+00> : vector<16x32xf32>
    %53 = tpu.matmul %46, %32, %cst_39 {dimension_numbers = #tpu.dot_dimension_numbers<[1], [0], [0], [1], [0, 0, 1, 1], [], []>} : vector<16x32xf32>, vector<32x32xf32>, vector<16x32xf32> -> vector<16x32xf32>
    %cst_40 = arith.constant dense<0.000000e+00> : vector<16x32xf32>
    %54 = tpu.matmul %34, %53, %cst_40 {dimension_numbers = #tpu.dot_dimension_numbers<[1], [0], [0], [1], [0, 0, 1, 1], [], []>} : vector<16x16xf32>, vector<16x32xf32>, vector<16x32xf32> -> vector<16x32xf32>
    %55 = arith.mulf %54, %35 : vector<16x32xf32>
    %56 = arith.addf %55, %36 : vector<16x32xf32>
    %57 = math.tanh %56 : vector<16x32xf32>
    %58 = arith.addf %57, %20 : vector<16x32xf32>
    %c2 = arith.constant 2 : index
    %c0_41 = arith.constant 0 : index
    %c0_42 = arith.constant 0 : index
    %59 = vector.load %arg10[%c2, %c0_41, %c0_42] : memref<16x32x32xf32, #tpu.memory_space<vmem>>, vector<1x32x32xf32>
    %60 = vector.shape_cast %59 : vector<1x32x32xf32> to vector<32x32xf32>
    %c2_43 = arith.constant 2 : index
    %c0_44 = arith.constant 0 : index
    %c0_45 = arith.constant 0 : index
    %61 = vector.load %arg6[%c2_43, %c0_44, %c0_45] : memref<16x32x32xf32, #tpu.memory_space<vmem>>, vector<1x32x32xf32>
    %62 = vector.shape_cast %61 : vector<1x32x32xf32> to vector<32x32xf32>
    %c2_46 = arith.constant 2 : index
    %c0_47 = arith.constant 0 : index
    %c0_48 = arith.constant 0 : index
    %63 = vector.load %arg8[%c2_46, %c0_47, %c0_48] : memref<16x16x16xf32, #tpu.memory_space<vmem>>, vector<1x16x16xf32>
    %64 = vector.shape_cast %63 : vector<1x16x16xf32> to vector<16x16xf32>
    %65 = vector.extract_strided_slice %60 {offsets = [0, 0], sizes = [16, 32], strides = [1, 1]} : vector<32x32xf32> to vector<16x32xf32>
    %66 = vector.extract_strided_slice %60 {offsets = [16, 0], sizes = [16, 32], strides = [1, 1]} : vector<32x32xf32> to vector<16x32xf32>
    %c3 = arith.constant 3 : index
    %c0_49 = arith.constant 0 : index
    %c0_50 = arith.constant 0 : index
    %67 = vector.load %arg10[%c3, %c0_49, %c0_50] : memref<16x32x32xf32, #tpu.memory_space<vmem>>, vector<1x32x32xf32>
    %68 = vector.shape_cast %67 : vector<1x32x32xf32> to vector<32x32xf32>
    %c3_51 = arith.constant 3 : index
    %c0_52 = arith.constant 0 : index
    %c0_53 = arith.constant 0 : index
    %69 = vector.load %arg6[%c3_51, %c0_52, %c0_53] : memref<16x32x32xf32, #tpu.memory_space<vmem>>, vector<1x32x32xf32>
    %70 = vector.shape_cast %69 : vector<1x32x32xf32> to vector<32x32xf32>
    %c3_54 = arith.constant 3 : index
    %c0_55 = arith.constant 0 : index
    %c0_56 = arith.constant 0 : index
    %71 = vector.load %arg8[%c3_54, %c0_55, %c0_56] : memref<16x16x16xf32, #tpu.memory_space<vmem>>, vector<1x16x16xf32>
    %72 = vector.shape_cast %71 : vector<1x16x16xf32> to vector<16x16xf32>
    %73 = vector.extract_strided_slice %68 {offsets = [0, 0], sizes = [16, 32], strides = [1, 1]} : vector<32x32xf32> to vector<16x32xf32>
    %74 = vector.extract_strided_slice %68 {offsets = [16, 0], sizes = [16, 32], strides = [1, 1]} : vector<32x32xf32> to vector<16x32xf32>
    %cst_57 = arith.constant dense<0.000000e+00> : vector<16x32xf32>
    %75 = tpu.matmul %52, %62, %cst_57 {dimension_numbers = #tpu.dot_dimension_numbers<[1], [0], [0], [1], [0, 0, 1, 1], [], []>} : vector<16x32xf32>, vector<32x32xf32>, vector<16x32xf32> -> vector<16x32xf32>
    %cst_58 = arith.constant dense<0.000000e+00> : vector<16x32xf32>
    %76 = tpu.matmul %64, %75, %cst_58 {dimension_numbers = #tpu.dot_dimension_numbers<[1], [0], [0], [1], [0, 0, 1, 1], [], []>} : vector<16x16xf32>, vector<16x32xf32>, vector<16x32xf32> -> vector<16x32xf32>
    %77 = arith.mulf %76, %65 : vector<16x32xf32>
    %78 = arith.addf %77, %66 : vector<16x32xf32>
    %79 = math.tanh %78 : vector<16x32xf32>
    %cst_59 = arith.constant dense<0.000000e+00> : vector<16x32xf32>
    %80 = tpu.matmul %58, %62, %cst_59 {dimension_numbers = #tpu.dot_dimension_numbers<[1], [0], [0], [1], [0, 0, 1, 1], [], []>} : vector<16x32xf32>, vector<32x32xf32>, vector<16x32xf32> -> vector<16x32xf32>
    %cst_60 = arith.constant dense<0.000000e+00> : vector<16x32xf32>
    %81 = tpu.matmul %64, %80, %cst_60 {dimension_numbers = #tpu.dot_dimension_numbers<[1], [0], [0], [1], [0, 0, 1, 1], [], []>} : vector<16x16xf32>, vector<16x32xf32>, vector<16x32xf32> -> vector<16x32xf32>
    %82 = arith.mulf %81, %65 : vector<16x32xf32>
    %83 = arith.addf %82, %66 : vector<16x32xf32>
    %84 = math.tanh %83 : vector<16x32xf32>
    %cst_61 = arith.constant dense<0.000000e+00> : vector<16x32xf32>
    %85 = tpu.matmul %79, %70, %cst_61 {dimension_numbers = #tpu.dot_dimension_numbers<[1], [0], [0], [1], [0, 0, 1, 1], [], []>} : vector<16x32xf32>, vector<32x32xf32>, vector<16x32xf32> -> vector<16x32xf32>
    %cst_62 = arith.constant dense<0.000000e+00> : vector<16x32xf32>
    %86 = tpu.matmul %72, %85, %cst_62 {dimension_numbers = #tpu.dot_dimension_numbers<[1], [0], [0], [1], [0, 0, 1, 1], [], []>} : vector<16x16xf32>, vector<16x32xf32>, vector<16x32xf32> -> vector<16x32xf32>
    %87 = arith.mulf %86, %73 : vector<16x32xf32>
    %88 = arith.addf %87, %74 : vector<16x32xf32>
    %89 = math.tanh %88 : vector<16x32xf32>
    %90 = arith.addf %89, %52 : vector<16x32xf32>
    %cst_63 = arith.constant dense<0.000000e+00> : vector<16x32xf32>
    %91 = tpu.matmul %84, %70, %cst_63 {dimension_numbers = #tpu.dot_dimension_numbers<[1], [0], [0], [1], [0, 0, 1, 1], [], []>} : vector<16x32xf32>, vector<32x32xf32>, vector<16x32xf32> -> vector<16x32xf32>
    %cst_64 = arith.constant dense<0.000000e+00> : vector<16x32xf32>
    %92 = tpu.matmul %72, %91, %cst_64 {dimension_numbers = #tpu.dot_dimension_numbers<[1], [0], [0], [1], [0, 0, 1, 1], [], []>} : vector<16x16xf32>, vector<16x32xf32>, vector<16x32xf32> -> vector<16x32xf32>
    %93 = arith.mulf %92, %73 : vector<16x32xf32>
    %94 = arith.addf %93, %74 : vector<16x32xf32>
    %95 = math.tanh %94 : vector<16x32xf32>
    %96 = arith.addf %95, %58 : vector<16x32xf32>
    %c4 = arith.constant 4 : index
    %c0_65 = arith.constant 0 : index
    %c0_66 = arith.constant 0 : index
    %97 = vector.load %arg10[%c4, %c0_65, %c0_66] : memref<16x32x32xf32, #tpu.memory_space<vmem>>, vector<1x32x32xf32>
    %98 = vector.shape_cast %97 : vector<1x32x32xf32> to vector<32x32xf32>
    %c4_67 = arith.constant 4 : index
    %c0_68 = arith.constant 0 : index
    %c0_69 = arith.constant 0 : index
    %99 = vector.load %arg6[%c4_67, %c0_68, %c0_69] : memref<16x32x32xf32, #tpu.memory_space<vmem>>, vector<1x32x32xf32>
    %100 = vector.shape_cast %99 : vector<1x32x32xf32> to vector<32x32xf32>
    %c4_70 = arith.constant 4 : index
    %c0_71 = arith.constant 0 : index
    %c0_72 = arith.constant 0 : index
    %101 = vector.load %arg8[%c4_70, %c0_71, %c0_72] : memref<16x16x16xf32, #tpu.memory_space<vmem>>, vector<1x16x16xf32>
    %102 = vector.shape_cast %101 : vector<1x16x16xf32> to vector<16x16xf32>
    %103 = vector.extract_strided_slice %98 {offsets = [0, 0], sizes = [16, 32], strides = [1, 1]} : vector<32x32xf32> to vector<16x32xf32>
    %104 = vector.extract_strided_slice %98 {offsets = [16, 0], sizes = [16, 32], strides = [1, 1]} : vector<32x32xf32> to vector<16x32xf32>
    %c5 = arith.constant 5 : index
    %c0_73 = arith.constant 0 : index
    %c0_74 = arith.constant 0 : index
    %105 = vector.load %arg10[%c5, %c0_73, %c0_74] : memref<16x32x32xf32, #tpu.memory_space<vmem>>, vector<1x32x32xf32>
    %106 = vector.shape_cast %105 : vector<1x32x32xf32> to vector<32x32xf32>
    %c5_75 = arith.constant 5 : index
    %c0_76 = arith.constant 0 : index
    %c0_77 = arith.constant 0 : index
    %107 = vector.load %arg6[%c5_75, %c0_76, %c0_77] : memref<16x32x32xf32, #tpu.memory_space<vmem>>, vector<1x32x32xf32>
    %108 = vector.shape_cast %107 : vector<1x32x32xf32> to vector<32x32xf32>
    %c5_78 = arith.constant 5 : index
    %c0_79 = arith.constant 0 : index
    %c0_80 = arith.constant 0 : index
    %109 = vector.load %arg8[%c5_78, %c0_79, %c0_80] : memref<16x16x16xf32, #tpu.memory_space<vmem>>, vector<1x16x16xf32>
    %110 = vector.shape_cast %109 : vector<1x16x16xf32> to vector<16x16xf32>
    %111 = vector.extract_strided_slice %106 {offsets = [0, 0], sizes = [16, 32], strides = [1, 1]} : vector<32x32xf32> to vector<16x32xf32>
    %112 = vector.extract_strided_slice %106 {offsets = [16, 0], sizes = [16, 32], strides = [1, 1]} : vector<32x32xf32> to vector<16x32xf32>
    %cst_81 = arith.constant dense<0.000000e+00> : vector<16x32xf32>
    %113 = tpu.matmul %90, %100, %cst_81 {dimension_numbers = #tpu.dot_dimension_numbers<[1], [0], [0], [1], [0, 0, 1, 1], [], []>} : vector<16x32xf32>, vector<32x32xf32>, vector<16x32xf32> -> vector<16x32xf32>
    %cst_82 = arith.constant dense<0.000000e+00> : vector<16x32xf32>
    %114 = tpu.matmul %102, %113, %cst_82 {dimension_numbers = #tpu.dot_dimension_numbers<[1], [0], [0], [1], [0, 0, 1, 1], [], []>} : vector<16x16xf32>, vector<16x32xf32>, vector<16x32xf32> -> vector<16x32xf32>
    %115 = arith.mulf %114, %103 : vector<16x32xf32>
    %116 = arith.addf %115, %104 : vector<16x32xf32>
    %117 = math.tanh %116 : vector<16x32xf32>
    %cst_83 = arith.constant dense<0.000000e+00> : vector<16x32xf32>
    %118 = tpu.matmul %96, %100, %cst_83 {dimension_numbers = #tpu.dot_dimension_numbers<[1], [0], [0], [1], [0, 0, 1, 1], [], []>} : vector<16x32xf32>, vector<32x32xf32>, vector<16x32xf32> -> vector<16x32xf32>
    %cst_84 = arith.constant dense<0.000000e+00> : vector<16x32xf32>
    %119 = tpu.matmul %102, %118, %cst_84 {dimension_numbers = #tpu.dot_dimension_numbers<[1], [0], [0], [1], [0, 0, 1, 1], [], []>} : vector<16x16xf32>, vector<16x32xf32>, vector<16x32xf32> -> vector<16x32xf32>
    %120 = arith.mulf %119, %103 : vector<16x32xf32>
    %121 = arith.addf %120, %104 : vector<16x32xf32>
    %122 = math.tanh %121 : vector<16x32xf32>
    %cst_85 = arith.constant dense<0.000000e+00> : vector<16x32xf32>
    %123 = tpu.matmul %117, %108, %cst_85 {dimension_numbers = #tpu.dot_dimension_numbers<[1], [0], [0], [1], [0, 0, 1, 1], [], []>} : vector<16x32xf32>, vector<32x32xf32>, vector<16x32xf32> -> vector<16x32xf32>
    %cst_86 = arith.constant dense<0.000000e+00> : vector<16x32xf32>
    %124 = tpu.matmul %110, %123, %cst_86 {dimension_numbers = #tpu.dot_dimension_numbers<[1], [0], [0], [1], [0, 0, 1, 1], [], []>} : vector<16x16xf32>, vector<16x32xf32>, vector<16x32xf32> -> vector<16x32xf32>
    %125 = arith.mulf %124, %111 : vector<16x32xf32>
    %126 = arith.addf %125, %112 : vector<16x32xf32>
    %127 = math.tanh %126 : vector<16x32xf32>
    %128 = arith.addf %127, %90 : vector<16x32xf32>
    %cst_87 = arith.constant dense<0.000000e+00> : vector<16x32xf32>
    %129 = tpu.matmul %122, %108, %cst_87 {dimension_numbers = #tpu.dot_dimension_numbers<[1], [0], [0], [1], [0, 0, 1, 1], [], []>} : vector<16x32xf32>, vector<32x32xf32>, vector<16x32xf32> -> vector<16x32xf32>
    %cst_88 = arith.constant dense<0.000000e+00> : vector<16x32xf32>
    %130 = tpu.matmul %110, %129, %cst_88 {dimension_numbers = #tpu.dot_dimension_numbers<[1], [0], [0], [1], [0, 0, 1, 1], [], []>} : vector<16x16xf32>, vector<16x32xf32>, vector<16x32xf32> -> vector<16x32xf32>
    %131 = arith.mulf %130, %111 : vector<16x32xf32>
    %132 = arith.addf %131, %112 : vector<16x32xf32>
    %133 = math.tanh %132 : vector<16x32xf32>
    %134 = arith.addf %133, %96 : vector<16x32xf32>
    %c6 = arith.constant 6 : index
    %c0_89 = arith.constant 0 : index
    %c0_90 = arith.constant 0 : index
    %135 = vector.load %arg10[%c6, %c0_89, %c0_90] : memref<16x32x32xf32, #tpu.memory_space<vmem>>, vector<1x32x32xf32>
    %136 = vector.shape_cast %135 : vector<1x32x32xf32> to vector<32x32xf32>
    %c6_91 = arith.constant 6 : index
    %c0_92 = arith.constant 0 : index
    %c0_93 = arith.constant 0 : index
    %137 = vector.load %arg6[%c6_91, %c0_92, %c0_93] : memref<16x32x32xf32, #tpu.memory_space<vmem>>, vector<1x32x32xf32>
    %138 = vector.shape_cast %137 : vector<1x32x32xf32> to vector<32x32xf32>
    %c6_94 = arith.constant 6 : index
    %c0_95 = arith.constant 0 : index
    %c0_96 = arith.constant 0 : index
    %139 = vector.load %arg8[%c6_94, %c0_95, %c0_96] : memref<16x16x16xf32, #tpu.memory_space<vmem>>, vector<1x16x16xf32>
    %140 = vector.shape_cast %139 : vector<1x16x16xf32> to vector<16x16xf32>
    %141 = vector.extract_strided_slice %136 {offsets = [0, 0], sizes = [16, 32], strides = [1, 1]} : vector<32x32xf32> to vector<16x32xf32>
    %142 = vector.extract_strided_slice %136 {offsets = [16, 0], sizes = [16, 32], strides = [1, 1]} : vector<32x32xf32> to vector<16x32xf32>
    %c7 = arith.constant 7 : index
    %c0_97 = arith.constant 0 : index
    %c0_98 = arith.constant 0 : index
    %143 = vector.load %arg10[%c7, %c0_97, %c0_98] : memref<16x32x32xf32, #tpu.memory_space<vmem>>, vector<1x32x32xf32>
    %144 = vector.shape_cast %143 : vector<1x32x32xf32> to vector<32x32xf32>
    %c7_99 = arith.constant 7 : index
    %c0_100 = arith.constant 0 : index
    %c0_101 = arith.constant 0 : index
    %145 = vector.load %arg6[%c7_99, %c0_100, %c0_101] : memref<16x32x32xf32, #tpu.memory_space<vmem>>, vector<1x32x32xf32>
    %146 = vector.shape_cast %145 : vector<1x32x32xf32> to vector<32x32xf32>
    %c7_102 = arith.constant 7 : index
    %c0_103 = arith.constant 0 : index
    %c0_104 = arith.constant 0 : index
    %147 = vector.load %arg8[%c7_102, %c0_103, %c0_104] : memref<16x16x16xf32, #tpu.memory_space<vmem>>, vector<1x16x16xf32>
    %148 = vector.shape_cast %147 : vector<1x16x16xf32> to vector<16x16xf32>
    %149 = vector.extract_strided_slice %144 {offsets = [0, 0], sizes = [16, 32], strides = [1, 1]} : vector<32x32xf32> to vector<16x32xf32>
    %150 = vector.extract_strided_slice %144 {offsets = [16, 0], sizes = [16, 32], strides = [1, 1]} : vector<32x32xf32> to vector<16x32xf32>
    %cst_105 = arith.constant dense<0.000000e+00> : vector<16x32xf32>
    %151 = tpu.matmul %128, %138, %cst_105 {dimension_numbers = #tpu.dot_dimension_numbers<[1], [0], [0], [1], [0, 0, 1, 1], [], []>} : vector<16x32xf32>, vector<32x32xf32>, vector<16x32xf32> -> vector<16x32xf32>
    %cst_106 = arith.constant dense<0.000000e+00> : vector<16x32xf32>
    %152 = tpu.matmul %140, %151, %cst_106 {dimension_numbers = #tpu.dot_dimension_numbers<[1], [0], [0], [1], [0, 0, 1, 1], [], []>} : vector<16x16xf32>, vector<16x32xf32>, vector<16x32xf32> -> vector<16x32xf32>
    %153 = arith.mulf %152, %141 : vector<16x32xf32>
    %154 = arith.addf %153, %142 : vector<16x32xf32>
    %155 = math.tanh %154 : vector<16x32xf32>
    %cst_107 = arith.constant dense<0.000000e+00> : vector<16x32xf32>
    %156 = tpu.matmul %134, %138, %cst_107 {dimension_numbers = #tpu.dot_dimension_numbers<[1], [0], [0], [1], [0, 0, 1, 1], [], []>} : vector<16x32xf32>, vector<32x32xf32>, vector<16x32xf32> -> vector<16x32xf32>
    %cst_108 = arith.constant dense<0.000000e+00> : vector<16x32xf32>
    %157 = tpu.matmul %140, %156, %cst_108 {dimension_numbers = #tpu.dot_dimension_numbers<[1], [0], [0], [1], [0, 0, 1, 1], [], []>} : vector<16x16xf32>, vector<16x32xf32>, vector<16x32xf32> -> vector<16x32xf32>
    %158 = arith.mulf %157, %141 : vector<16x32xf32>
    %159 = arith.addf %158, %142 : vector<16x32xf32>
    %160 = math.tanh %159 : vector<16x32xf32>
    %cst_109 = arith.constant dense<0.000000e+00> : vector<16x32xf32>
    %161 = tpu.matmul %155, %146, %cst_109 {dimension_numbers = #tpu.dot_dimension_numbers<[1], [0], [0], [1], [0, 0, 1, 1], [], []>} : vector<16x32xf32>, vector<32x32xf32>, vector<16x32xf32> -> vector<16x32xf32>
    %cst_110 = arith.constant dense<0.000000e+00> : vector<16x32xf32>
    %162 = tpu.matmul %148, %161, %cst_110 {dimension_numbers = #tpu.dot_dimension_numbers<[1], [0], [0], [1], [0, 0, 1, 1], [], []>} : vector<16x16xf32>, vector<16x32xf32>, vector<16x32xf32> -> vector<16x32xf32>
    %163 = arith.mulf %162, %149 : vector<16x32xf32>
    %164 = arith.addf %163, %150 : vector<16x32xf32>
    %165 = math.tanh %164 : vector<16x32xf32>
    %166 = arith.addf %165, %128 : vector<16x32xf32>
    %cst_111 = arith.constant dense<0.000000e+00> : vector<16x32xf32>
    %167 = tpu.matmul %160, %146, %cst_111 {dimension_numbers = #tpu.dot_dimension_numbers<[1], [0], [0], [1], [0, 0, 1, 1], [], []>} : vector<16x32xf32>, vector<32x32xf32>, vector<16x32xf32> -> vector<16x32xf32>
    %cst_112 = arith.constant dense<0.000000e+00> : vector<16x32xf32>
    %168 = tpu.matmul %148, %167, %cst_112 {dimension_numbers = #tpu.dot_dimension_numbers<[1], [0], [0], [1], [0, 0, 1, 1], [], []>} : vector<16x16xf32>, vector<16x32xf32>, vector<16x32xf32> -> vector<16x32xf32>
    %169 = arith.mulf %168, %149 : vector<16x32xf32>
    %170 = arith.addf %169, %150 : vector<16x32xf32>
    %171 = math.tanh %170 : vector<16x32xf32>
    %172 = arith.addf %171, %134 : vector<16x32xf32>
    %c0_113 = arith.constant 0 : index
    %c0_114 = arith.constant 0 : index
    %173 = vector.load %arg11[%c0_113, %c0_114] : memref<32x256xf32, #tpu.memory_space<vmem>>, vector<32x256xf32>
    %c0_115 = arith.constant 0 : index
    %c0_116 = arith.constant 0 : index
    %174 = vector.load %arg12[%c0_115, %c0_116] : memref<16x256xf32, #tpu.memory_space<vmem>>, vector<16x256xf32>
    %c0_117 = arith.constant 0 : index
    %c0_118 = arith.constant 0 : index
    %175 = vector.load %arg13[%c0_117, %c0_118] : memref<256x16xf32, #tpu.memory_space<vmem>>, vector<256x16xf32>
    %c0_119 = arith.constant 0 : index
    %c0_120 = arith.constant 0 : index
    %176 = vector.load %arg14[%c0_119, %c0_120] : memref<1x16xf32, #tpu.memory_space<vmem>>, vector<1x16xf32>
    %cst_121 = arith.constant dense<0.000000e+00> : vector<16x256xf32>
    %177 = tpu.matmul %166, %173, %cst_121 {dimension_numbers = #tpu.dot_dimension_numbers<[1], [0], [0], [1], [0, 0, 1, 1], [], []>} : vector<16x32xf32>, vector<32x256xf32>, vector<16x256xf32> -> vector<16x256xf32>
    %178 = arith.mulf %177, %174 : vector<16x256xf32>
    %cst_122 = arith.constant dense<0.000000e+00> : vector<256xf32>
    %179 = vector.multi_reduction <add>, %178, %cst_122 [0] : vector<16x256xf32> to vector<256xf32>
    %180 = vector.shape_cast %179 : vector<256xf32> to vector<1x256xf32>
    %cst_123 = arith.constant dense<0.000000e+00> : vector<1x16xf32>
    %181 = tpu.matmul %180, %175, %cst_123 {dimension_numbers = #tpu.dot_dimension_numbers<[1], [0], [0], [1], [0, 0, 1, 1], [], []>} : vector<1x256xf32>, vector<256x16xf32>, vector<1x16xf32> -> vector<1x16xf32>
    %182 = arith.addf %181, %176 : vector<1x16xf32>
    %cst_124 = arith.constant dense<0.000000e+00> : vector<16x256xf32>
    %183 = tpu.matmul %172, %173, %cst_124 {dimension_numbers = #tpu.dot_dimension_numbers<[1], [0], [0], [1], [0, 0, 1, 1], [], []>} : vector<16x32xf32>, vector<32x256xf32>, vector<16x256xf32> -> vector<16x256xf32>
    %184 = arith.mulf %183, %174 : vector<16x256xf32>
    %cst_125 = arith.constant dense<0.000000e+00> : vector<256xf32>
    %185 = vector.multi_reduction <add>, %184, %cst_125 [0] : vector<16x256xf32> to vector<256xf32>
    %186 = vector.shape_cast %185 : vector<256xf32> to vector<1x256xf32>
    %cst_126 = arith.constant dense<0.000000e+00> : vector<1x16xf32>
    %187 = tpu.matmul %186, %175, %cst_126 {dimension_numbers = #tpu.dot_dimension_numbers<[1], [0], [0], [1], [0, 0, 1, 1], [], []>} : vector<1x256xf32>, vector<256x16xf32>, vector<1x16xf32> -> vector<1x16xf32>
    %188 = arith.addf %187, %176 : vector<1x16xf32>
    %189 = tpu.concatenate %182, %188 in 0 : vector<1x16xf32>, vector<1x16xf32> -> vector<2x16xf32>
    %c0_127 = arith.constant 0 : index
    %c0_128 = arith.constant 0 : index
    %190 = vector.load %arg17[%c0_127, %c0_128] : memref<2x16xf32, #tpu.memory_space<vmem>>, vector<2x16xf32>
    tpu.vector_store %arg17[%c0_127, %c0_128], %189 {strides = array<i32>} : memref<2x16xf32, #tpu.memory_space<vmem>>, vector<2x16xf32>,
    %c0_129 = arith.constant 0 : index
    %c0_130 = arith.constant 0 : index
    %191 = vector.load %arg4[%c0_129, %c0_130] : memref<16x32xf32, #tpu.memory_space<vmem>>, vector<16x32xf32>
    %192 = vector.extract_strided_slice %191 {offsets = [0, 0], sizes = [8, 32], strides = [1, 1]} : vector<16x32xf32> to vector<8x32xf32>
    %193 = vector.extract_strided_slice %191 {offsets = [8, 0], sizes = [8, 32], strides = [1, 1]} : vector<16x32xf32> to vector<8x32xf32>
    %c1_131 = arith.constant 1 : index
    %c0_132 = arith.constant 0 : index
    %c0_133 = arith.constant 0 : index
    %194 = vector.load %arg9[%c1_131, %c0_132, %c0_133] : memref<2x32x32xf32, #tpu.memory_space<vmem>>, vector<1x32x32xf32>
    %195 = vector.shape_cast %194 : vector<1x32x32xf32> to vector<32x32xf32>
    %c1_134 = arith.constant 1 : index
    %c0_135 = arith.constant 0 : index
    %c0_136 = arith.constant 0 : index
    %196 = vector.load %arg7[%c1_134, %c0_135, %c0_136] : memref<3x16x16xf32, #tpu.memory_space<vmem>>, vector<1x16x16xf32>
    %197 = vector.shape_cast %196 : vector<1x16x16xf32> to vector<16x16xf32>
    %198 = vector.extract_strided_slice %195 {offsets = [0, 0], sizes = [16, 32], strides = [1, 1]} : vector<32x32xf32> to vector<16x32xf32>
    %199 = vector.extract_strided_slice %195 {offsets = [16, 0], sizes = [16, 32], strides = [1, 1]} : vector<32x32xf32> to vector<16x32xf32>
    %200 = vector.extract_strided_slice %182 {offsets = [0, 8], sizes = [1, 8], strides = [1, 1]} : vector<1x16xf32> to vector<1x8xf32>
    %cst_137 = arith.constant 5.000000e-01 : f32
    %201 = vector.broadcast %cst_137 : f32 to vector<1x8xf32>
    %202 = arith.mulf %201, %200 : vector<1x8xf32>
    %203 = math.exp %202 : vector<1x8xf32>
    %c0_138 = arith.constant 0 : index
    %c0_139 = arith.constant 0 : index
    %c0_140 = arith.constant 0 : index
    %204 = vector.load %arg2[%c0_138, %c0_139, %c0_140] : memref<2x1x8xf32, #tpu.memory_space<vmem>>, vector<1x1x8xf32>
    %205 = vector.shape_cast %204 : vector<1x1x8xf32> to vector<1x8xf32>
    %206 = arith.mulf %203, %205 : vector<1x8xf32>
    %207 = vector.extract_strided_slice %182 {offsets = [0, 0], sizes = [1, 8], strides = [1, 1]} : vector<1x16xf32> to vector<1x8xf32>
    %208 = arith.addf %206, %207 : vector<1x8xf32>
    %c0_141 = arith.constant 0 : index
    %c0_142 = arith.constant 0 : index
    %c0_143 = arith.constant 0 : index
    %209 = vector.load %arg1[%c0_141, %c0_142, %c0_143] : memref<2x16x8xf32, #tpu.memory_space<vmem>>, vector<1x16x8xf32>
    %210 = vector.shape_cast %209 : vector<1x16x8xf32> to vector<16x8xf32>
    %cst_144 = arith.constant dense<0.000000e+00> : vector<16x32xf32>
    %211 = tpu.matmul %210, %192, %cst_144 {dimension_numbers = #tpu.dot_dimension_numbers<[1], [0], [0], [1], [0, 0, 1, 1], [], []>} : vector<16x8xf32>, vector<8x32xf32>, vector<16x32xf32> -> vector<16x32xf32>
    %cst_145 = arith.constant dense<0.000000e+00> : vector<1x32xf32>
    %212 = tpu.matmul %208, %193, %cst_145 {dimension_numbers = #tpu.dot_dimension_numbers<[1], [0], [0], [1], [0, 0, 1, 1], [], []>} : vector<1x8xf32>, vector<8x32xf32>, vector<1x32xf32> -> vector<1x32xf32>
    %213 = vector.broadcast %212 : vector<1x32xf32> to vector<16x32xf32>
    %214 = arith.addf %211, %213 : vector<16x32xf32>
    %cst_146 = arith.constant dense<0.000000e+00> : vector<16x32xf32>
    %215 = tpu.matmul %197, %214, %cst_146 {dimension_numbers = #tpu.dot_dimension_numbers<[1], [0], [0], [1], [0, 0, 1, 1], [], []>} : vector<16x16xf32>, vector<16x32xf32>, vector<16x32xf32> -> vector<16x32xf32>
    %216 = arith.mulf %215, %198 : vector<16x32xf32>
    %217 = arith.addf %216, %199 : vector<16x32xf32>
    %218 = math.tanh %217 : vector<16x32xf32>
    %219 = vector.extract_strided_slice %188 {offsets = [0, 8], sizes = [1, 8], strides = [1, 1]} : vector<1x16xf32> to vector<1x8xf32>
    %cst_147 = arith.constant 5.000000e-01 : f32
    %220 = vector.broadcast %cst_147 : f32 to vector<1x8xf32>
    %221 = arith.mulf %220, %219 : vector<1x8xf32>
    %222 = math.exp %221 : vector<1x8xf32>
    %c1_148 = arith.constant 1 : index
    %c0_149 = arith.constant 0 : index
    %c0_150 = arith.constant 0 : index
    %223 = vector.load %arg2[%c1_148, %c0_149, %c0_150] : memref<2x1x8xf32, #tpu.memory_space<vmem>>, vector<1x1x8xf32>
    %224 = vector.shape_cast %223 : vector<1x1x8xf32> to vector<1x8xf32>
    %225 = arith.mulf %222, %224 : vector<1x8xf32>
    %226 = vector.extract_strided_slice %188 {offsets = [0, 0], sizes = [1, 8], strides = [1, 1]} : vector<1x16xf32> to vector<1x8xf32>
    %227 = arith.addf %225, %226 : vector<1x8xf32>
    %c1_151 = arith.constant 1 : index
    %c0_152 = arith.constant 0 : index
    %c0_153 = arith.constant 0 : index
    %228 = vector.load %arg1[%c1_151, %c0_152, %c0_153] : memref<2x16x8xf32, #tpu.memory_space<vmem>>, vector<1x16x8xf32>
    %229 = vector.shape_cast %228 : vector<1x16x8xf32> to vector<16x8xf32>
    %cst_154 = arith.constant dense<0.000000e+00> : vector<16x32xf32>
    %230 = tpu.matmul %229, %192, %cst_154 {dimension_numbers = #tpu.dot_dimension_numbers<[1], [0], [0], [1], [0, 0, 1, 1], [], []>} : vector<16x8xf32>, vector<8x32xf32>, vector<16x32xf32> -> vector<16x32xf32>
    %cst_155 = arith.constant dense<0.000000e+00> : vector<1x32xf32>
    %231 = tpu.matmul %227, %193, %cst_155 {dimension_numbers = #tpu.dot_dimension_numbers<[1], [0], [0], [1], [0, 0, 1, 1], [], []>} : vector<1x8xf32>, vector<8x32xf32>, vector<1x32xf32> -> vector<1x32xf32>
    %232 = vector.broadcast %231 : vector<1x32xf32> to vector<16x32xf32>
    %233 = arith.addf %230, %232 : vector<16x32xf32>
    %cst_156 = arith.constant dense<0.000000e+00> : vector<16x32xf32>
    %234 = tpu.matmul %197, %233, %cst_156 {dimension_numbers = #tpu.dot_dimension_numbers<[1], [0], [0], [1], [0, 0, 1, 1], [], []>} : vector<16x16xf32>, vector<16x32xf32>, vector<16x32xf32> -> vector<16x32xf32>
    %235 = arith.mulf %234, %198 : vector<16x32xf32>
    %236 = arith.addf %235, %199 : vector<16x32xf32>
    %237 = math.tanh %236 : vector<16x32xf32>
    %c8 = arith.constant 8 : index
    %c0_157 = arith.constant 0 : index
    %c0_158 = arith.constant 0 : index
    %238 = vector.load %arg10[%c8, %c0_157, %c0_158] : memref<16x32x32xf32, #tpu.memory_space<vmem>>, vector<1x32x32xf32>
    %239 = vector.shape_cast %238 : vector<1x32x32xf32> to vector<32x32xf32>
    %c8_159 = arith.constant 8 : index
    %c0_160 = arith.constant 0 : index
    %c0_161 = arith.constant 0 : index
    %240 = vector.load %arg6[%c8_159, %c0_160, %c0_161] : memref<16x32x32xf32, #tpu.memory_space<vmem>>, vector<1x32x32xf32>
    %241 = vector.shape_cast %240 : vector<1x32x32xf32> to vector<32x32xf32>
    %c8_162 = arith.constant 8 : index
    %c0_163 = arith.constant 0 : index
    %c0_164 = arith.constant 0 : index
    %242 = vector.load %arg8[%c8_162, %c0_163, %c0_164] : memref<16x16x16xf32, #tpu.memory_space<vmem>>, vector<1x16x16xf32>
    %243 = vector.shape_cast %242 : vector<1x16x16xf32> to vector<16x16xf32>
    %244 = vector.extract_strided_slice %239 {offsets = [0, 0], sizes = [16, 32], strides = [1, 1]} : vector<32x32xf32> to vector<16x32xf32>
    %245 = vector.extract_strided_slice %239 {offsets = [16, 0], sizes = [16, 32], strides = [1, 1]} : vector<32x32xf32> to vector<16x32xf32>
    %c9 = arith.constant 9 : index
    %c0_165 = arith.constant 0 : index
    %c0_166 = arith.constant 0 : index
    %246 = vector.load %arg10[%c9, %c0_165, %c0_166] : memref<16x32x32xf32, #tpu.memory_space<vmem>>, vector<1x32x32xf32>
    %247 = vector.shape_cast %246 : vector<1x32x32xf32> to vector<32x32xf32>
    %c9_167 = arith.constant 9 : index
    %c0_168 = arith.constant 0 : index
    %c0_169 = arith.constant 0 : index
    %248 = vector.load %arg6[%c9_167, %c0_168, %c0_169] : memref<16x32x32xf32, #tpu.memory_space<vmem>>, vector<1x32x32xf32>
    %249 = vector.shape_cast %248 : vector<1x32x32xf32> to vector<32x32xf32>
    %c9_170 = arith.constant 9 : index
    %c0_171 = arith.constant 0 : index
    %c0_172 = arith.constant 0 : index
    %250 = vector.load %arg8[%c9_170, %c0_171, %c0_172] : memref<16x16x16xf32, #tpu.memory_space<vmem>>, vector<1x16x16xf32>
    %251 = vector.shape_cast %250 : vector<1x16x16xf32> to vector<16x16xf32>
    %252 = vector.extract_strided_slice %247 {offsets = [0, 0], sizes = [16, 32], strides = [1, 1]} : vector<32x32xf32> to vector<16x32xf32>
    %253 = vector.extract_strided_slice %247 {offsets = [16, 0], sizes = [16, 32], strides = [1, 1]} : vector<32x32xf32> to vector<16x32xf32>
    %cst_173 = arith.constant dense<0.000000e+00> : vector<16x32xf32>
    %254 = tpu.matmul %218, %241, %cst_173 {dimension_numbers = #tpu.dot_dimension_numbers<[1], [0], [0], [1], [0, 0, 1, 1], [], []>} : vector<16x32xf32>, vector<32x32xf32>, vector<16x32xf32> -> vector<16x32xf32>
    %cst_174 = arith.constant dense<0.000000e+00> : vector<16x32xf32>
    %255 = tpu.matmul %243, %254, %cst_174 {dimension_numbers = #tpu.dot_dimension_numbers<[1], [0], [0], [1], [0, 0, 1, 1], [], []>} : vector<16x16xf32>, vector<16x32xf32>, vector<16x32xf32> -> vector<16x32xf32>
    %256 = arith.mulf %255, %244 : vector<16x32xf32>
    %257 = arith.addf %256, %245 : vector<16x32xf32>
    %258 = math.tanh %257 : vector<16x32xf32>
    %cst_175 = arith.constant dense<0.000000e+00> : vector<16x32xf32>
    %259 = tpu.matmul %237, %241, %cst_175 {dimension_numbers = #tpu.dot_dimension_numbers<[1], [0], [0], [1], [0, 0, 1, 1], [], []>} : vector<16x32xf32>, vector<32x32xf32>, vector<16x32xf32> -> vector<16x32xf32>
    %cst_176 = arith.constant dense<0.000000e+00> : vector<16x32xf32>
    %260 = tpu.matmul %243, %259, %cst_176 {dimension_numbers = #tpu.dot_dimension_numbers<[1], [0], [0], [1], [0, 0, 1, 1], [], []>} : vector<16x16xf32>, vector<16x32xf32>, vector<16x32xf32> -> vector<16x32xf32>
    %261 = arith.mulf %260, %244 : vector<16x32xf32>
    %262 = arith.addf %261, %245 : vector<16x32xf32>
    %263 = math.tanh %262 : vector<16x32xf32>
    %cst_177 = arith.constant dense<0.000000e+00> : vector<16x32xf32>
    %264 = tpu.matmul %258, %249, %cst_177 {dimension_numbers = #tpu.dot_dimension_numbers<[1], [0], [0], [1], [0, 0, 1, 1], [], []>} : vector<16x32xf32>, vector<32x32xf32>, vector<16x32xf32> -> vector<16x32xf32>
    %cst_178 = arith.constant dense<0.000000e+00> : vector<16x32xf32>
    %265 = tpu.matmul %251, %264, %cst_178 {dimension_numbers = #tpu.dot_dimension_numbers<[1], [0], [0], [1], [0, 0, 1, 1], [], []>} : vector<16x16xf32>, vector<16x32xf32>, vector<16x32xf32> -> vector<16x32xf32>
    %266 = arith.mulf %265, %252 : vector<16x32xf32>
    %267 = arith.addf %266, %253 : vector<16x32xf32>
    %268 = math.tanh %267 : vector<16x32xf32>
    %269 = arith.addf %268, %218 : vector<16x32xf32>
    %cst_179 = arith.constant dense<0.000000e+00> : vector<16x32xf32>
    %270 = tpu.matmul %263, %249, %cst_179 {dimension_numbers = #tpu.dot_dimension_numbers<[1], [0], [0], [1], [0, 0, 1, 1], [], []>} : vector<16x32xf32>, vector<32x32xf32>, vector<16x32xf32> -> vector<16x32xf32>
    %cst_180 = arith.constant dense<0.000000e+00> : vector<16x32xf32>
    %271 = tpu.matmul %251, %270, %cst_180 {dimension_numbers = #tpu.dot_dimension_numbers<[1], [0], [0], [1], [0, 0, 1, 1], [], []>} : vector<16x16xf32>, vector<16x32xf32>, vector<16x32xf32> -> vector<16x32xf32>
    %272 = arith.mulf %271, %252 : vector<16x32xf32>
    %273 = arith.addf %272, %253 : vector<16x32xf32>
    %274 = math.tanh %273 : vector<16x32xf32>
    %275 = arith.addf %274, %237 : vector<16x32xf32>
    %c10 = arith.constant 10 : index
    %c0_181 = arith.constant 0 : index
    %c0_182 = arith.constant 0 : index
    %276 = vector.load %arg10[%c10, %c0_181, %c0_182] : memref<16x32x32xf32, #tpu.memory_space<vmem>>, vector<1x32x32xf32>
    %277 = vector.shape_cast %276 : vector<1x32x32xf32> to vector<32x32xf32>
    %c10_183 = arith.constant 10 : index
    %c0_184 = arith.constant 0 : index
    %c0_185 = arith.constant 0 : index
    %278 = vector.load %arg6[%c10_183, %c0_184, %c0_185] : memref<16x32x32xf32, #tpu.memory_space<vmem>>, vector<1x32x32xf32>
    %279 = vector.shape_cast %278 : vector<1x32x32xf32> to vector<32x32xf32>
    %c10_186 = arith.constant 10 : index
    %c0_187 = arith.constant 0 : index
    %c0_188 = arith.constant 0 : index
    %280 = vector.load %arg8[%c10_186, %c0_187, %c0_188] : memref<16x16x16xf32, #tpu.memory_space<vmem>>, vector<1x16x16xf32>
    %281 = vector.shape_cast %280 : vector<1x16x16xf32> to vector<16x16xf32>
    %282 = vector.extract_strided_slice %277 {offsets = [0, 0], sizes = [16, 32], strides = [1, 1]} : vector<32x32xf32> to vector<16x32xf32>
    %283 = vector.extract_strided_slice %277 {offsets = [16, 0], sizes = [16, 32], strides = [1, 1]} : vector<32x32xf32> to vector<16x32xf32>
    %c11 = arith.constant 11 : index
    %c0_189 = arith.constant 0 : index
    %c0_190 = arith.constant 0 : index
    %284 = vector.load %arg10[%c11, %c0_189, %c0_190] : memref<16x32x32xf32, #tpu.memory_space<vmem>>, vector<1x32x32xf32>
    %285 = vector.shape_cast %284 : vector<1x32x32xf32> to vector<32x32xf32>
    %c11_191 = arith.constant 11 : index
    %c0_192 = arith.constant 0 : index
    %c0_193 = arith.constant 0 : index
    %286 = vector.load %arg6[%c11_191, %c0_192, %c0_193] : memref<16x32x32xf32, #tpu.memory_space<vmem>>, vector<1x32x32xf32>
    %287 = vector.shape_cast %286 : vector<1x32x32xf32> to vector<32x32xf32>
    %c11_194 = arith.constant 11 : index
    %c0_195 = arith.constant 0 : index
    %c0_196 = arith.constant 0 : index
    %288 = vector.load %arg8[%c11_194, %c0_195, %c0_196] : memref<16x16x16xf32, #tpu.memory_space<vmem>>, vector<1x16x16xf32>
    %289 = vector.shape_cast %288 : vector<1x16x16xf32> to vector<16x16xf32>
    %290 = vector.extract_strided_slice %285 {offsets = [0, 0], sizes = [16, 32], strides = [1, 1]} : vector<32x32xf32> to vector<16x32xf32>
    %291 = vector.extract_strided_slice %285 {offsets = [16, 0], sizes = [16, 32], strides = [1, 1]} : vector<32x32xf32> to vector<16x32xf32>
    %cst_197 = arith.constant dense<0.000000e+00> : vector<16x32xf32>
    %292 = tpu.matmul %269, %279, %cst_197 {dimension_numbers = #tpu.dot_dimension_numbers<[1], [0], [0], [1], [0, 0, 1, 1], [], []>} : vector<16x32xf32>, vector<32x32xf32>, vector<16x32xf32> -> vector<16x32xf32>
    %cst_198 = arith.constant dense<0.000000e+00> : vector<16x32xf32>
    %293 = tpu.matmul %281, %292, %cst_198 {dimension_numbers = #tpu.dot_dimension_numbers<[1], [0], [0], [1], [0, 0, 1, 1], [], []>} : vector<16x16xf32>, vector<16x32xf32>, vector<16x32xf32> -> vector<16x32xf32>
    %294 = arith.mulf %293, %282 : vector<16x32xf32>
    %295 = arith.addf %294, %283 : vector<16x32xf32>
    %296 = math.tanh %295 : vector<16x32xf32>
    %cst_199 = arith.constant dense<0.000000e+00> : vector<16x32xf32>
    %297 = tpu.matmul %275, %279, %cst_199 {dimension_numbers = #tpu.dot_dimension_numbers<[1], [0], [0], [1], [0, 0, 1, 1], [], []>} : vector<16x32xf32>, vector<32x32xf32>, vector<16x32xf32> -> vector<16x32xf32>
    %cst_200 = arith.constant dense<0.000000e+00> : vector<16x32xf32>
    %298 = tpu.matmul %281, %297, %cst_200 {dimension_numbers = #tpu.dot_dimension_numbers<[1], [0], [0], [1], [0, 0, 1, 1], [], []>} : vector<16x16xf32>, vector<16x32xf32>, vector<16x32xf32> -> vector<16x32xf32>
    %299 = arith.mulf %298, %282 : vector<16x32xf32>
    %300 = arith.addf %299, %283 : vector<16x32xf32>
    %301 = math.tanh %300 : vector<16x32xf32>
    %cst_201 = arith.constant dense<0.000000e+00> : vector<16x32xf32>
    %302 = tpu.matmul %296, %287, %cst_201 {dimension_numbers = #tpu.dot_dimension_numbers<[1], [0], [0], [1], [0, 0, 1, 1], [], []>} : vector<16x32xf32>, vector<32x32xf32>, vector<16x32xf32> -> vector<16x32xf32>
    %cst_202 = arith.constant dense<0.000000e+00> : vector<16x32xf32>
    %303 = tpu.matmul %289, %302, %cst_202 {dimension_numbers = #tpu.dot_dimension_numbers<[1], [0], [0], [1], [0, 0, 1, 1], [], []>} : vector<16x16xf32>, vector<16x32xf32>, vector<16x32xf32> -> vector<16x32xf32>
    %304 = arith.mulf %303, %290 : vector<16x32xf32>
    %305 = arith.addf %304, %291 : vector<16x32xf32>
    %306 = math.tanh %305 : vector<16x32xf32>
    %307 = arith.addf %306, %269 : vector<16x32xf32>
    %cst_203 = arith.constant dense<0.000000e+00> : vector<16x32xf32>
    %308 = tpu.matmul %301, %287, %cst_203 {dimension_numbers = #tpu.dot_dimension_numbers<[1], [0], [0], [1], [0, 0, 1, 1], [], []>} : vector<16x32xf32>, vector<32x32xf32>, vector<16x32xf32> -> vector<16x32xf32>
    %cst_204 = arith.constant dense<0.000000e+00> : vector<16x32xf32>
    %309 = tpu.matmul %289, %308, %cst_204 {dimension_numbers = #tpu.dot_dimension_numbers<[1], [0], [0], [1], [0, 0, 1, 1], [], []>} : vector<16x16xf32>, vector<16x32xf32>, vector<16x32xf32> -> vector<16x32xf32>
    %310 = arith.mulf %309, %290 : vector<16x32xf32>
    %311 = arith.addf %310, %291 : vector<16x32xf32>
    %312 = math.tanh %311 : vector<16x32xf32>
    %313 = arith.addf %312, %275 : vector<16x32xf32>
    %c12 = arith.constant 12 : index
    %c0_205 = arith.constant 0 : index
    %c0_206 = arith.constant 0 : index
    %314 = vector.load %arg10[%c12, %c0_205, %c0_206] : memref<16x32x32xf32, #tpu.memory_space<vmem>>, vector<1x32x32xf32>
    %315 = vector.shape_cast %314 : vector<1x32x32xf32> to vector<32x32xf32>
    %c12_207 = arith.constant 12 : index
    %c0_208 = arith.constant 0 : index
    %c0_209 = arith.constant 0 : index
    %316 = vector.load %arg6[%c12_207, %c0_208, %c0_209] : memref<16x32x32xf32, #tpu.memory_space<vmem>>, vector<1x32x32xf32>
    %317 = vector.shape_cast %316 : vector<1x32x32xf32> to vector<32x32xf32>
    %c12_210 = arith.constant 12 : index
    %c0_211 = arith.constant 0 : index
    %c0_212 = arith.constant 0 : index
    %318 = vector.load %arg8[%c12_210, %c0_211, %c0_212] : memref<16x16x16xf32, #tpu.memory_space<vmem>>, vector<1x16x16xf32>
    %319 = vector.shape_cast %318 : vector<1x16x16xf32> to vector<16x16xf32>
    %320 = vector.extract_strided_slice %315 {offsets = [0, 0], sizes = [16, 32], strides = [1, 1]} : vector<32x32xf32> to vector<16x32xf32>
    %321 = vector.extract_strided_slice %315 {offsets = [16, 0], sizes = [16, 32], strides = [1, 1]} : vector<32x32xf32> to vector<16x32xf32>
    %c13 = arith.constant 13 : index
    %c0_213 = arith.constant 0 : index
    %c0_214 = arith.constant 0 : index
    %322 = vector.load %arg10[%c13, %c0_213, %c0_214] : memref<16x32x32xf32, #tpu.memory_space<vmem>>, vector<1x32x32xf32>
    %323 = vector.shape_cast %322 : vector<1x32x32xf32> to vector<32x32xf32>
    %c13_215 = arith.constant 13 : index
    %c0_216 = arith.constant 0 : index
    %c0_217 = arith.constant 0 : index
    %324 = vector.load %arg6[%c13_215, %c0_216, %c0_217] : memref<16x32x32xf32, #tpu.memory_space<vmem>>, vector<1x32x32xf32>
    %325 = vector.shape_cast %324 : vector<1x32x32xf32> to vector<32x32xf32>
    %c13_218 = arith.constant 13 : index
    %c0_219 = arith.constant 0 : index
    %c0_220 = arith.constant 0 : index
    %326 = vector.load %arg8[%c13_218, %c0_219, %c0_220] : memref<16x16x16xf32, #tpu.memory_space<vmem>>, vector<1x16x16xf32>
    %327 = vector.shape_cast %326 : vector<1x16x16xf32> to vector<16x16xf32>
    %328 = vector.extract_strided_slice %323 {offsets = [0, 0], sizes = [16, 32], strides = [1, 1]} : vector<32x32xf32> to vector<16x32xf32>
    %329 = vector.extract_strided_slice %323 {offsets = [16, 0], sizes = [16, 32], strides = [1, 1]} : vector<32x32xf32> to vector<16x32xf32>
    %cst_221 = arith.constant dense<0.000000e+00> : vector<16x32xf32>
    %330 = tpu.matmul %307, %317, %cst_221 {dimension_numbers = #tpu.dot_dimension_numbers<[1], [0], [0], [1], [0, 0, 1, 1], [], []>} : vector<16x32xf32>, vector<32x32xf32>, vector<16x32xf32> -> vector<16x32xf32>
    %cst_222 = arith.constant dense<0.000000e+00> : vector<16x32xf32>
    %331 = tpu.matmul %319, %330, %cst_222 {dimension_numbers = #tpu.dot_dimension_numbers<[1], [0], [0], [1], [0, 0, 1, 1], [], []>} : vector<16x16xf32>, vector<16x32xf32>, vector<16x32xf32> -> vector<16x32xf32>
    %332 = arith.mulf %331, %320 : vector<16x32xf32>
    %333 = arith.addf %332, %321 : vector<16x32xf32>
    %334 = math.tanh %333 : vector<16x32xf32>
    %cst_223 = arith.constant dense<0.000000e+00> : vector<16x32xf32>
    %335 = tpu.matmul %313, %317, %cst_223 {dimension_numbers = #tpu.dot_dimension_numbers<[1], [0], [0], [1], [0, 0, 1, 1], [], []>} : vector<16x32xf32>, vector<32x32xf32>, vector<16x32xf32> -> vector<16x32xf32>
    %cst_224 = arith.constant dense<0.000000e+00> : vector<16x32xf32>
    %336 = tpu.matmul %319, %335, %cst_224 {dimension_numbers = #tpu.dot_dimension_numbers<[1], [0], [0], [1], [0, 0, 1, 1], [], []>} : vector<16x16xf32>, vector<16x32xf32>, vector<16x32xf32> -> vector<16x32xf32>
    %337 = arith.mulf %336, %320 : vector<16x32xf32>
    %338 = arith.addf %337, %321 : vector<16x32xf32>
    %339 = math.tanh %338 : vector<16x32xf32>
    %cst_225 = arith.constant dense<0.000000e+00> : vector<16x32xf32>
    %340 = tpu.matmul %334, %325, %cst_225 {dimension_numbers = #tpu.dot_dimension_numbers<[1], [0], [0], [1], [0, 0, 1, 1], [], []>} : vector<16x32xf32>, vector<32x32xf32>, vector<16x32xf32> -> vector<16x32xf32>
    %cst_226 = arith.constant dense<0.000000e+00> : vector<16x32xf32>
    %341 = tpu.matmul %327, %340, %cst_226 {dimension_numbers = #tpu.dot_dimension_numbers<[1], [0], [0], [1], [0, 0, 1, 1], [], []>} : vector<16x16xf32>, vector<16x32xf32>, vector<16x32xf32> -> vector<16x32xf32>
    %342 = arith.mulf %341, %328 : vector<16x32xf32>
    %343 = arith.addf %342, %329 : vector<16x32xf32>
    %344 = math.tanh %343 : vector<16x32xf32>
    %345 = arith.addf %344, %307 : vector<16x32xf32>
    %cst_227 = arith.constant dense<0.000000e+00> : vector<16x32xf32>
    %346 = tpu.matmul %339, %325, %cst_227 {dimension_numbers = #tpu.dot_dimension_numbers<[1], [0], [0], [1], [0, 0, 1, 1], [], []>} : vector<16x32xf32>, vector<32x32xf32>, vector<16x32xf32> -> vector<16x32xf32>
    %cst_228 = arith.constant dense<0.000000e+00> : vector<16x32xf32>
    %347 = tpu.matmul %327, %346, %cst_228 {dimension_numbers = #tpu.dot_dimension_numbers<[1], [0], [0], [1], [0, 0, 1, 1], [], []>} : vector<16x16xf32>, vector<16x32xf32>, vector<16x32xf32> -> vector<16x32xf32>
    %348 = arith.mulf %347, %328 : vector<16x32xf32>
    %349 = arith.addf %348, %329 : vector<16x32xf32>
    %350 = math.tanh %349 : vector<16x32xf32>
    %351 = arith.addf %350, %313 : vector<16x32xf32>
    %c14 = arith.constant 14 : index
    %c0_229 = arith.constant 0 : index
    %c0_230 = arith.constant 0 : index
    %352 = vector.load %arg10[%c14, %c0_229, %c0_230] : memref<16x32x32xf32, #tpu.memory_space<vmem>>, vector<1x32x32xf32>
    %353 = vector.shape_cast %352 : vector<1x32x32xf32> to vector<32x32xf32>
    %c14_231 = arith.constant 14 : index
    %c0_232 = arith.constant 0 : index
    %c0_233 = arith.constant 0 : index
    %354 = vector.load %arg6[%c14_231, %c0_232, %c0_233] : memref<16x32x32xf32, #tpu.memory_space<vmem>>, vector<1x32x32xf32>
    %355 = vector.shape_cast %354 : vector<1x32x32xf32> to vector<32x32xf32>
    %c14_234 = arith.constant 14 : index
    %c0_235 = arith.constant 0 : index
    %c0_236 = arith.constant 0 : index
    %356 = vector.load %arg8[%c14_234, %c0_235, %c0_236] : memref<16x16x16xf32, #tpu.memory_space<vmem>>, vector<1x16x16xf32>
    %357 = vector.shape_cast %356 : vector<1x16x16xf32> to vector<16x16xf32>
    %358 = vector.extract_strided_slice %353 {offsets = [0, 0], sizes = [16, 32], strides = [1, 1]} : vector<32x32xf32> to vector<16x32xf32>
    %359 = vector.extract_strided_slice %353 {offsets = [16, 0], sizes = [16, 32], strides = [1, 1]} : vector<32x32xf32> to vector<16x32xf32>
    %c15 = arith.constant 15 : index
    %c0_237 = arith.constant 0 : index
    %c0_238 = arith.constant 0 : index
    %360 = vector.load %arg10[%c15, %c0_237, %c0_238] : memref<16x32x32xf32, #tpu.memory_space<vmem>>, vector<1x32x32xf32>
    %361 = vector.shape_cast %360 : vector<1x32x32xf32> to vector<32x32xf32>
    %c15_239 = arith.constant 15 : index
    %c0_240 = arith.constant 0 : index
    %c0_241 = arith.constant 0 : index
    %362 = vector.load %arg6[%c15_239, %c0_240, %c0_241] : memref<16x32x32xf32, #tpu.memory_space<vmem>>, vector<1x32x32xf32>
    %363 = vector.shape_cast %362 : vector<1x32x32xf32> to vector<32x32xf32>
    %c15_242 = arith.constant 15 : index
    %c0_243 = arith.constant 0 : index
    %c0_244 = arith.constant 0 : index
    %364 = vector.load %arg8[%c15_242, %c0_243, %c0_244] : memref<16x16x16xf32, #tpu.memory_space<vmem>>, vector<1x16x16xf32>
    %365 = vector.shape_cast %364 : vector<1x16x16xf32> to vector<16x16xf32>
    %366 = vector.extract_strided_slice %361 {offsets = [0, 0], sizes = [16, 32], strides = [1, 1]} : vector<32x32xf32> to vector<16x32xf32>
    %367 = vector.extract_strided_slice %361 {offsets = [16, 0], sizes = [16, 32], strides = [1, 1]} : vector<32x32xf32> to vector<16x32xf32>
    %cst_245 = arith.constant dense<0.000000e+00> : vector<16x32xf32>
    %368 = tpu.matmul %345, %355, %cst_245 {dimension_numbers = #tpu.dot_dimension_numbers<[1], [0], [0], [1], [0, 0, 1, 1], [], []>} : vector<16x32xf32>, vector<32x32xf32>, vector<16x32xf32> -> vector<16x32xf32>
    %cst_246 = arith.constant dense<0.000000e+00> : vector<16x32xf32>
    %369 = tpu.matmul %357, %368, %cst_246 {dimension_numbers = #tpu.dot_dimension_numbers<[1], [0], [0], [1], [0, 0, 1, 1], [], []>} : vector<16x16xf32>, vector<16x32xf32>, vector<16x32xf32> -> vector<16x32xf32>
    %370 = arith.mulf %369, %358 : vector<16x32xf32>
    %371 = arith.addf %370, %359 : vector<16x32xf32>
    %372 = math.tanh %371 : vector<16x32xf32>
    %cst_247 = arith.constant dense<0.000000e+00> : vector<16x32xf32>
    %373 = tpu.matmul %351, %355, %cst_247 {dimension_numbers = #tpu.dot_dimension_numbers<[1], [0], [0], [1], [0, 0, 1, 1], [], []>} : vector<16x32xf32>, vector<32x32xf32>, vector<16x32xf32> -> vector<16x32xf32>
    %cst_248 = arith.constant dense<0.000000e+00> : vector<16x32xf32>
    %374 = tpu.matmul %357, %373, %cst_248 {dimension_numbers = #tpu.dot_dimension_numbers<[1], [0], [0], [1], [0, 0, 1, 1], [], []>} : vector<16x16xf32>, vector<16x32xf32>, vector<16x32xf32> -> vector<16x32xf32>
    %375 = arith.mulf %374, %358 : vector<16x32xf32>
    %376 = arith.addf %375, %359 : vector<16x32xf32>
    %377 = math.tanh %376 : vector<16x32xf32>
    %cst_249 = arith.constant dense<0.000000e+00> : vector<16x32xf32>
    %378 = tpu.matmul %372, %363, %cst_249 {dimension_numbers = #tpu.dot_dimension_numbers<[1], [0], [0], [1], [0, 0, 1, 1], [], []>} : vector<16x32xf32>, vector<32x32xf32>, vector<16x32xf32> -> vector<16x32xf32>
    %cst_250 = arith.constant dense<0.000000e+00> : vector<16x32xf32>
    %379 = tpu.matmul %365, %378, %cst_250 {dimension_numbers = #tpu.dot_dimension_numbers<[1], [0], [0], [1], [0, 0, 1, 1], [], []>} : vector<16x16xf32>, vector<16x32xf32>, vector<16x32xf32> -> vector<16x32xf32>
    %380 = arith.mulf %379, %366 : vector<16x32xf32>
    %381 = arith.addf %380, %367 : vector<16x32xf32>
    %382 = math.tanh %381 : vector<16x32xf32>
    %383 = arith.addf %382, %345 : vector<16x32xf32>
    %cst_251 = arith.constant dense<0.000000e+00> : vector<16x32xf32>
    %384 = tpu.matmul %377, %363, %cst_251 {dimension_numbers = #tpu.dot_dimension_numbers<[1], [0], [0], [1], [0, 0, 1, 1], [], []>} : vector<16x32xf32>, vector<32x32xf32>, vector<16x32xf32> -> vector<16x32xf32>
    %cst_252 = arith.constant dense<0.000000e+00> : vector<16x32xf32>
    %385 = tpu.matmul %365, %384, %cst_252 {dimension_numbers = #tpu.dot_dimension_numbers<[1], [0], [0], [1], [0, 0, 1, 1], [], []>} : vector<16x16xf32>, vector<16x32xf32>, vector<16x32xf32> -> vector<16x32xf32>
    %386 = arith.mulf %385, %366 : vector<16x32xf32>
    %387 = arith.addf %386, %367 : vector<16x32xf32>
    %388 = math.tanh %387 : vector<16x32xf32>
    %389 = arith.addf %388, %351 : vector<16x32xf32>
    %c0_253 = arith.constant 0 : index
    %c0_254 = arith.constant 0 : index
    %390 = vector.load %arg5[%c0_253, %c0_254] : memref<32x8xf32, #tpu.memory_space<vmem>>, vector<32x8xf32>
    %c2_255 = arith.constant 2 : index
    %c0_256 = arith.constant 0 : index
    %c0_257 = arith.constant 0 : index
    %391 = vector.load %arg7[%c2_255, %c0_256, %c0_257] : memref<3x16x16xf32, #tpu.memory_space<vmem>>, vector<1x16x16xf32>
    %392 = vector.shape_cast %391 : vector<1x16x16xf32> to vector<16x16xf32>
    %c0_258 = arith.constant 0 : index
    %c0_259 = arith.constant 0 : index
    %393 = vector.load %arg15[%c0_258, %c0_259] : memref<1x8xf32, #tpu.memory_space<vmem>>, vector<1x8xf32>
    %cst_260 = arith.constant dense<0.000000e+00> : vector<16x8xf32>
    %394 = tpu.matmul %383, %390, %cst_260 {dimension_numbers = #tpu.dot_dimension_numbers<[1], [0], [0], [1], [0, 0, 1, 1], [], []>} : vector<16x32xf32>, vector<32x8xf32>, vector<16x8xf32> -> vector<16x8xf32>
    %cst_261 = arith.constant dense<0.000000e+00> : vector<16x8xf32>
    %395 = tpu.matmul %392, %394, %cst_261 {dimension_numbers = #tpu.dot_dimension_numbers<[1], [0], [0], [1], [0, 0, 1, 1], [], []>} : vector<16x16xf32>, vector<16x8xf32>, vector<16x8xf32> -> vector<16x8xf32>
    %396 = vector.broadcast %393 : vector<1x8xf32> to vector<16x8xf32>
    %397 = arith.addf %395, %396 : vector<16x8xf32>
    %c0_262 = arith.constant 0 : index
    %c0_263 = arith.constant 0 : index
    %c0_264 = arith.constant 0 : index
    %398 = vector.load %arg1[%c0_262, %c0_263, %c0_264] : memref<2x16x8xf32, #tpu.memory_space<vmem>>, vector<1x16x8xf32>
    %399 = vector.shape_cast %398 : vector<1x16x8xf32> to vector<16x8xf32>
    %400 = arith.addf %397, %399 : vector<16x8xf32>
    %c0_265 = arith.constant 0 : index
    %c0_266 = arith.constant 0 : index
    %c0_267 = arith.constant 0 : index
    %401 = vector.load %arg16[%c0_265, %c0_266, %c0_267] : memref<2x16x8xf32, #tpu.memory_space<vmem>>, vector<1x16x8xf32>
    %402 = vector.shape_cast %401 : vector<1x16x8xf32> to vector<16x8xf32>
    %403 = vector.shape_cast %400 : vector<16x8xf32> to vector<1x16x8xf32>
    tpu.vector_store %arg16[%c0_265, %c0_266, %c0_267], %403 {strides = array<i32>} : memref<2x16x8xf32, #tpu.memory_space<vmem>>, vector<1x16x8xf32>,
    %cst_268 = arith.constant dense<0.000000e+00> : vector<16x8xf32>
    %404 = tpu.matmul %389, %390, %cst_268 {dimension_numbers = #tpu.dot_dimension_numbers<[1], [0], [0], [1], [0, 0, 1, 1], [], []>} : vector<16x32xf32>, vector<32x8xf32>, vector<16x8xf32> -> vector<16x8xf32>
    %cst_269 = arith.constant dense<0.000000e+00> : vector<16x8xf32>
    %405 = tpu.matmul %392, %404, %cst_269 {dimension_numbers = #tpu.dot_dimension_numbers<[1], [0], [0], [1], [0, 0, 1, 1], [], []>} : vector<16x16xf32>, vector<16x8xf32>, vector<16x8xf32> -> vector<16x8xf32>
    %406 = vector.broadcast %393 : vector<1x8xf32> to vector<16x8xf32>
    %407 = arith.addf %405, %406 : vector<16x8xf32>
    %c1_270 = arith.constant 1 : index
    %c0_271 = arith.constant 0 : index
    %c0_272 = arith.constant 0 : index
    %408 = vector.load %arg1[%c1_270, %c0_271, %c0_272] : memref<2x16x8xf32, #tpu.memory_space<vmem>>, vector<1x16x8xf32>
    %409 = vector.shape_cast %408 : vector<1x16x8xf32> to vector<16x8xf32>
    %410 = arith.addf %407, %409 : vector<16x8xf32>
    %c1_273 = arith.constant 1 : index
    %c0_274 = arith.constant 0 : index
    %c0_275 = arith.constant 0 : index
    %411 = vector.load %arg16[%c1_273, %c0_274, %c0_275] : memref<2x16x8xf32, #tpu.memory_space<vmem>>, vector<1x16x8xf32>
    %412 = vector.shape_cast %411 : vector<1x16x8xf32> to vector<16x8xf32>
    %413 = vector.shape_cast %410 : vector<16x8xf32> to vector<1x16x8xf32>
    tpu.vector_store %arg16[%c1_273, %c0_274, %c0_275], %413 {strides = array<i32>} : memref<2x16x8xf32, #tpu.memory_space<vmem>>, vector<1x16x8xf32>,
    return
  }
}

</mosaic_0001>

<llo_original>
// kernel: cvae_forward.1
$region0: #{cvae_forward.1}
  #allocation0 [shape = 'u32[]', space=smem, size = 0x4, offset = 0x4, fixed_abs, tag = 'smem constant byte address 0x4 - core index']
  #allocation1 [shape = 'u32[72,128]{1,0:T(1,128)}', space=vmem, size = 0x9000, scoped, tag = 'internal scratch']
  %s0 = inlined_call_operand.vmem [shape: f32[2,16,16], index: 0, kind: input, shape index: {}]
  %s1 = inlined_call_operand.vmem [shape: f32[2,16,8], index: 1, kind: input, shape index: {}]
  %s2 = inlined_call_operand.vmem [shape: f32[2,1,8], index: 2, kind: input, shape index: {}]
  %s3 = inlined_call_operand.hbm [shape: f32[16,32], index: 3, kind: input, shape index: {}]
  %s4 = inlined_call_operand.hbm [shape: f32[16,32], index: 4, kind: input, shape index: {}]
  %s5 = inlined_call_operand.vmem [shape: f32[32,8], index: 5, kind: input, shape index: {}]
  %s6 = inlined_call_operand.hbm [shape: f32[16,32,32], index: 6, kind: input, shape index: {}]
  %s7 = inlined_call_operand.vmem [shape: f32[3,16,16], index: 7, kind: input, shape index: {}]
  %s8 = inlined_call_operand.vmem [shape: f32[16,16,16], index: 8, kind: input, shape index: {}]
  %s9 = inlined_call_operand.vmem [shape: f32[2,32,32], index: 9, kind: input, shape index: {}]
  %s10 = inlined_call_operand.hbm [shape: f32[16,32,32], index: 10, kind: input, shape index: {}]
  %s11 = inlined_call_operand.vmem [shape: f32[32,256], index: 11, kind: input, shape index: {}]
  %s12 = inlined_call_operand.vmem [shape: f32[16,256], index: 12, kind: input, shape index: {}]
  %s13 = inlined_call_operand.vmem [shape: f32[256,16], index: 13, kind: input, shape index: {}]
  %s14 = inlined_call_operand.hbm [shape: f32[1,16], index: 14, kind: input, shape index: {}]
  %s15 = inlined_call_operand.hbm [shape: f32[1,8], index: 15, kind: input, shape index: {}]
  %s16 = inlined_call_operand.vmem [shape: f32[2,16,8], index: 16, kind: output, shape index: {0}]
  %s17 = inlined_call_operand.vmem [shape: f32[2,16], index: 17, kind: output, shape index: {1}]
  %18 = xla_tuple %s16, %s17
  %s19 = sld [smem:[#allocation0]]
  $region106: #{cvae_forward.1} parent=0
    _
  %s21 = ssub.s32 1, %s19
  %s22 = scalar_select 0, %s21, %s19
  $region1: #{cvae_forward.1} parent=0
    #allocation2 [shape = 'u8[8192]{0}', space=vmem, size = 0x2000, scoped, tag = 'input window, operand 3, single buffered']
    #allocation3 [shape = 's32[1]{0}', space=sflag, size = 0x4, scoped, tag = 'scoped memory for cvae_forward.1']
    #allocation4 [shape = 'u8[8192]{0}', space=vmem, size = 0x2000, scoped, tag = 'input window, operand 4, single buffered']
    #allocation5 [shape = 's32[1]{0}', space=sflag, size = 0x4, scoped, tag = 'scoped memory for cvae_forward.1']
    #allocation6 [shape = 'u8[262144]{0}', space=vmem, size = 0x40000, scoped, tag = 'input window, operand 6, single buffered']
    #allocation7 [shape = 'u8[262144]{0}', space=vmem, size = 0x40000, scoped, tag = 'input window, operand 10, single buffered']
    #allocation8 [shape = 's32[1]{0}', space=sflag, size = 0x4, scoped, tag = 'scoped memory for cvae_forward.1']
    #allocation9 [shape = 'u8[512]{0}', space=vmem, size = 0x400, scoped, tag = 'input window, operand 14, single buffered']
    #allocation10 [shape = 'u8[512]{0}', space=vmem, size = 0x400, scoped, tag = 'input window, operand 15, single buffered']
    #allocation11 [shape = 's32[1]{0}', space=sflag, size = 0x4, scoped, tag = 'scoped memory for cvae_forward.1']
    %23 = vsyncpa [#allocation3], 0
    %24 = vsyncpa [#allocation5], 0
    %25 = vsyncpa [#allocation8], 0
    %26 = vsyncpa [#allocation11], 0
    // Predicated region
    $region2: #{cvae_forward.1} parent=1 // pred_check
      _
    $region3: #{cvae_forward.1} parent=1 // pred_check_branch
      %28 = sbr.rel (0) target = $region5
    $region4: #{cvae_forward.1} parent=1 // pred_region
      _
    $region5: #{cvae_forward.1} parent=1 // pred_fallthru
      _
    // Predicated region
    $region6: #{cvae_forward.1} parent=1 // pred_check
      _
    $region7: #{cvae_forward.1} parent=1 // pred_check_branch
      %30 = sbr.rel (0) target = $region9
    $region8: #{cvae_forward.1} parent=1 // pred_region
      _
    $region9: #{cvae_forward.1} parent=1 // pred_fallthru
      _
    // Predicated region
    $region10: #{cvae_forward.1} parent=1 // pred_check
      _
    $region11: #{cvae_forward.1} parent=1 // pred_check_branch
      %32 = sbr.rel (0) target = $region13
    $region12: #{cvae_forward.1} parent=1 // pred_region
      _
    $region13: #{cvae_forward.1} parent=1 // pred_fallthru
      _
    // Predicated region
    $region14: #{cvae_forward.1} parent=1 // pred_check
      _
    $region15: #{cvae_forward.1} parent=1 // pred_check_branch
      %34 = sbr.rel (0) target = $region17
    $region16: #{cvae_forward.1} parent=1 // pred_region
      %36 = vsyncadd [#allocation3], 0
      %s37 = sshll.u32 %s3, 4
      %s38 = int_to_ptr.hbm [resolvable:$true] %s37
      %s39 = sshll.u32 [#allocation2], 4
      %s40 = int_to_ptr.vmem [resolvable:$true] %s39
      %45 = dma.hbm_to_vmem [thread:$0]  %s38, 256, %s40, [#allocation3], 128, 128, 8
    $region17: #{cvae_forward.1} parent=1 // pred_fallthru
      _
    // Predicated region
    $region18: #{cvae_forward.1} parent=1 // pred_check
      _
    $region19: #{cvae_forward.1} parent=1 // pred_check_branch
      %47 = sbr.rel (0) target = $region21
    $region20: #{cvae_forward.1} parent=1 // pred_region
      %49 = vsyncadd [#allocation5], 0
      %s50 = sshll.u32 %s4, 4
      %s51 = int_to_ptr.hbm [resolvable:$true] %s50
      %s52 = sshll.u32 [#allocation4], 4
      %s53 = int_to_ptr.vmem [resolvable:$true] %s52
      %58 = dma.hbm_to_vmem [thread:$0]  %s51, 256, %s53, [#allocation5], 128, 128, 8
    $region21: #{cvae_forward.1} parent=1 // pred_fallthru
      _
    // Predicated region
    $region22: #{cvae_forward.1} parent=1 // pred_check
      _
    $region23: #{cvae_forward.1} parent=1 // pred_check_branch
      %60 = sbr.rel (0) target = $region25
    $region24: #{cvae_forward.1} parent=1 // pred_region
      _
    $region25: #{cvae_forward.1} parent=1 // pred_fallthru
      _
    // Predicated region
    $region26: #{cvae_forward.1} parent=1 // pred_check
      _
    $region27: #{cvae_forward.1} parent=1 // pred_check_branch
      %62 = sbr.rel (0) target = $region29
    $region28: #{cvae_forward.1} parent=1 // pred_region
      %64 = vsyncadd [#allocation5], 0
      %s65 = sshll.u32 %s6, 4
      %s66 = int_to_ptr.hbm [resolvable:$true] %s65
      %s67 = sshll.u32 [#allocation6], 4
      %s68 = int_to_ptr.vmem [resolvable:$true] %s67
      %73 = dma.hbm_to_vmem [thread:$0]  %s66, 8192, %s68, [#allocation5], 128, 128, 8
    $region29: #{cvae_forward.1} parent=1 // pred_fallthru
      _
    // Predicated region
    $region30: #{cvae_forward.1} parent=1 // pred_check
      _
    $region31: #{cvae_forward.1} parent=1 // pred_check_branch
      %75 = sbr.rel (0) target = $region33
    $region32: #{cvae_forward.1} parent=1 // pred_region
      _
    $region33: #{cvae_forward.1} parent=1 // pred_fallthru
      _
    // Predicated region
    $region34: #{cvae_forward.1} parent=1 // pred_check
      _
    $region35: #{cvae_forward.1} parent=1 // pred_check_branch
      %77 = sbr.rel (0) target = $region37
    $region36: #{cvae_forward.1} parent=1 // pred_region
      _
    $region37: #{cvae_forward.1} parent=1 // pred_fallthru
      _
    // Predicated region
    $region38: #{cvae_forward.1} parent=1 // pred_check
      _
    $region39: #{cvae_forward.1} parent=1 // pred_check_branch
      %79 = sbr.rel (0) target = $region41
    $region40: #{cvae_forward.1} parent=1 // pred_region
      _
    $region41: #{cvae_forward.1} parent=1 // pred_fallthru
      _
    // Predicated region
    $region42: #{cvae_forward.1} parent=1 // pred_check
      _
    $region43: #{cvae_forward.1} parent=1 // pred_check_branch
      %81 = sbr.rel (0) target = $region45
    $region44: #{cvae_forward.1} parent=1 // pred_region
      %83 = vsyncadd [#allocation8], 0
      %s84 = sshll.u32 %s10, 4
      %s85 = int_to_ptr.hbm [resolvable:$true] %s84
      %s86 = sshll.u32 [#allocation7], 4
      %s87 = int_to_ptr.vmem [resolvable:$true] %s86
      %92 = dma.hbm_to_vmem [thread:$0]  %s85, 8192, %s87, [#allocation8], 128, 128, 8
    $region45: #{cvae_forward.1} parent=1 // pred_fallthru
      _
    // Predicated region
    $region46: #{cvae_forward.1} parent=1 // pred_check
      _
    $region47: #{cvae_forward.1} parent=1 // pred_check_branch
      %94 = sbr.rel (0) target = $region49
    $region48: #{cvae_forward.1} parent=1 // pred_region
      _
    $region49: #{cvae_forward.1} parent=1 // pred_fallthru
      _
    // Predicated region
    $region50: #{cvae_forward.1} parent=1 // pred_check
      _
    $region51: #{cvae_forward.1} parent=1 // pred_check_branch
      %96 = sbr.rel (0) target = $region53
    $region52: #{cvae_forward.1} parent=1 // pred_region
      _
    $region53: #{cvae_forward.1} parent=1 // pred_fallthru
      _
    // Predicated region
    $region54: #{cvae_forward.1} parent=1 // pred_check
      _
    $region55: #{cvae_forward.1} parent=1 // pred_check_branch
      %98 = sbr.rel (0) target = $region57
    $region56: #{cvae_forward.1} parent=1 // pred_region
      _
    $region57: #{cvae_forward.1} parent=1 // pred_fallthru
      _
    // Predicated region
    $region58: #{cvae_forward.1} parent=1 // pred_check
      _
    $region59: #{cvae_forward.1} parent=1 // pred_check_branch
      %100 = sbr.rel (0) target = $region61
    $region60: #{cvae_forward.1} parent=1 // pred_region
      %102 = vsyncadd [#allocation8], 0
      %s104 = sshll.u32 %s14, 4
      %s105 = int_to_ptr.hbm [resolvable:$true] %s104
      %s106 = sshll.u32 [#allocation9], 4
      %s107 = int_to_ptr.vmem [resolvable:$true] %s106
      %109 = dma.hbm_to_vmem [thread:$0]  %s105, 16, %s107, [#allocation8]
    $region61: #{cvae_forward.1} parent=1 // pred_fallthru
      _
    // Predicated region
    $region62: #{cvae_forward.1} parent=1 // pred_check
      _
    $region63: #{cvae_forward.1} parent=1 // pred_check_branch
      %111 = sbr.rel (0) target = $region65
    $region64: #{cvae_forward.1} parent=1 // pred_region
      %113 = vsyncadd [#allocation11], 0
      %s115 = sshll.u32 %s15, 4
      %s116 = int_to_ptr.hbm [resolvable:$true] %s115
      %s117 = sshll.u32 [#allocation10], 4
      %s118 = int_to_ptr.vmem [resolvable:$true] %s117
      %120 = dma.hbm_to_vmem [thread:$0]  %s116, 16, %s118, [#allocation11]
    $region65: #{cvae_forward.1} parent=1 // pred_fallthru
      _
    // Predicated region
    $region66: #{cvae_forward.1} parent=1 // pred_check
      _
    $region67: #{cvae_forward.1} parent=1 // pred_check_branch
      %122 = sbr.rel (0) target = $region69
    $region68: #{cvae_forward.1} parent=1 // pred_region
      %124 = dma.done [#allocation3], 256
    $region69: #{cvae_forward.1} parent=1 // pred_fallthru
      _
    // Predicated region
    $region70: #{cvae_forward.1} parent=1 // pred_check
      _
    $region71: #{cvae_forward.1} parent=1 // pred_check_branch
      %126 = sbr.rel (0) target = $region73
    $region72: #{cvae_forward.1} parent=1 // pred_region
      %128 = dma.done [#allocation5], 256
    $region73: #{cvae_forward.1} parent=1 // pred_fallthru
      _
    // Predicated region
    $region74: #{cvae_forward.1} parent=1 // pred_check
      _
    $region75: #{cvae_forward.1} parent=1 // pred_check_branch
      %130 = sbr.rel (0) target = $region77
    $region76: #{cvae_forward.1} parent=1 // pred_region
      %132 = dma.done [#allocation5], 8192
    $region77: #{cvae_forward.1} parent=1 // pred_fallthru
      _
    // Predicated region
    $region78: #{cvae_forward.1} parent=1 // pred_check
      _
    $region79: #{cvae_forward.1} parent=1 // pred_check_branch
      %134 = sbr.rel (0) target = $region81
    $region80: #{cvae_forward.1} parent=1 // pred_region
      %136 = dma.done [#allocation8], 8192
    $region81: #{cvae_forward.1} parent=1 // pred_fallthru
      _
    // Predicated region
    $region82: #{cvae_forward.1} parent=1 // pred_check
      _
    $region83: #{cvae_forward.1} parent=1 // pred_check_branch
      %138 = sbr.rel (0) target = $region85
    $region84: #{cvae_forward.1} parent=1 // pred_region
      %140 = dma.done [#allocation8], 16
    $region85: #{cvae_forward.1} parent=1 // pred_fallthru
      _
    // Predicated region
    $region86: #{cvae_forward.1} parent=1 // pred_check
      _
    $region87: #{cvae_forward.1} parent=1 // pred_check_branch
      %142 = sbr.rel (0) target = $region89
    $region88: #{cvae_forward.1} parent=1 // pred_region
      %144 = dma.done [#allocation11], 16
    $region89: #{cvae_forward.1} parent=1 // pred_fallthru
      _
    %v145 = vld [vmem:[#allocation2] sm:$0xff]
    %v146 = vld [vmem:[#allocation2 + $0x8] sm:$0xff]
    %v147 = vld [vmem:[%s9] sm:$0xff]
    %v148 = vld [vmem:[%s9 + $0x8] sm:$0xff]
    %v149 = vld [vmem:[%s9 + $0x10] sm:$0xff]
    %v150 = vld [vmem:[%s9 + $0x18] sm:$0xff]
    %v151 = vld [vmem:[%s7] sm:$0xff]
    %v152 = vld [vmem:[%s7 + $0x8] sm:$0xff]
    %v153 = vld [vmem:[%s0] sm:$0xff]
    %v154 = vld [vmem:[%s0 + $0x8] sm:$0xff]
    %vm155 = vcmask 130048
    %v157 = vsel %vm155, %v153, 0
    %v160 = vsel %vm155, %v154, 0
    %162 = vmatpush.msra.mxu0 0.0
    %163 = vmatpush.msra.mxu0 0.0
    %164 = vmatpush.msra.mxu0 0.0
    %165 = vmatpush.msra.mxu0 0.0
    %166 = vmatpush.msra.mxu0 0.0
    %167 = vmatpush.msra.mxu0 0.0
    %168 = vmatpush.msra.mxu0 0.0
    %169 = vmatpush.msra.mxu0 0.0
    %170 = vmatpush.msra.mxu0 0.0
    %171 = vmatpush.msra.mxu0 0.0
    %172 = vmatpush.msra.mxu0 0.0
    %173 = vmatpush.msra.mxu0 0.0
    %174 = vmatpush.msra.mxu0 0.0
    %175 = vmatpush.msra.mxu0 0.0
    %176 = vmatpush.msra.mxu0 %v146
    %177 = vmatpush.msra.mxu0 %v145
    %178 = vmatmul.f32.gmra.mxu0 %v157
    %v179 = vpop.f32.mrf.mxu0
    %v180 = vadd.f32 0.0, %v179
    %181 = vmatmul.f32.gmra.mxu0 %v160
    %v182 = vpop.f32.mrf.mxu0
    %v183 = vadd.f32 0.0, %v182
    %184 = vdwg.mxu0
    %v186 = vsel %vm155, %v151, 0
    %v189 = vsel %vm155, %v152, 0
    %191 = vmatpush.msra.mxu0 0.0
    %192 = vmatpush.msra.mxu0 0.0
    %193 = vmatpush.msra.mxu0 0.0
    %194 = vmatpush.msra.mxu0 0.0
    %195 = vmatpush.msra.mxu0 0.0
    %196 = vmatpush.msra.mxu0 0.0
    %197 = vmatpush.msra.mxu0 0.0
    %198 = vmatpush.msra.mxu0 0.0
    %199 = vmatpush.msra.mxu0 0.0
    %200 = vmatpush.msra.mxu0 0.0
    %201 = vmatpush.msra.mxu0 0.0
    %202 = vmatpush.msra.mxu0 0.0
    %203 = vmatpush.msra.mxu0 0.0
    %204 = vmatpush.msra.mxu0 0.0
    %205 = vmatpush.msra.mxu0 %v183
    %206 = vmatpush.msra.mxu0 %v180
    %207 = vmatmul.f32.gmra.mxu0 %v186
    %v208 = vpop.f32.mrf.mxu0
    %v209 = vadd.f32 0.0, %v208
    %210 = vmatmul.f32.gmra.mxu0 %v189
    %v211 = vpop.f32.mrf.mxu0
    %v212 = vadd.f32 0.0, %v211
    %213 = vdwg.mxu0
    %v214 = vmul.f32 %v209, %v147
    %v215 = vmul.f32 %v212, %v148
    %v216 = vadd.f32 %v214, %v149
    %v217 = vadd.f32 %v215, %v150
    %v218 = vtanh.pop %v216
    %v219 = vtanh.pop %v217
    %s220 = scalar_lea.vmem %s0, 16
    %v221 = vld [vmem:[%s220] sm:$0xff]
    %v222 = vld [vmem:[%s220 + $0x8] sm:$0xff]
    %v224 = vsel %vm155, %v221, 0
    %v227 = vsel %vm155, %v222, 0
    %229 = vmatpush.msra.mxu0 0.0
    %230 = vmatpush.msra.mxu0 0.0
    %231 = vmatpush.msra.mxu0 0.0
    %232 = vmatpush.msra.mxu0 0.0
    %233 = vmatpush.msra.mxu0 0.0
    %234 = vmatpush.msra.mxu0 0.0
    %235 = vmatpush.msra.mxu0 0.0
    %236 = vmatpush.msra.mxu0 0.0
    %237 = vmatpush.msra.mxu0 0.0
    %238 = vmatpush.msra.mxu0 0.0
    %239 = vmatpush.msra.mxu0 0.0
    %240 = vmatpush.msra.mxu0 0.0
    %241 = vmatpush.msra.mxu0 0.0
    %242 = vmatpush.msra.mxu0 0.0
    %243 = vmatpush.msra.mxu0 %v146
    %244 = vmatpush.msra.mxu0 %v145
    %245 = vmatmul.f32.gmra.mxu0 %v224
    %v246 = vpop.f32.mrf.mxu0
    %v247 = vadd.f32 0.0, %v246
    %248 = vmatmul.f32.gmra.mxu0 %v227
    %v249 = vpop.f32.mrf.mxu0
    %v250 = vadd.f32 0.0, %v249
    %251 = vdwg.mxu0
    %252 = vmatpush.msra.mxu0 0.0
    %253 = vmatpush.msra.mxu0 0.0
    %254 = vmatpush.msra.mxu0 0.0
    %255 = vmatpush.msra.mxu0 0.0
    %256 = vmatpush.msra.mxu0 0.0
    %257 = vmatpush.msra.mxu0 0.0
    %258 = vmatpush.msra.mxu0 0.0
    %259 = vmatpush.msra.mxu0 0.0
    %260 = vmatpush.msra.mxu0 0.0
    %261 = vmatpush.msra.mxu0 0.0
    %262 = vmatpush.msra.mxu0 0.0
    %263 = vmatpush.msra.mxu0 0.0
    %264 = vmatpush.msra.mxu0 0.0
    %265 = vmatpush.msra.mxu0 0.0
    %266 = vmatpush.msra.mxu0 %v250
    %267 = vmatpush.msra.mxu0 %v247
    %268 = vmatmul.f32.gmra.mxu0 %v186
    %v269 = vpop.f32.mrf.mxu0
    %v270 = vadd.f32 0.0, %v269
    %271 = vmatmul.f32.gmra.mxu0 %v189
    %v272 = vpop.f32.mrf.mxu0
    %v273 = vadd.f32 0.0, %v272
    %274 = vdwg.mxu0
    %v275 = vmul.f32 %v270, %v147
    %v276 = vmul.f32 %v273, %v148
    %v277 = vadd.f32 %v275, %v149
    %v278 = vadd.f32 %v276, %v150
    %v279 = vtanh.pop %v277
    %v280 = vtanh.pop %v278
    %v281 = vld [vmem:[#allocation7] sm:$0xff]
    %v282 = vld [vmem:[#allocation7 + $0x8] sm:$0xff]
    %v283 = vld [vmem:[#allocation7 + $0x10] sm:$0xff]
    %v284 = vld [vmem:[#allocation7 + $0x18] sm:$0xff]
    %v285 = vld [vmem:[#allocation6] sm:$0xff]
    %v286 = vld [vmem:[#allocation6 + $0x8] sm:$0xff]
    %v287 = vld [vmem:[#allocation6 + $0x10] sm:$0xff]
    %v288 = vld [vmem:[#allocation6 + $0x18] sm:$0xff]
    %v289 = vld [vmem:[%s8] sm:$0xff]
    %v290 = vld [vmem:[%s8 + $0x8] sm:$0xff]
    %s291 = scalar_lea.vmem [#allocation7], 32
    %v292 = vld [vmem:[%s291] sm:$0xff]
    %v293 = vld [vmem:[%s291 + $0x8] sm:$0xff]
    %v294 = vld [vmem:[%s291 + $0x10] sm:$0xff]
    %v295 = vld [vmem:[%s291 + $0x18] sm:$0xff]
    %s296 = scalar_lea.vmem [#allocation6], 32
    %v297 = vld [vmem:[%s296] sm:$0xff]
    %v298 = vld [vmem:[%s296 + $0x8] sm:$0xff]
    %v299 = vld [vmem:[%s296 + $0x10] sm:$0xff]
    %v300 = vld [vmem:[%s296 + $0x18] sm:$0xff]
    %s301 = scalar_lea.vmem %s8, 16
    %v302 = vld [vmem:[%s301] sm:$0xff]
    %v303 = vld [vmem:[%s301 + $0x8] sm:$0xff]
    %vm304 = vcmask 261120
    %v306 = vsel %vm304, %v218, 0
    %v309 = vsel %vm304, %v219, 0
    %311 = vmatpush.msra.mxu0 0.0
    %312 = vmatpush.msra.mxu0 0.0
    %313 = vmatpush.msra.mxu0 0.0
    %314 = vmatpush.msra.mxu0 0.0
    %315 = vmatpush.msra.mxu0 0.0
    %316 = vmatpush.msra.mxu0 0.0
    %317 = vmatpush.msra.mxu0 0.0
    %318 = vmatpush.msra.mxu0 0.0
    %319 = vmatpush.msra.mxu0 0.0
    %320 = vmatpush.msra.mxu0 0.0
    %321 = vmatpush.msra.mxu0 0.0
    %322 = vmatpush.msra.mxu0 0.0
    %323 = vmatpush.msra.mxu0 %v288
    %324 = vmatpush.msra.mxu0 %v287
    %325 = vmatpush.msra.mxu0 %v286
    %326 = vmatpush.msra.mxu0 %v285
    %327 = vmatmul.f32.gmra.mxu0 %v306
    %v328 = vpop.f32.mrf.mxu0
    %v329 = vadd.f32 0.0, %v328
    %330 = vmatmul.f32.gmra.mxu0 %v309
    %v331 = vpop.f32.mrf.mxu0
    %v332 = vadd.f32 0.0, %v331
    %333 = vdwg.mxu0
    %v335 = vsel %vm155, %v289, 0
    %v338 = vsel %vm155, %v290, 0
    %340 = vmatpush.msra.mxu0 0.0
    %341 = vmatpush.msra.mxu0 0.0
    %342 = vmatpush.msra.mxu0 0.0
    %343 = vmatpush.msra.mxu0 0.0
    %344 = vmatpush.msra.mxu0 0.0
    %345 = vmatpush.msra.mxu0 0.0
    %346 = vmatpush.msra.mxu0 0.0
    %347 = vmatpush.msra.mxu0 0.0
    %348 = vmatpush.msra.mxu0 0.0
    %349 = vmatpush.msra.mxu0 0.0
    %350 = vmatpush.msra.mxu0 0.0
    %351 = vmatpush.msra.mxu0 0.0
    %352 = vmatpush.msra.mxu0 0.0
    %353 = vmatpush.msra.mxu0 0.0
    %354 = vmatpush.msra.mxu0 %v332
    %355 = vmatpush.msra.mxu0 %v329
    %356 = vmatmul.f32.gmra.mxu0 %v335
    %v357 = vpop.f32.mrf.mxu0
    %v358 = vadd.f32 0.0, %v357
    %359 = vmatmul.f32.gmra.mxu0 %v338
    %v360 = vpop.f32.mrf.mxu0
    %v361 = vadd.f32 0.0, %v360
    %362 = vdwg.mxu0
    %v363 = vmul.f32 %v358, %v281
    %v364 = vmul.f32 %v361, %v282
    %v365 = vadd.f32 %v363, %v283
    %v366 = vadd.f32 %v364, %v284
    %v367 = vtanh.pop %v365
    %v368 = vtanh.pop %v366
    %v370 = vsel %vm304, %v279, 0
    %v373 = vsel %vm304, %v280, 0
    %375 = vmatpush.msra.mxu0 0.0
    %376 = vmatpush.msra.mxu0 0.0
    %377 = vmatpush.msra.mxu0 0.0
    %378 = vmatpush.msra.mxu0 0.0
    %379 = vmatpush.msra.mxu0 0.0
    %380 = vmatpush.msra.mxu0 0.0
    %381 = vmatpush.msra.mxu0 0.0
    %382 = vmatpush.msra.mxu0 0.0
    %383 = vmatpush.msra.mxu0 0.0
    %384 = vmatpush.msra.mxu0 0.0
    %385 = vmatpush.msra.mxu0 0.0
    %386 = vmatpush.msra.mxu0 0.0
    %387 = vmatpush.msra.mxu0 %v288
    %388 = vmatpush.msra.mxu0 %v287
    %389 = vmatpush.msra.mxu0 %v286
    %390 = vmatpush.msra.mxu0 %v285
    %391 = vmatmul.f32.gmra.mxu0 %v370
    %v392 = vpop.f32.mrf.mxu0
    %v393 = vadd.f32 0.0, %v392
    %394 = vmatmul.f32.gmra.mxu0 %v373
    %v395 = vpop.f32.mrf.mxu0
    %v396 = vadd.f32 0.0, %v395
    %397 = vdwg.mxu0
    %398 = vmatpush.msra.mxu0 0.0
    %399 = vmatpush.msra.mxu0 0.0
    %400 = vmatpush.msra.mxu0 0.0
    %401 = vmatpush.msra.mxu0 0.0
    %402 = vmatpush.msra.mxu0 0.0
    %403 = vmatpush.msra.mxu0 0.0
    %404 = vmatpush.msra.mxu0 0.0
    %405 = vmatpush.msra.mxu0 0.0
    %406 = vmatpush.msra.mxu0 0.0
    %407 = vmatpush.msra.mxu0 0.0
    %408 = vmatpush.msra.mxu0 0.0
    %409 = vmatpush.msra.mxu0 0.0
    %410 = vmatpush.msra.mxu0 0.0
    %411 = vmatpush.msra.mxu0 0.0
    %412 = vmatpush.msra.mxu0 %v396
    %413 = vmatpush.msra.mxu0 %v393
    %414 = vmatmul.f32.gmra.mxu0 %v335
    %v415 = vpop.f32.mrf.mxu0
    %v416 = vadd.f32 0.0, %v415
    %417 = vmatmul.f32.gmra.mxu0 %v338
    %v418 = vpop.f32.mrf.mxu0
    %v419 = vadd.f32 0.0, %v418
    %420 = vdwg.mxu0
    %v421 = vmul.f32 %v416, %v281
    %v422 = vmul.f32 %v419, %v282
    %v423 = vadd.f32 %v421, %v283
    %v424 = vadd.f32 %v422, %v284
    %v425 = vtanh.pop %v423
    %v426 = vtanh.pop %v424
    %v428 = vsel %vm304, %v367, 0
    %v431 = vsel %vm304, %v368, 0
    %433 = vmatpush.msra.mxu0 0.0
    %434 = vmatpush.msra.mxu0 0.0
    %435 = vmatpush.msra.mxu0 0.0
    %436 = vmatpush.msra.mxu0 0.0
    %437 = vmatpush.msra.mxu0 0.0
    %438 = vmatpush.msra.mxu0 0.0
    %439 = vmatpush.msra.mxu0 0.0
    %440 = vmatpush.msra.mxu0 0.0
    %441 = vmatpush.msra.mxu0 0.0
    %442 = vmatpush.msra.mxu0 0.0
    %443 = vmatpush.msra.mxu0 0.0
    %444 = vmatpush.msra.mxu0 0.0
    %445 = vmatpush.msra.mxu0 %v300
    %446 = vmatpush.msra.mxu0 %v299
    %447 = vmatpush.msra.mxu0 %v298
    %448 = vmatpush.msra.mxu0 %v297
    %449 = vmatmul.f32.gmra.mxu0 %v428
    %v450 = vpop.f32.mrf.mxu0
    %v451 = vadd.f32 0.0, %v450
    %452 = vmatmul.f32.gmra.mxu0 %v431
    %v453 = vpop.f32.mrf.mxu0
    %v454 = vadd.f32 0.0, %v453
    %455 = vdwg.mxu0
    %v457 = vsel %vm155, %v302, 0
    %v460 = vsel %vm155, %v303, 0
    %462 = vmatpush.msra.mxu0 0.0
    %463 = vmatpush.msra.mxu0 0.0
    %464 = vmatpush.msra.mxu0 0.0
    %465 = vmatpush.msra.mxu0 0.0
    %466 = vmatpush.msra.mxu0 0.0
    %467 = vmatpush.msra.mxu0 0.0
    %468 = vmatpush.msra.mxu0 0.0
    %469 = vmatpush.msra.mxu0 0.0
    %470 = vmatpush.msra.mxu0 0.0
    %471 = vmatpush.msra.mxu0 0.0
    %472 = vmatpush.msra.mxu0 0.0
    %473 = vmatpush.msra.mxu0 0.0
    %474 = vmatpush.msra.mxu0 0.0
    %475 = vmatpush.msra.mxu0 0.0
    %476 = vmatpush.msra.mxu0 %v454
    %477 = vmatpush.msra.mxu0 %v451
    %478 = vmatmul.f32.gmra.mxu0 %v457
    %v479 = vpop.f32.mrf.mxu0
    %v480 = vadd.f32 0.0, %v479
    %481 = vmatmul.f32.gmra.mxu0 %v460
    %v482 = vpop.f32.mrf.mxu0
    %v483 = vadd.f32 0.0, %v482
    %484 = vdwg.mxu0
    %v485 = vmul.f32 %v480, %v292
    %v486 = vmul.f32 %v483, %v293
    %v487 = vadd.f32 %v485, %v294
    %v488 = vadd.f32 %v486, %v295
    %v489 = vtanh.pop %v487
    %v490 = vtanh.pop %v488
    %v491 = vadd.f32 %v489, %v218
    %v492 = vadd.f32 %v490, %v219
    %v494 = vsel %vm304, %v425, 0
    %v497 = vsel %vm304, %v426, 0
    %499 = vmatpush.msra.mxu0 0.0
    %500 = vmatpush.msra.mxu0 0.0
    %501 = vmatpush.msra.mxu0 0.0
    %502 = vmatpush.msra.mxu0 0.0
    %503 = vmatpush.msra.mxu0 0.0
    %504 = vmatpush.msra.mxu0 0.0
    %505 = vmatpush.msra.mxu0 0.0
    %506 = vmatpush.msra.mxu0 0.0
    %507 = vmatpush.msra.mxu0 0.0
    %508 = vmatpush.msra.mxu0 0.0
    %509 = vmatpush.msra.mxu0 0.0
    %510 = vmatpush.msra.mxu0 0.0
    %511 = vmatpush.msra.mxu0 %v300
    %512 = vmatpush.msra.mxu0 %v299
    %513 = vmatpush.msra.mxu0 %v298
    %514 = vmatpush.msra.mxu0 %v297
    %515 = vmatmul.f32.gmra.mxu0 %v494
    %v516 = vpop.f32.mrf.mxu0
    %v517 = vadd.f32 0.0, %v516
    %518 = vmatmul.f32.gmra.mxu0 %v497
    %v519 = vpop.f32.mrf.mxu0
    %v520 = vadd.f32 0.0, %v519
    %521 = vdwg.mxu0
    %522 = vmatpush.msra.mxu0 0.0
    %523 = vmatpush.msra.mxu0 0.0
    %524 = vmatpush.msra.mxu0 0.0
    %525 = vmatpush.msra.mxu0 0.0
    %526 = vmatpush.msra.mxu0 0.0
    %527 = vmatpush.msra.mxu0 0.0
    %528 = vmatpush.msra.mxu0 0.0
    %529 = vmatpush.msra.mxu0 0.0
    %530 = vmatpush.msra.mxu0 0.0
    %531 = vmatpush.msra.mxu0 0.0
    %532 = vmatpush.msra.mxu0 0.0
    %533 = vmatpush.msra.mxu0 0.0
    %534 = vmatpush.msra.mxu0 0.0
    %535 = vmatpush.msra.mxu0 0.0
    %536 = vmatpush.msra.mxu0 %v520
    %537 = vmatpush.msra.mxu0 %v517
    %538 = vmatmul.f32.gmra.mxu0 %v457
    %v539 = vpop.f32.mrf.mxu0
    %v540 = vadd.f32 0.0, %v539
    %541 = vmatmul.f32.gmra.mxu0 %v460
    %v542 = vpop.f32.mrf.mxu0
    %v543 = vadd.f32 0.0, %v542
    %544 = vdwg.mxu0
    %v545 = vmul.f32 %v540, %v292
    %v546 = vmul.f32 %v543, %v293
    %v547 = vadd.f32 %v545, %v294
    %v548 = vadd.f32 %v546, %v295
    %v549 = vtanh.pop %v547
    %v550 = vtanh.pop %v548
    %v551 = vadd.f32 %v549, %v279
    %v552 = vadd.f32 %v550, %v280
    %s553 = scalar_lea.vmem [#allocation7], 64
    %v554 = vld [vmem:[%s553] sm:$0xff]
    %v555 = vld [vmem:[%s553 + $0x8] sm:$0xff]
    %v556 = vld [vmem:[%s553 + $0x10] sm:$0xff]
    %v557 = vld [vmem:[%s553 + $0x18] sm:$0xff]
    %s558 = scalar_lea.vmem [#allocation6], 64
    %v559 = vld [vmem:[%s558] sm:$0xff]
    %v560 = vld [vmem:[%s558 + $0x8] sm:$0xff]
    %v561 = vld [vmem:[%s558 + $0x10] sm:$0xff]
    %v562 = vld [vmem:[%s558 + $0x18] sm:$0xff]
    %s563 = scalar_lea.vmem %s8, 32
    %v564 = vld [vmem:[%s563] sm:$0xff]
    %v565 = vld [vmem:[%s563 + $0x8] sm:$0xff]
    %s566 = scalar_lea.vmem [#allocation7], 96
    %v567 = vld [vmem:[%s566] sm:$0xff]
    %v568 = vld [vmem:[%s566 + $0x8] sm:$0xff]
    %v569 = vld [vmem:[%s566 + $0x10] sm:$0xff]
    %v570 = vld [vmem:[%s566 + $0x18] sm:$0xff]
    %s571 = scalar_lea.vmem [#allocation6], 96
    %v572 = vld [vmem:[%s571] sm:$0xff]
    %v573 = vld [vmem:[%s571 + $0x8] sm:$0xff]
    %v574 = vld [vmem:[%s571 + $0x10] sm:$0xff]
    %v575 = vld [vmem:[%s571 + $0x18] sm:$0xff]
    %s576 = scalar_lea.vmem %s8, 48
    %v577 = vld [vmem:[%s576] sm:$0xff]
    %v578 = vld [vmem:[%s576 + $0x8] sm:$0xff]
    %v580 = vsel %vm304, %v491, 0
    %v583 = vsel %vm304, %v492, 0
    %585 = vmatpush.msra.mxu0 0.0
    %586 = vmatpush.msra.mxu0 0.0
    %587 = vmatpush.msra.mxu0 0.0
    %588 = vmatpush.msra.mxu0 0.0
    %589 = vmatpush.msra.mxu0 0.0
    %590 = vmatpush.msra.mxu0 0.0
    %591 = vmatpush.msra.mxu0 0.0
    %592 = vmatpush.msra.mxu0 0.0
    %593 = vmatpush.msra.mxu0 0.0
    %594 = vmatpush.msra.mxu0 0.0
    %595 = vmatpush.msra.mxu0 0.0
    %596 = vmatpush.msra.mxu0 0.0
    %597 = vmatpush.msra.mxu0 %v562
    %598 = vmatpush.msra.mxu0 %v561
    %599 = vmatpush.msra.mxu0 %v560
    %600 = vmatpush.msra.mxu0 %v559
    %601 = vmatmul.f32.gmra.mxu0 %v580
    %v602 = vpop.f32.mrf.mxu0
    %v603 = vadd.f32 0.0, %v602
    %604 = vmatmul.f32.gmra.mxu0 %v583
    %v605 = vpop.f32.mrf.mxu0
    %v606 = vadd.f32 0.0, %v605
    %607 = vdwg.mxu0
    %v609 = vsel %vm155, %v564, 0
    %v612 = vsel %vm155, %v565, 0
    %614 = vmatpush.msra.mxu0 0.0
    %615 = vmatpush.msra.mxu0 0.0
    %616 = vmatpush.msra.mxu0 0.0
    %617 = vmatpush.msra.mxu0 0.0
    %618 = vmatpush.msra.mxu0 0.0
    %619 = vmatpush.msra.mxu0 0.0
    %620 = vmatpush.msra.mxu0 0.0
    %621 = vmatpush.msra.mxu0 0.0
    %622 = vmatpush.msra.mxu0 0.0
    %623 = vmatpush.msra.mxu0 0.0
    %624 = vmatpush.msra.mxu0 0.0
    %625 = vmatpush.msra.mxu0 0.0
    %626 = vmatpush.msra.mxu0 0.0
    %627 = vmatpush.msra.mxu0 0.0
    %628 = vmatpush.msra.mxu0 %v606
    %629 = vmatpush.msra.mxu0 %v603
    %630 = vmatmul.f32.gmra.mxu0 %v609
    %v631 = vpop.f32.mrf.mxu0
    %v632 = vadd.f32 0.0, %v631
    %633 = vmatmul.f32.gmra.mxu0 %v612
    %v634 = vpop.f32.mrf.mxu0
    %v635 = vadd.f32 0.0, %v634
    %636 = vdwg.mxu0
    %v637 = vmul.f32 %v632, %v554
    %v638 = vmul.f32 %v635, %v555
    %v639 = vadd.f32 %v637, %v556
    %v640 = vadd.f32 %v638, %v557
    %v641 = vtanh.pop %v639
    %v642 = vtanh.pop %v640
    %v644 = vsel %vm304, %v551, 0
    %v647 = vsel %vm304, %v552, 0
    %649 = vmatpush.msra.mxu0 0.0
    %650 = vmatpush.msra.mxu0 0.0
    %651 = vmatpush.msra.mxu0 0.0
    %652 = vmatpush.msra.mxu0 0.0
    %653 = vmatpush.msra.mxu0 0.0
    %654 = vmatpush.msra.mxu0 0.0
    %655 = vmatpush.msra.mxu0 0.0
    %656 = vmatpush.msra.mxu0 0.0
    %657 = vmatpush.msra.mxu0 0.0
    %658 = vmatpush.msra.mxu0 0.0
    %659 = vmatpush.msra.mxu0 0.0
    %660 = vmatpush.msra.mxu0 0.0
    %661 = vmatpush.msra.mxu0 %v562
    %662 = vmatpush.msra.mxu0 %v561
    %663 = vmatpush.msra.mxu0 %v560
    %664 = vmatpush.msra.mxu0 %v559
    %665 = vmatmul.f32.gmra.mxu0 %v644
    %v666 = vpop.f32.mrf.mxu0
    %v667 = vadd.f32 0.0, %v666
    %668 = vmatmul.f32.gmra.mxu0 %v647
    %v669 = vpop.f32.mrf.mxu0
    %v670 = vadd.f32 0.0, %v669
    %671 = vdwg.mxu0
    %672 = vmatpush.msra.mxu0 0.0
    %673 = vmatpush.msra.mxu0 0.0
    %674 = vmatpush.msra.mxu0 0.0
    %675 = vmatpush.msra.mxu0 0.0
    %676 = vmatpush.msra.mxu0 0.0
    %677 = vmatpush.msra.mxu0 0.0
    %678 = vmatpush.msra.mxu0 0.0
    %679 = vmatpush.msra.mxu0 0.0
    %680 = vmatpush.msra.mxu0 0.0
    %681 = vmatpush.msra.mxu0 0.0
    %682 = vmatpush.msra.mxu0 0.0
    %683 = vmatpush.msra.mxu0 0.0
    %684 = vmatpush.msra.mxu0 0.0
    %685 = vmatpush.msra.mxu0 0.0
    %686 = vmatpush.msra.mxu0 %v670
    %687 = vmatpush.msra.mxu0 %v667
    %688 = vmatmul.f32.gmra.mxu0 %v609
    %v689 = vpop.f32.mrf.mxu0
    %v690 = vadd.f32 0.0, %v689
    %691 = vmatmul.f32.gmra.mxu0 %v612
    %v692 = vpop.f32.mrf.mxu0
    %v693 = vadd.f32 0.0, %v692
    %694 = vdwg.mxu0
    %v695 = vmul.f32 %v690, %v554
    %v696 = vmul.f32 %v693, %v555
    %v697 = vadd.f32 %v695, %v556
    %v698 = vadd.f32 %v696, %v557
    %v699 = vtanh.pop %v697
    %v700 = vtanh.pop %v698
    %v702 = vsel %vm304, %v641, 0
    %v705 = vsel %vm304, %v642, 0
    %707 = vmatpush.msra.mxu0 0.0
    %708 = vmatpush.msra.mxu0 0.0
    %709 = vmatpush.msra.mxu0 0.0
    %710 = vmatpush.msra.mxu0 0.0
    %711 = vmatpush.msra.mxu0 0.0
    %712 = vmatpush.msra.mxu0 0.0
    %713 = vmatpush.msra.mxu0 0.0
    %714 = vmatpush.msra.mxu0 0.0
    %715 = vmatpush.msra.mxu0 0.0
    %716 = vmatpush.msra.mxu0 0.0
    %717 = vmatpush.msra.mxu0 0.0
    %718 = vmatpush.msra.mxu0 0.0
    %719 = vmatpush.msra.mxu0 %v575
    %720 = vmatpush.msra.mxu0 %v574
    %721 = vmatpush.msra.mxu0 %v573
    %722 = vmatpush.msra.mxu0 %v572
    %723 = vmatmul.f32.gmra.mxu0 %v702
    %v724 = vpop.f32.mrf.mxu0
    %v725 = vadd.f32 0.0, %v724
    %726 = vmatmul.f32.gmra.mxu0 %v705
    %v727 = vpop.f32.mrf.mxu0
    %v728 = vadd.f32 0.0, %v727
    %729 = vdwg.mxu0
    %v731 = vsel %vm155, %v577, 0
    %v734 = vsel %vm155, %v578, 0
    %736 = vmatpush.msra.mxu0 0.0
    %737 = vmatpush.msra.mxu0 0.0
    %738 = vmatpush.msra.mxu0 0.0
    %739 = vmatpush.msra.mxu0 0.0
    %740 = vmatpush.msra.mxu0 0.0
    %741 = vmatpush.msra.mxu0 0.0
    %742 = vmatpush.msra.mxu0 0.0
    %743 = vmatpush.msra.mxu0 0.0
    %744 = vmatpush.msra.mxu0 0.0
    %745 = vmatpush.msra.mxu0 0.0
    %746 = vmatpush.msra.mxu0 0.0
    %747 = vmatpush.msra.mxu0 0.0
    %748 = vmatpush.msra.mxu0 0.0
    %749 = vmatpush.msra.mxu0 0.0
    %750 = vmatpush.msra.mxu0 %v728
    %751 = vmatpush.msra.mxu0 %v725
    %752 = vmatmul.f32.gmra.mxu0 %v731
    %v753 = vpop.f32.mrf.mxu0
    %v754 = vadd.f32 0.0, %v753
    %755 = vmatmul.f32.gmra.mxu0 %v734
    %v756 = vpop.f32.mrf.mxu0
    %v757 = vadd.f32 0.0, %v756
    %758 = vdwg.mxu0
    %v759 = vmul.f32 %v754, %v567
    %v760 = vmul.f32 %v757, %v568
    %v761 = vadd.f32 %v759, %v569
    %v762 = vadd.f32 %v760, %v570
    %v763 = vtanh.pop %v761
    %v764 = vtanh.pop %v762
    %v765 = vadd.f32 %v763, %v491
    %v766 = vadd.f32 %v764, %v492
    %v768 = vsel %vm304, %v699, 0
    %v771 = vsel %vm304, %v700, 0
    %773 = vmatpush.msra.mxu0 0.0
    %774 = vmatpush.msra.mxu0 0.0
    %775 = vmatpush.msra.mxu0 0.0
    %776 = vmatpush.msra.mxu0 0.0
    %777 = vmatpush.msra.mxu0 0.0
    %778 = vmatpush.msra.mxu0 0.0
    %779 = vmatpush.msra.mxu0 0.0
    %780 = vmatpush.msra.mxu0 0.0
    %781 = vmatpush.msra.mxu0 0.0
    %782 = vmatpush.msra.mxu0 0.0
    %783 = vmatpush.msra.mxu0 0.0
    %784 = vmatpush.msra.mxu0 0.0
    %785 = vmatpush.msra.mxu0 %v575
    %786 = vmatpush.msra.mxu0 %v574
    %787 = vmatpush.msra.mxu0 %v573
    %788 = vmatpush.msra.mxu0 %v572
    %789 = vmatmul.f32.gmra.mxu0 %v768
    %v790 = vpop.f32.mrf.mxu0
    %v791 = vadd.f32 0.0, %v790
    %792 = vmatmul.f32.gmra.mxu0 %v771
    %v793 = vpop.f32.mrf.mxu0
    %v794 = vadd.f32 0.0, %v793
    %795 = vdwg.mxu0
    %796 = vmatpush.msra.mxu0 0.0
    %797 = vmatpush.msra.mxu0 0.0
    %798 = vmatpush.msra.mxu0 0.0
    %799 = vmatpush.msra.mxu0 0.0
    %800 = vmatpush.msra.mxu0 0.0
    %801 = vmatpush.msra.mxu0 0.0
    %802 = vmatpush.msra.mxu0 0.0
    %803 = vmatpush.msra.mxu0 0.0
    %804 = vmatpush.msra.mxu0 0.0
    %805 = vmatpush.msra.mxu0 0.0
    %806 = vmatpush.msra.mxu0 0.0
    %807 = vmatpush.msra.mxu0 0.0
    %808 = vmatpush.msra.mxu0 0.0
    %809 = vmatpush.msra.mxu0 0.0
    %810 = vmatpush.msra.mxu0 %v794
    %811 = vmatpush.msra.mxu0 %v791
    %812 = vmatmul.f32.gmra.mxu0 %v731
    %v813 = vpop.f32.mrf.mxu0
    %v814 = vadd.f32 0.0, %v813
    %815 = vmatmul.f32.gmra.mxu0 %v734
    %v816 = vpop.f32.mrf.mxu0
    %v817 = vadd.f32 0.0, %v816
    %818 = vdwg.mxu0
    %v819 = vmul.f32 %v814, %v567
    %v820 = vmul.f32 %v817, %v568
    %v821 = vadd.f32 %v819, %v569
    %v822 = vadd.f32 %v820, %v570
    %v823 = vtanh.pop %v821
    %v824 = vtanh.pop %v822
    %v825 = vadd.f32 %v823, %v551
    %v826 = vadd.f32 %v824, %v552
    %s827 = scalar_lea.vmem [#allocation7], 128
    %v828 = vld [vmem:[%s827] sm:$0xff]
    %v829 = vld [vmem:[%s827 + $0x8] sm:$0xff]
    %v830 = vld [vmem:[%s827 + $0x10] sm:$0xff]
    %v831 = vld [vmem:[%s827 + $0x18] sm:$0xff]
    %s832 = scalar_lea.vmem [#allocation6], 128
    %v833 = vld [vmem:[%s832] sm:$0xff]
    %v834 = vld [vmem:[%s832 + $0x8] sm:$0xff]
    %v835 = vld [vmem:[%s832 + $0x10] sm:$0xff]
    %v836 = vld [vmem:[%s832 + $0x18] sm:$0xff]
    %s837 = scalar_lea.vmem %s8, 64
    %v838 = vld [vmem:[%s837] sm:$0xff]
    %v839 = vld [vmem:[%s837 + $0x8] sm:$0xff]
    %s840 = scalar_lea.vmem [#allocation7], 160
    %v841 = vld [vmem:[%s840] sm:$0xff]
    %v842 = vld [vmem:[%s840 + $0x8] sm:$0xff]
    %v843 = vld [vmem:[%s840 + $0x10] sm:$0xff]
    %v844 = vld [vmem:[%s840 + $0x18] sm:$0xff]
    %s845 = scalar_lea.vmem [#allocation6], 160
    %v846 = vld [vmem:[%s845] sm:$0xff]
    %v847 = vld [vmem:[%s845 + $0x8] sm:$0xff]
    %v848 = vld [vmem:[%s845 + $0x10] sm:$0xff]
    %v849 = vld [vmem:[%s845 + $0x18] sm:$0xff]
    %s850 = scalar_lea.vmem %s8, 80
    %v851 = vld [vmem:[%s850] sm:$0xff]
    %v852 = vld [vmem:[%s850 + $0x8] sm:$0xff]
    %v854 = vsel %vm304, %v765, 0
    %v857 = vsel %vm304, %v766, 0
    %859 = vmatpush.msra.mxu0 0.0
    %860 = vmatpush.msra.mxu0 0.0
    %861 = vmatpush.msra.mxu0 0.0
    %862 = vmatpush.msra.mxu0 0.0
    %863 = vmatpush.msra.mxu0 0.0
    %864 = vmatpush.msra.mxu0 0.0
    %865 = vmatpush.msra.mxu0 0.0
    %866 = vmatpush.msra.mxu0 0.0
    %867 = vmatpush.msra.mxu0 0.0
    %868 = vmatpush.msra.mxu0 0.0
    %869 = vmatpush.msra.mxu0 0.0
    %870 = vmatpush.msra.mxu0 0.0
    %871 = vmatpush.msra.mxu0 %v836
    %872 = vmatpush.msra.mxu0 %v835
    %873 = vmatpush.msra.mxu0 %v834
    %874 = vmatpush.msra.mxu0 %v833
    %875 = vmatmul.f32.gmra.mxu0 %v854
    %v876 = vpop.f32.mrf.mxu0
    %v877 = vadd.f32 0.0, %v876
    %878 = vmatmul.f32.gmra.mxu0 %v857
    %v879 = vpop.f32.mrf.mxu0
    %v880 = vadd.f32 0.0, %v879
    %881 = vdwg.mxu0
    %v883 = vsel %vm155, %v838, 0
    %v886 = vsel %vm155, %v839, 0
    %888 = vmatpush.msra.mxu0 0.0
    %889 = vmatpush.msra.mxu0 0.0
    %890 = vmatpush.msra.mxu0 0.0
    %891 = vmatpush.msra.mxu0 0.0
    %892 = vmatpush.msra.mxu0 0.0
    %893 = vmatpush.msra.mxu0 0.0
    %894 = vmatpush.msra.mxu0 0.0
    %895 = vmatpush.msra.mxu0 0.0
    %896 = vmatpush.msra.mxu0 0.0
    %897 = vmatpush.msra.mxu0 0.0
    %898 = vmatpush.msra.mxu0 0.0
    %899 = vmatpush.msra.mxu0 0.0
    %900 = vmatpush.msra.mxu0 0.0
    %901 = vmatpush.msra.mxu0 0.0
    %902 = vmatpush.msra.mxu0 %v880
    %903 = vmatpush.msra.mxu0 %v877
    %904 = vmatmul.f32.gmra.mxu0 %v883
    %v905 = vpop.f32.mrf.mxu0
    %v906 = vadd.f32 0.0, %v905
    %907 = vmatmul.f32.gmra.mxu0 %v886
    %v908 = vpop.f32.mrf.mxu0
    %v909 = vadd.f32 0.0, %v908
    %910 = vdwg.mxu0
    %v911 = vmul.f32 %v906, %v828
    %v912 = vmul.f32 %v909, %v829
    %v913 = vadd.f32 %v911, %v830
    %v914 = vadd.f32 %v912, %v831
    %v915 = vtanh.pop %v913
    %v916 = vtanh.pop %v914
    %v918 = vsel %vm304, %v825, 0
    %v921 = vsel %vm304, %v826, 0
    %923 = vmatpush.msra.mxu0 0.0
    %924 = vmatpush.msra.mxu0 0.0
    %925 = vmatpush.msra.mxu0 0.0
    %926 = vmatpush.msra.mxu0 0.0
    %927 = vmatpush.msra.mxu0 0.0
    %928 = vmatpush.msra.mxu0 0.0
    %929 = vmatpush.msra.mxu0 0.0
    %930 = vmatpush.msra.mxu0 0.0
    %931 = vmatpush.msra.mxu0 0.0
    %932 = vmatpush.msra.mxu0 0.0
    %933 = vmatpush.msra.mxu0 0.0
    %934 = vmatpush.msra.mxu0 0.0
    %935 = vmatpush.msra.mxu0 %v836
    %936 = vmatpush.msra.mxu0 %v835
    %937 = vmatpush.msra.mxu0 %v834
    %938 = vmatpush.msra.mxu0 %v833
    %939 = vmatmul.f32.gmra.mxu0 %v918
    %v940 = vpop.f32.mrf.mxu0
    %v941 = vadd.f32 0.0, %v940
    %942 = vmatmul.f32.gmra.mxu0 %v921
    %v943 = vpop.f32.mrf.mxu0
    %v944 = vadd.f32 0.0, %v943
    %945 = vdwg.mxu0
    %946 = vmatpush.msra.mxu0 0.0
    %947 = vmatpush.msra.mxu0 0.0
    %948 = vmatpush.msra.mxu0 0.0
    %949 = vmatpush.msra.mxu0 0.0
    %950 = vmatpush.msra.mxu0 0.0
    %951 = vmatpush.msra.mxu0 0.0
    %952 = vmatpush.msra.mxu0 0.0
    %953 = vmatpush.msra.mxu0 0.0
    %954 = vmatpush.msra.mxu0 0.0
    %955 = vmatpush.msra.mxu0 0.0
    %956 = vmatpush.msra.mxu0 0.0
    %957 = vmatpush.msra.mxu0 0.0
    %958 = vmatpush.msra.mxu0 0.0
    %959 = vmatpush.msra.mxu0 0.0
    %960 = vmatpush.msra.mxu0 %v944
    %961 = vmatpush.msra.mxu0 %v941
    %962 = vmatmul.f32.gmra.mxu0 %v883
    %v963 = vpop.f32.mrf.mxu0
    %v964 = vadd.f32 0.0, %v963
    %965 = vmatmul.f32.gmra.mxu0 %v886
    %v966 = vpop.f32.mrf.mxu0
    %v967 = vadd.f32 0.0, %v966
    %968 = vdwg.mxu0
    %v969 = vmul.f32 %v964, %v828
    %v970 = vmul.f32 %v967, %v829
    %v971 = vadd.f32 %v969, %v830
    %v972 = vadd.f32 %v970, %v831
    %v973 = vtanh.pop %v971
    %v974 = vtanh.pop %v972
    %v976 = vsel %vm304, %v915, 0
    %v979 = vsel %vm304, %v916, 0
    %981 = vmatpush.msra.mxu0 0.0
    %982 = vmatpush.msra.mxu0 0.0
    %983 = vmatpush.msra.mxu0 0.0
    %984 = vmatpush.msra.mxu0 0.0
    %985 = vmatpush.msra.mxu0 0.0
    %986 = vmatpush.msra.mxu0 0.0
    %987 = vmatpush.msra.mxu0 0.0
    %988 = vmatpush.msra.mxu0 0.0
    %989 = vmatpush.msra.mxu0 0.0
    %990 = vmatpush.msra.mxu0 0.0
    %991 = vmatpush.msra.mxu0 0.0
    %992 = vmatpush.msra.mxu0 0.0
    %993 = vmatpush.msra.mxu0 %v849
    %994 = vmatpush.msra.mxu0 %v848
    %995 = vmatpush.msra.mxu0 %v847
    %996 = vmatpush.msra.mxu0 %v846
    %997 = vmatmul.f32.gmra.mxu0 %v976
    %v998 = vpop.f32.mrf.mxu0
    %v999 = vadd.f32 0.0, %v998
    %1000 = vmatmul.f32.gmra.mxu0 %v979
    %v1001 = vpop.f32.mrf.mxu0
    %v1002 = vadd.f32 0.0, %v1001
    %1003 = vdwg.mxu0
    %v1005 = vsel %vm155, %v851, 0
    %v1008 = vsel %vm155, %v852, 0
    %1010 = vmatpush.msra.mxu0 0.0
    %1011 = vmatpush.msra.mxu0 0.0
    %1012 = vmatpush.msra.mxu0 0.0
    %1013 = vmatpush.msra.mxu0 0.0
    %1014 = vmatpush.msra.mxu0 0.0
    %1015 = vmatpush.msra.mxu0 0.0
    %1016 = vmatpush.msra.mxu0 0.0
    %1017 = vmatpush.msra.mxu0 0.0
    %1018 = vmatpush.msra.mxu0 0.0
    %1019 = vmatpush.msra.mxu0 0.0
    %1020 = vmatpush.msra.mxu0 0.0
    %1021 = vmatpush.msra.mxu0 0.0
    %1022 = vmatpush.msra.mxu0 0.0
    %1023 = vmatpush.msra.mxu0 0.0
    %1024 = vmatpush.msra.mxu0 %v1002
    %1025 = vmatpush.msra.mxu0 %v999
    %1026 = vmatmul.f32.gmra.mxu0 %v1005
    %v1027 = vpop.f32.mrf.mxu0
    %v1028 = vadd.f32 0.0, %v1027
    %1029 = vmatmul.f32.gmra.mxu0 %v1008
    %v1030 = vpop.f32.mrf.mxu0
    %v1031 = vadd.f32 0.0, %v1030
    %1032 = vdwg.mxu0
    %v1033 = vmul.f32 %v1028, %v841
    %v1034 = vmul.f32 %v1031, %v842
    %v1035 = vadd.f32 %v1033, %v843
    %v1036 = vadd.f32 %v1034, %v844
    %v1037 = vtanh.pop %v1035
    %v1038 = vtanh.pop %v1036
    %v1039 = vadd.f32 %v1037, %v765
    %v1040 = vadd.f32 %v1038, %v766
    %v1042 = vsel %vm304, %v973, 0
    %v1045 = vsel %vm304, %v974, 0
    %1047 = vmatpush.msra.mxu0 0.0
    %1048 = vmatpush.msra.mxu0 0.0
    %1049 = vmatpush.msra.mxu0 0.0
    %1050 = vmatpush.msra.mxu0 0.0
    %1051 = vmatpush.msra.mxu0 0.0
    %1052 = vmatpush.msra.mxu0 0.0
    %1053 = vmatpush.msra.mxu0 0.0
    %1054 = vmatpush.msra.mxu0 0.0
    %1055 = vmatpush.msra.mxu0 0.0
    %1056 = vmatpush.msra.mxu0 0.0
    %1057 = vmatpush.msra.mxu0 0.0
    %1058 = vmatpush.msra.mxu0 0.0
    %1059 = vmatpush.msra.mxu0 %v849
    %1060 = vmatpush.msra.mxu0 %v848
    %1061 = vmatpush.msra.mxu0 %v847
    %1062 = vmatpush.msra.mxu0 %v846
    %1063 = vmatmul.f32.gmra.mxu0 %v1042
    %v1064 = vpop.f32.mrf.mxu0
    %v1065 = vadd.f32 0.0, %v1064
    %1066 = vmatmul.f32.gmra.mxu0 %v1045
    %v1067 = vpop.f32.mrf.mxu0
    %v1068 = vadd.f32 0.0, %v1067
    %1069 = vdwg.mxu0
    %1070 = vmatpush.msra.mxu0 0.0
    %1071 = vmatpush.msra.mxu0 0.0
    %1072 = vmatpush.msra.mxu0 0.0
    %1073 = vmatpush.msra.mxu0 0.0
    %1074 = vmatpush.msra.mxu0 0.0
    %1075 = vmatpush.msra.mxu0 0.0
    %1076 = vmatpush.msra.mxu0 0.0
    %1077 = vmatpush.msra.mxu0 0.0
    %1078 = vmatpush.msra.mxu0 0.0
    %1079 = vmatpush.msra.mxu0 0.0
    %1080 = vmatpush.msra.mxu0 0.0
    %1081 = vmatpush.msra.mxu0 0.0
    %1082 = vmatpush.msra.mxu0 0.0
    %1083 = vmatpush.msra.mxu0 0.0
    %1084 = vmatpush.msra.mxu0 %v1068
    %1085 = vmatpush.msra.mxu0 %v1065
    %1086 = vmatmul.f32.gmra.mxu0 %v1005
    %v1087 = vpop.f32.mrf.mxu0
    %v1088 = vadd.f32 0.0, %v1087
    %1089 = vmatmul.f32.gmra.mxu0 %v1008
    %v1090 = vpop.f32.mrf.mxu0
    %v1091 = vadd.f32 0.0, %v1090
    %1092 = vdwg.mxu0
    %v1093 = vmul.f32 %v1088, %v841
    %v1094 = vmul.f32 %v1091, %v842
    %v1095 = vadd.f32 %v1093, %v843
    %v1096 = vadd.f32 %v1094, %v844
    %v1097 = vtanh.pop %v1095
    %v1098 = vtanh.pop %v1096
    %v1099 = vadd.f32 %v1097, %v825
    %v1100 = vadd.f32 %v1098, %v826
    %s1101 = scalar_lea.vmem [#allocation7], 192
    %v1102 = vld [vmem:[%s1101] sm:$0xff]
    %v1103 = vld [vmem:[%s1101 + $0x8] sm:$0xff]
    %v1104 = vld [vmem:[%s1101 + $0x10] sm:$0xff]
    %v1105 = vld [vmem:[%s1101 + $0x18] sm:$0xff]
    %s1106 = scalar_lea.vmem [#allocation6], 192
    %v1107 = vld [vmem:[%s1106] sm:$0xff]
    %v1108 = vld [vmem:[%s1106 + $0x8] sm:$0xff]
    %v1109 = vld [vmem:[%s1106 + $0x10] sm:$0xff]
    %v1110 = vld [vmem:[%s1106 + $0x18] sm:$0xff]
    %s1111 = scalar_lea.vmem %s8, 96
    %v1112 = vld [vmem:[%s1111] sm:$0xff]
    %v1113 = vld [vmem:[%s1111 + $0x8] sm:$0xff]
    %s1114 = scalar_lea.vmem [#allocation7], 224
    %v1115 = vld [vmem:[%s1114] sm:$0xff]
    %v1116 = vld [vmem:[%s1114 + $0x8] sm:$0xff]
    %v1117 = vld [vmem:[%s1114 + $0x10] sm:$0xff]
    %v1118 = vld [vmem:[%s1114 + $0x18] sm:$0xff]
    %s1119 = scalar_lea.vmem [#allocation6], 224
    %v1120 = vld [vmem:[%s1119] sm:$0xff]
    %v1121 = vld [vmem:[%s1119 + $0x8] sm:$0xff]
    %v1122 = vld [vmem:[%s1119 + $0x10] sm:$0xff]
    %v1123 = vld [vmem:[%s1119 + $0x18] sm:$0xff]
    %s1124 = scalar_lea.vmem %s8, 112
    %v1125 = vld [vmem:[%s1124] sm:$0xff]
    %v1126 = vld [vmem:[%s1124 + $0x8] sm:$0xff]
    %v1128 = vsel %vm304, %v1039, 0
    %v1131 = vsel %vm304, %v1040, 0
    %1133 = vmatpush.msra.mxu0 0.0
    %1134 = vmatpush.msra.mxu0 0.0
    %1135 = vmatpush.msra.mxu0 0.0
    %1136 = vmatpush.msra.mxu0 0.0
    %1137 = vmatpush.msra.mxu0 0.0
    %1138 = vmatpush.msra.mxu0 0.0
    %1139 = vmatpush.msra.mxu0 0.0
    %1140 = vmatpush.msra.mxu0 0.0
    %1141 = vmatpush.msra.mxu0 0.0
    %1142 = vmatpush.msra.mxu0 0.0
    %1143 = vmatpush.msra.mxu0 0.0
    %1144 = vmatpush.msra.mxu0 0.0
    %1145 = vmatpush.msra.mxu0 %v1110
    %1146 = vmatpush.msra.mxu0 %v1109
    %1147 = vmatpush.msra.mxu0 %v1108
    %1148 = vmatpush.msra.mxu0 %v1107
    %1149 = vmatmul.f32.gmra.mxu0 %v1128
    %v1150 = vpop.f32.mrf.mxu0
    %v1151 = vadd.f32 0.0, %v1150
    %1152 = vmatmul.f32.gmra.mxu0 %v1131
    %v1153 = vpop.f32.mrf.mxu0
    %v1154 = vadd.f32 0.0, %v1153
    %1155 = vdwg.mxu0
    %v1157 = vsel %vm155, %v1112, 0
    %v1160 = vsel %vm155, %v1113, 0
    %1162 = vmatpush.msra.mxu0 0.0
    %1163 = vmatpush.msra.mxu0 0.0
    %1164 = vmatpush.msra.mxu0 0.0
    %1165 = vmatpush.msra.mxu0 0.0
    %1166 = vmatpush.msra.mxu0 0.0
    %1167 = vmatpush.msra.mxu0 0.0
    %1168 = vmatpush.msra.mxu0 0.0
    %1169 = vmatpush.msra.mxu0 0.0
    %1170 = vmatpush.msra.mxu0 0.0
    %1171 = vmatpush.msra.mxu0 0.0
    %1172 = vmatpush.msra.mxu0 0.0
    %1173 = vmatpush.msra.mxu0 0.0
    %1174 = vmatpush.msra.mxu0 0.0
    %1175 = vmatpush.msra.mxu0 0.0
    %1176 = vmatpush.msra.mxu0 %v1154
    %1177 = vmatpush.msra.mxu0 %v1151
    %1178 = vmatmul.f32.gmra.mxu0 %v1157
    %v1179 = vpop.f32.mrf.mxu0
    %v1180 = vadd.f32 0.0, %v1179
    %1181 = vmatmul.f32.gmra.mxu0 %v1160
    %v1182 = vpop.f32.mrf.mxu0
    %v1183 = vadd.f32 0.0, %v1182
    %1184 = vdwg.mxu0
    %v1185 = vmul.f32 %v1180, %v1102
    %v1186 = vmul.f32 %v1183, %v1103
    %v1187 = vadd.f32 %v1185, %v1104
    %v1188 = vadd.f32 %v1186, %v1105
    %v1189 = vtanh.pop %v1187
    %v1190 = vtanh.pop %v1188
    %v1192 = vsel %vm304, %v1099, 0
    %v1195 = vsel %vm304, %v1100, 0
    %1197 = vmatpush.msra.mxu0 0.0
    %1198 = vmatpush.msra.mxu0 0.0
    %1199 = vmatpush.msra.mxu0 0.0
    %1200 = vmatpush.msra.mxu0 0.0
    %1201 = vmatpush.msra.mxu0 0.0
    %1202 = vmatpush.msra.mxu0 0.0
    %1203 = vmatpush.msra.mxu0 0.0
    %1204 = vmatpush.msra.mxu0 0.0
    %1205 = vmatpush.msra.mxu0 0.0
    %1206 = vmatpush.msra.mxu0 0.0
    %1207 = vmatpush.msra.mxu0 0.0
    %1208 = vmatpush.msra.mxu0 0.0
    %1209 = vmatpush.msra.mxu0 %v1110
    %1210 = vmatpush.msra.mxu0 %v1109
    %1211 = vmatpush.msra.mxu0 %v1108
    %1212 = vmatpush.msra.mxu0 %v1107
    %1213 = vmatmul.f32.gmra.mxu0 %v1192
    %v1214 = vpop.f32.mrf.mxu0
    %v1215 = vadd.f32 0.0, %v1214
    %1216 = vmatmul.f32.gmra.mxu0 %v1195
    %v1217 = vpop.f32.mrf.mxu0
    %v1218 = vadd.f32 0.0, %v1217
    %1219 = vdwg.mxu0
    %1220 = vmatpush.msra.mxu0 0.0
    %1221 = vmatpush.msra.mxu0 0.0
    %1222 = vmatpush.msra.mxu0 0.0
    %1223 = vmatpush.msra.mxu0 0.0
    %1224 = vmatpush.msra.mxu0 0.0
    %1225 = vmatpush.msra.mxu0 0.0
    %1226 = vmatpush.msra.mxu0 0.0
    %1227 = vmatpush.msra.mxu0 0.0
    %1228 = vmatpush.msra.mxu0 0.0
    %1229 = vmatpush.msra.mxu0 0.0
    %1230 = vmatpush.msra.mxu0 0.0
    %1231 = vmatpush.msra.mxu0 0.0
    %1232 = vmatpush.msra.mxu0 0.0
    %1233 = vmatpush.msra.mxu0 0.0
    %1234 = vmatpush.msra.mxu0 %v1218
    %1235 = vmatpush.msra.mxu0 %v1215
    %1236 = vmatmul.f32.gmra.mxu0 %v1157
    %v1237 = vpop.f32.mrf.mxu0
    %v1238 = vadd.f32 0.0, %v1237
    %1239 = vmatmul.f32.gmra.mxu0 %v1160
    %v1240 = vpop.f32.mrf.mxu0
    %v1241 = vadd.f32 0.0, %v1240
    %1242 = vdwg.mxu0
    %v1243 = vmul.f32 %v1238, %v1102
    %v1244 = vmul.f32 %v1241, %v1103
    %v1245 = vadd.f32 %v1243, %v1104
    %v1246 = vadd.f32 %v1244, %v1105
    %v1247 = vtanh.pop %v1245
    %v1248 = vtanh.pop %v1246
    %v1250 = vsel %vm304, %v1189, 0
    %v1253 = vsel %vm304, %v1190, 0
    %1255 = vmatpush.msra.mxu0 0.0
    %1256 = vmatpush.msra.mxu0 0.0
    %1257 = vmatpush.msra.mxu0 0.0
    %1258 = vmatpush.msra.mxu0 0.0
    %1259 = vmatpush.msra.mxu0 0.0
    %1260 = vmatpush.msra.mxu0 0.0
    %1261 = vmatpush.msra.mxu0 0.0
    %1262 = vmatpush.msra.mxu0 0.0
    %1263 = vmatpush.msra.mxu0 0.0
    %1264 = vmatpush.msra.mxu0 0.0
    %1265 = vmatpush.msra.mxu0 0.0
    %1266 = vmatpush.msra.mxu0 0.0
    %1267 = vmatpush.msra.mxu0 %v1123
    %1268 = vmatpush.msra.mxu0 %v1122
    %1269 = vmatpush.msra.mxu0 %v1121
    %1270 = vmatpush.msra.mxu0 %v1120
    %1271 = vmatmul.f32.gmra.mxu0 %v1250
    %v1272 = vpop.f32.mrf.mxu0
    %v1273 = vadd.f32 0.0, %v1272
    %1274 = vmatmul.f32.gmra.mxu0 %v1253
    %v1275 = vpop.f32.mrf.mxu0
    %v1276 = vadd.f32 0.0, %v1275
    %1277 = vdwg.mxu0
    %v1279 = vsel %vm155, %v1125, 0
    %v1282 = vsel %vm155, %v1126, 0
    %1284 = vmatpush.msra.mxu0 0.0
    %1285 = vmatpush.msra.mxu0 0.0
    %1286 = vmatpush.msra.mxu0 0.0
    %1287 = vmatpush.msra.mxu0 0.0
    %1288 = vmatpush.msra.mxu0 0.0
    %1289 = vmatpush.msra.mxu0 0.0
    %1290 = vmatpush.msra.mxu0 0.0
    %1291 = vmatpush.msra.mxu0 0.0
    %1292 = vmatpush.msra.mxu0 0.0
    %1293 = vmatpush.msra.mxu0 0.0
    %1294 = vmatpush.msra.mxu0 0.0
    %1295 = vmatpush.msra.mxu0 0.0
    %1296 = vmatpush.msra.mxu0 0.0
    %1297 = vmatpush.msra.mxu0 0.0
    %1298 = vmatpush.msra.mxu0 %v1276
    %1299 = vmatpush.msra.mxu0 %v1273
    %1300 = vmatmul.f32.gmra.mxu0 %v1279
    %v1301 = vpop.f32.mrf.mxu0
    %v1302 = vadd.f32 0.0, %v1301
    %1303 = vmatmul.f32.gmra.mxu0 %v1282
    %v1304 = vpop.f32.mrf.mxu0
    %v1305 = vadd.f32 0.0, %v1304
    %1306 = vdwg.mxu0
    %v1307 = vmul.f32 %v1302, %v1115
    %v1308 = vmul.f32 %v1305, %v1116
    %v1309 = vadd.f32 %v1307, %v1117
    %v1310 = vadd.f32 %v1308, %v1118
    %v1311 = vtanh.pop %v1309
    %v1312 = vtanh.pop %v1310
    %v1313 = vadd.f32 %v1311, %v1039
    %v1314 = vadd.f32 %v1312, %v1040
    %v1316 = vsel %vm304, %v1247, 0
    %v1319 = vsel %vm304, %v1248, 0
    %1321 = vmatpush.msra.mxu0 0.0
    %1322 = vmatpush.msra.mxu0 0.0
    %1323 = vmatpush.msra.mxu0 0.0
    %1324 = vmatpush.msra.mxu0 0.0
    %1325 = vmatpush.msra.mxu0 0.0
    %1326 = vmatpush.msra.mxu0 0.0
    %1327 = vmatpush.msra.mxu0 0.0
    %1328 = vmatpush.msra.mxu0 0.0
    %1329 = vmatpush.msra.mxu0 0.0
    %1330 = vmatpush.msra.mxu0 0.0
    %1331 = vmatpush.msra.mxu0 0.0
    %1332 = vmatpush.msra.mxu0 0.0
    %1333 = vmatpush.msra.mxu0 %v1123
    %1334 = vmatpush.msra.mxu0 %v1122
    %1335 = vmatpush.msra.mxu0 %v1121
    %1336 = vmatpush.msra.mxu0 %v1120
    %1337 = vmatmul.f32.gmra.mxu0 %v1316
    %v1338 = vpop.f32.mrf.mxu0
    %v1339 = vadd.f32 0.0, %v1338
    %1340 = vmatmul.f32.gmra.mxu0 %v1319
    %v1341 = vpop.f32.mrf.mxu0
    %v1342 = vadd.f32 0.0, %v1341
    %1343 = vdwg.mxu0
    %1344 = vmatpush.msra.mxu0 0.0
    %1345 = vmatpush.msra.mxu0 0.0
    %1346 = vmatpush.msra.mxu0 0.0
    %1347 = vmatpush.msra.mxu0 0.0
    %1348 = vmatpush.msra.mxu0 0.0
    %1349 = vmatpush.msra.mxu0 0.0
    %1350 = vmatpush.msra.mxu0 0.0
    %1351 = vmatpush.msra.mxu0 0.0
    %1352 = vmatpush.msra.mxu0 0.0
    %1353 = vmatpush.msra.mxu0 0.0
    %1354 = vmatpush.msra.mxu0 0.0
    %1355 = vmatpush.msra.mxu0 0.0
    %1356 = vmatpush.msra.mxu0 0.0
    %1357 = vmatpush.msra.mxu0 0.0
    %1358 = vmatpush.msra.mxu0 %v1342
    %1359 = vmatpush.msra.mxu0 %v1339
    %1360 = vmatmul.f32.gmra.mxu0 %v1279
    %v1361 = vpop.f32.mrf.mxu0
    %v1362 = vadd.f32 0.0, %v1361
    %1363 = vmatmul.f32.gmra.mxu0 %v1282
    %v1364 = vpop.f32.mrf.mxu0
    %v1365 = vadd.f32 0.0, %v1364
    %1366 = vdwg.mxu0
    %v1367 = vmul.f32 %v1362, %v1115
    %v1368 = vmul.f32 %v1365, %v1116
    %v1369 = vadd.f32 %v1367, %v1117
    %v1370 = vadd.f32 %v1368, %v1118
    %v1371 = vtanh.pop %v1369
    %v1372 = vtanh.pop %v1370
    %v1373 = vadd.f32 %v1371, %v1099
    %v1374 = vadd.f32 %v1372, %v1100
    %v1375 = vld [vmem:[%s11] sm:$0xff]
    %v1376 = vld [vmem:[%s11 + $0x8] sm:$0xff]
    %v1377 = vld [vmem:[%s11 + $0x10] sm:$0xff]
    %v1378 = vld [vmem:[%s11 + $0x18] sm:$0xff]
    %v1379 = vld [vmem:[%s11 + $0x20] sm:$0xff]
    %v1380 = vld [vmem:[%s11 + $0x28] sm:$0xff]
    %v1381 = vld [vmem:[%s11 + $0x30] sm:$0xff]
    %v1382 = vld [vmem:[%s11 + $0x38] sm:$0xff]
    %v1383 = vld [vmem:[%s12] sm:$0xff]
    %v1384 = vld [vmem:[%s12 + $0x8] sm:$0xff]
    %v1385 = vld [vmem:[%s12 + $0x10] sm:$0xff]
    %v1386 = vld [vmem:[%s12 + $0x18] sm:$0xff]
    %v1387 = vld [vmem:[%s13] sm:$0xff]
    %v1388 = vld [vmem:[%s13 + $0x8] sm:$0xff]
    %v1389 = vld [vmem:[%s13 + $0x10] sm:$0xff]
    %v1390 = vld [vmem:[%s13 + $0x18] sm:$0xff]
    %v1391 = vld [vmem:[%s13 + $0x20] sm:$0xff]
    %v1392 = vld [vmem:[%s13 + $0x28] sm:$0xff]
    %v1393 = vld [vmem:[%s13 + $0x30] sm:$0xff]
    %v1394 = vld [vmem:[%s13 + $0x38] sm:$0xff]
    %v1395 = vld [vmem:[%s13 + $0x40] sm:$0xff]
    %v1396 = vld [vmem:[%s13 + $0x48] sm:$0xff]
    %v1397 = vld [vmem:[%s13 + $0x50] sm:$0xff]
    %v1398 = vld [vmem:[%s13 + $0x58] sm:$0xff]
    %v1399 = vld [vmem:[%s13 + $0x60] sm:$0xff]
    %v1400 = vld [vmem:[%s13 + $0x68] sm:$0xff]
    %v1401 = vld [vmem:[%s13 + $0x70] sm:$0xff]
    %v1402 = vld [vmem:[%s13 + $0x78] sm:$0xff]
    %v1403 = vld [vmem:[%s13 + $0x80] sm:$0xff]
    %v1404 = vld [vmem:[%s13 + $0x88] sm:$0xff]
    %v1405 = vld [vmem:[%s13 + $0x90] sm:$0xff]
    %v1406 = vld [vmem:[%s13 + $0x98] sm:$0xff]
    %v1407 = vld [vmem:[%s13 + $0xa0] sm:$0xff]
    %v1408 = vld [vmem:[%s13 + $0xa8] sm:$0xff]
    %v1409 = vld [vmem:[%s13 + $0xb0] sm:$0xff]
    %v1410 = vld [vmem:[%s13 + $0xb8] sm:$0xff]
    %v1411 = vld [vmem:[%s13 + $0xc0] sm:$0xff]
    %v1412 = vld [vmem:[%s13 + $0xc8] sm:$0xff]
    %v1413 = vld [vmem:[%s13 + $0xd0] sm:$0xff]
    %v1414 = vld [vmem:[%s13 + $0xd8] sm:$0xff]
    %v1415 = vld [vmem:[%s13 + $0xe0] sm:$0xff]
    %v1416 = vld [vmem:[%s13 + $0xe8] sm:$0xff]
    %v1417 = vld [vmem:[%s13 + $0xf0] sm:$0xff]
    %v1418 = vld [vmem:[%s13 + $0xf8] sm:$0xff]
    %v1419 = vld [vmem:[#allocation9] sm:$0x1]
    %v1421 = vsel %vm304, %v1313, 0
    %v1424 = vsel %vm304, %v1314, 0
    %1426 = vmatpush.msra.mxu0 0.0
    %1427 = vmatpush.msra.mxu0 0.0
    %1428 = vmatpush.msra.mxu0 0.0
    %1429 = vmatpush.msra.mxu0 0.0
    %1430 = vmatpush.msra.mxu0 0.0
    %1431 = vmatpush.msra.mxu0 0.0
    %1432 = vmatpush.msra.mxu0 0.0
    %1433 = vmatpush.msra.mxu0 0.0
    %1434 = vmatpush.msra.mxu0 0.0
    %1435 = vmatpush.msra.mxu0 0.0
    %1436 = vmatpush.msra.mxu0 0.0
    %1437 = vmatpush.msra.mxu0 0.0
    %1438 = vmatpush.msra.mxu0 %v1381
    %1439 = vmatpush.msra.mxu0 %v1379
    %1440 = vmatpush.msra.mxu0 %v1377
    %1441 = vmatpush.msra.mxu0 %v1375
    %1442 = vmatmul.f32.gmra.mxu0 %v1421
    %v1443 = vpop.f32.mrf.mxu0
    %v1444 = vadd.f32 0.0, %v1443
    %1445 = vmatmul.f32.gmra.mxu0 %v1424
    %v1446 = vpop.f32.mrf.mxu0
    %v1447 = vadd.f32 0.0, %v1446
    %1448 = vdwg.mxu0
    %1449 = vmatpush.msra.mxu0 0.0
    %1450 = vmatpush.msra.mxu0 0.0
    %1451 = vmatpush.msra.mxu0 0.0
    %1452 = vmatpush.msra.mxu0 0.0
    %1453 = vmatpush.msra.mxu0 0.0
    %1454 = vmatpush.msra.mxu0 0.0
    %1455 = vmatpush.msra.mxu0 0.0
    %1456 = vmatpush.msra.mxu0 0.0
    %1457 = vmatpush.msra.mxu0 0.0
    %1458 = vmatpush.msra.mxu0 0.0
    %1459 = vmatpush.msra.mxu0 0.0
    %1460 = vmatpush.msra.mxu0 0.0
    %1461 = vmatpush.msra.mxu0 %v1382
    %1462 = vmatpush.msra.mxu0 %v1380
    %1463 = vmatpush.msra.mxu0 %v1378
    %1464 = vmatpush.msra.mxu0 %v1376
    %1465 = vmatmul.f32.gmra.mxu0 %v1421
    %v1466 = vpop.f32.mrf.mxu0
    %v1467 = vadd.f32 0.0, %v1466
    %1468 = vmatmul.f32.gmra.mxu0 %v1424
    %v1469 = vpop.f32.mrf.mxu0
    %v1470 = vadd.f32 0.0, %v1469
    %1471 = vdwg.mxu0
    %v1472 = vmul.f32 %v1444, %v1383
    %v1473 = vmul.f32 %v1467, %v1384
    %v1474 = vmul.f32 %v1447, %v1385
    %v1475 = vmul.f32 %v1470, %v1386
    %v1476 = vadd.f32 %v1472, %v1474
    %v1477 = vrot.slane %v1476, 4
    %v1478 = vadd.f32 %v1476, %v1477
    %v1479 = vrot.slane %v1478, 2
    %v1480 = vadd.f32 %v1478, %v1479
    %v1481 = vrot.slane %v1480, 1
    %v1482 = vadd.f32 %v1480, %v1481
    %v1483 = vadd.f32 %v1473, %v1475
    %v1484 = vrot.slane %v1483, 4
    %v1485 = vadd.f32 %v1483, %v1484
    %v1486 = vrot.slane %v1485, 2
    %v1487 = vadd.f32 %v1485, %v1486
    %v1488 = vrot.slane %v1487, 1
    %v1489 = vadd.f32 %v1487, %v1488
    %1490 = vmatpush.msra.mxu0 %v1402
    %1491 = vmatpush.msra.mxu0 %v1401
    %1492 = vmatpush.msra.mxu0 %v1400
    %1493 = vmatpush.msra.mxu0 %v1399
    %1494 = vmatpush.msra.mxu0 %v1398
    %1495 = vmatpush.msra.mxu0 %v1397
    %1496 = vmatpush.msra.mxu0 %v1396
    %1497 = vmatpush.msra.mxu0 %v1395
    %1498 = vmatpush.msra.mxu0 %v1394
    %1499 = vmatpush.msra.mxu0 %v1393
    %1500 = vmatpush.msra.mxu0 %v1392
    %1501 = vmatpush.msra.mxu0 %v1391
    %1502 = vmatpush.msra.mxu0 %v1390
    %1503 = vmatpush.msra.mxu0 %v1389
    %1504 = vmatpush.msra.mxu0 %v1388
    %1505 = vmatpush.msra.mxu0 %v1387
    %1506 = vmatmul.f32.gmra.mxu0 %v1482
    %v1507 = vpop.f32.mrf.mxu0
    %v1508 = vadd.f32 %v1419, %v1507
    %1509 = vdwg.mxu0
    %1510 = vmatpush.msra.mxu0 %v1418
    %1511 = vmatpush.msra.mxu0 %v1417
    %1512 = vmatpush.msra.mxu0 %v1416
    %1513 = vmatpush.msra.mxu0 %v1415
    %1514 = vmatpush.msra.mxu0 %v1414
    %1515 = vmatpush.msra.mxu0 %v1413
    %1516 = vmatpush.msra.mxu0 %v1412
    %1517 = vmatpush.msra.mxu0 %v1411
    %1518 = vmatpush.msra.mxu0 %v1410
    %1519 = vmatpush.msra.mxu0 %v1409
    %1520 = vmatpush.msra.mxu0 %v1408
    %1521 = vmatpush.msra.mxu0 %v1407
    %1522 = vmatpush.msra.mxu0 %v1406
    %1523 = vmatpush.msra.mxu0 %v1405
    %1524 = vmatpush.msra.mxu0 %v1404
    %1525 = vmatpush.msra.mxu0 %v1403
    %1526 = vmatmul.f32.gmra.mxu0 %v1489
    %v1527 = vpop.f32.mrf.mxu0
    %v1528 = vadd.f32 %v1508, %v1527
    %1529 = vdwg.mxu0
    %v1531 = vsel %vm304, %v1373, 0
    %v1534 = vsel %vm304, %v1374, 0
    %1536 = vmatpush.msra.mxu0 0.0
    %1537 = vmatpush.msra.mxu0 0.0
    %1538 = vmatpush.msra.mxu0 0.0
    %1539 = vmatpush.msra.mxu0 0.0
    %1540 = vmatpush.msra.mxu0 0.0
    %1541 = vmatpush.msra.mxu0 0.0
    %1542 = vmatpush.msra.mxu0 0.0
    %1543 = vmatpush.msra.mxu0 0.0
    %1544 = vmatpush.msra.mxu0 0.0
    %1545 = vmatpush.msra.mxu0 0.0
    %1546 = vmatpush.msra.mxu0 0.0
    %1547 = vmatpush.msra.mxu0 0.0
    %1548 = vmatpush.msra.mxu0 %v1381
    %1549 = vmatpush.msra.mxu0 %v1379
    %1550 = vmatpush.msra.mxu0 %v1377
    %1551 = vmatpush.msra.mxu0 %v1375
    %1552 = vmatmul.f32.gmra.mxu0 %v1531
    %v1553 = vpop.f32.mrf.mxu0
    %v1554 = vadd.f32 0.0, %v1553
    %1555 = vmatmul.f32.gmra.mxu0 %v1534
    %v1556 = vpop.f32.mrf.mxu0
    %v1557 = vadd.f32 0.0, %v1556
    %1558 = vdwg.mxu0
    %1559 = vmatpush.msra.mxu0 0.0
    %1560 = vmatpush.msra.mxu0 0.0
    %1561 = vmatpush.msra.mxu0 0.0
    %1562 = vmatpush.msra.mxu0 0.0
    %1563 = vmatpush.msra.mxu0 0.0
    %1564 = vmatpush.msra.mxu0 0.0
    %1565 = vmatpush.msra.mxu0 0.0
    %1566 = vmatpush.msra.mxu0 0.0
    %1567 = vmatpush.msra.mxu0 0.0
    %1568 = vmatpush.msra.mxu0 0.0
    %1569 = vmatpush.msra.mxu0 0.0
    %1570 = vmatpush.msra.mxu0 0.0
    %1571 = vmatpush.msra.mxu0 %v1382
    %1572 = vmatpush.msra.mxu0 %v1380
    %1573 = vmatpush.msra.mxu0 %v1378
    %1574 = vmatpush.msra.mxu0 %v1376
    %1575 = vmatmul.f32.gmra.mxu0 %v1531
    %v1576 = vpop.f32.mrf.mxu0
    %v1577 = vadd.f32 0.0, %v1576
    %1578 = vmatmul.f32.gmra.mxu0 %v1534
    %v1579 = vpop.f32.mrf.mxu0
    %v1580 = vadd.f32 0.0, %v1579
    %1581 = vdwg.mxu0
    %v1582 = vmul.f32 %v1554, %v1383
    %v1583 = vmul.f32 %v1577, %v1384
    %v1584 = vmul.f32 %v1557, %v1385
    %v1585 = vmul.f32 %v1580, %v1386
    %v1586 = vadd.f32 %v1582, %v1584
    %v1587 = vrot.slane %v1586, 4
    %v1588 = vadd.f32 %v1586, %v1587
    %v1589 = vrot.slane %v1588, 2
    %v1590 = vadd.f32 %v1588, %v1589
    %v1591 = vrot.slane %v1590, 1
    %v1592 = vadd.f32 %v1590, %v1591
    %v1593 = vadd.f32 %v1583, %v1585
    %v1594 = vrot.slane %v1593, 4
    %v1595 = vadd.f32 %v1593, %v1594
    %v1596 = vrot.slane %v1595, 2
    %v1597 = vadd.f32 %v1595, %v1596
    %v1598 = vrot.slane %v1597, 1
    %v1599 = vadd.f32 %v1597, %v1598
    %1600 = vmatpush.msra.mxu0 %v1402
    %1601 = vmatpush.msra.mxu0 %v1401
    %1602 = vmatpush.msra.mxu0 %v1400
    %1603 = vmatpush.msra.mxu0 %v1399
    %1604 = vmatpush.msra.mxu0 %v1398
    %1605 = vmatpush.msra.mxu0 %v1397
    %1606 = vmatpush.msra.mxu0 %v1396
    %1607 = vmatpush.msra.mxu0 %v1395
    %1608 = vmatpush.msra.mxu0 %v1394
    %1609 = vmatpush.msra.mxu0 %v1393
    %1610 = vmatpush.msra.mxu0 %v1392
    %1611 = vmatpush.msra.mxu0 %v1391
    %1612 = vmatpush.msra.mxu0 %v1390
    %1613 = vmatpush.msra.mxu0 %v1389
    %1614 = vmatpush.msra.mxu0 %v1388
    %1615 = vmatpush.msra.mxu0 %v1387
    %1616 = vmatmul.f32.gmra.mxu0 %v1592
    %v1617 = vpop.f32.mrf.mxu0
    %v1618 = vadd.f32 %v1419, %v1617
    %1619 = vdwg.mxu0
    %1620 = vmatpush.msra.mxu0 %v1418
    %1621 = vmatpush.msra.mxu0 %v1417
    %1622 = vmatpush.msra.mxu0 %v1416
    %1623 = vmatpush.msra.mxu0 %v1415
    %1624 = vmatpush.msra.mxu0 %v1414
    %1625 = vmatpush.msra.mxu0 %v1413
    %1626 = vmatpush.msra.mxu0 %v1412
    %1627 = vmatpush.msra.mxu0 %v1411
    %1628 = vmatpush.msra.mxu0 %v1410
    %1629 = vmatpush.msra.mxu0 %v1409
    %1630 = vmatpush.msra.mxu0 %v1408
    %1631 = vmatpush.msra.mxu0 %v1407
    %1632 = vmatpush.msra.mxu0 %v1406
    %1633 = vmatpush.msra.mxu0 %v1405
    %1634 = vmatpush.msra.mxu0 %v1404
    %1635 = vmatpush.msra.mxu0 %v1403
    %1636 = vmatmul.f32.gmra.mxu0 %v1599
    %v1637 = vpop.f32.mrf.mxu0
    %v1638 = vadd.f32 %v1618, %v1637
    %1639 = vdwg.mxu0
    %v1641 = vrot.slane %v1638, 7
    %vm1643 = vcmask 1040384
    %v1644 = vsel %vm1643, %v1528, %v1641
    %vm1645 = vcmask 123904
    %1646 = vst.msk [vmem:[%s17] sm:$0x3] %vm1645, %v1644
    %v1647 = vld [vmem:[#allocation4] sm:$0xff]
    %v1648 = vld [vmem:[#allocation4 + $0x8] sm:$0xff]
    %s1649 = scalar_lea.vmem %s9, 32
    %v1650 = vld [vmem:[%s1649] sm:$0xff]
    %v1651 = vld [vmem:[%s1649 + $0x8] sm:$0xff]
    %v1652 = vld [vmem:[%s1649 + $0x10] sm:$0xff]
    %v1653 = vld [vmem:[%s1649 + $0x18] sm:$0xff]
    %s1654 = scalar_lea.vmem %s7, 16
    %v1655 = vld [vmem:[%s1654] sm:$0xff]
    %v1656 = vld [vmem:[%s1654 + $0x8] sm:$0xff]
    %v1657 = vmul.f32 %v1528, 0.5
    %v1658 = vmul.f32 %v1657, 1.442695
    %v1659 = vpow.pop %v1658
    %v1660 = vld [vmem:[%s2] sm:$0x1]
    %v1662 = vperm.slane %v1660, 0
    %1663 = vrot.lane.b32.xlu0 %v1662, 8
    %v1664 = vpop.permute.xlu0 %1663
    %v1666 = vmul.f32 %v1659, %v1664
    %1668 = vrot.lane.b32.xlu0 %v1528, 8
    %v1669 = vpop.permute.xlu0 %1668
    %v1671 = vadd.f32 %v1666, %v1669
    %v1672 = vld [vmem:[%s1] sm:$0xff]
    %v1673 = vld [vmem:[%s1 + $0x8] sm:$0xff]
    %1675 = vrot.lane.b32.xlu0 %v1671, 120
    %v1676 = vpop.permute.xlu0 %1675
    %vm1677 = vcmask 64512
    %v1678 = vsel %vm1677, %v1676, 0
    %1680 = vmatpush.msra.mxu0 0.0
    %1681 = vmatpush.msra.mxu0 0.0
    %1682 = vmatpush.msra.mxu0 0.0
    %1683 = vmatpush.msra.mxu0 0.0
    %1684 = vmatpush.msra.mxu0 0.0
    %1685 = vmatpush.msra.mxu0 0.0
    %1686 = vmatpush.msra.mxu0 0.0
    %1687 = vmatpush.msra.mxu0 0.0
    %1688 = vmatpush.msra.mxu0 0.0
    %1689 = vmatpush.msra.mxu0 0.0
    %1690 = vmatpush.msra.mxu0 0.0
    %1691 = vmatpush.msra.mxu0 0.0
    %1692 = vmatpush.msra.mxu0 0.0
    %1693 = vmatpush.msra.mxu0 0.0
    %1694 = vmatpush.msra.mxu0 0.0
    %1695 = vmatpush.msra.mxu0 %v1648
    %1696 = vmatmul.f32.gmra.mxu0 %v1678
    %v1697 = vpop.f32.mrf.mxu0
    %v1698 = vadd.f32 0.0, %v1697
    %1699 = vdwg.mxu0
    %v1700 = vperm.slane %v1698, 0
    %v1702 = vsel %vm1677, %v1672, 0
    %v1705 = vsel %vm1677, %v1673, 0
    %1707 = vmatpush.msra.mxu0 0.0
    %1708 = vmatpush.msra.mxu0 0.0
    %1709 = vmatpush.msra.mxu0 0.0
    %1710 = vmatpush.msra.mxu0 0.0
    %1711 = vmatpush.msra.mxu0 0.0
    %1712 = vmatpush.msra.mxu0 0.0
    %1713 = vmatpush.msra.mxu0 0.0
    %1714 = vmatpush.msra.mxu0 0.0
    %1715 = vmatpush.msra.mxu0 0.0
    %1716 = vmatpush.msra.mxu0 0.0
    %1717 = vmatpush.msra.mxu0 0.0
    %1718 = vmatpush.msra.mxu0 0.0
    %1719 = vmatpush.msra.mxu0 0.0
    %1720 = vmatpush.msra.mxu0 0.0
    %1721 = vmatpush.msra.mxu0 0.0
    %1722 = vmatpush.msra.mxu0 %v1647
    %1723 = vmatmul.f32.gmra.mxu0 %v1702
    %v1724 = vpop.f32.mrf.mxu0
    %v1725 = vadd.f32 %v1700, %v1724
    %1726 = vmatmul.f32.gmra.mxu0 %v1705
    %v1727 = vpop.f32.mrf.mxu0
    %v1728 = vadd.f32 %v1700, %v1727
    %1729 = vdwg.mxu0
    %v1731 = vsel %vm155, %v1655, 0
    %v1734 = vsel %vm155, %v1656, 0
    %1736 = vmatpush.msra.mxu0 0.0
    %1737 = vmatpush.msra.mxu0 0.0
    %1738 = vmatpush.msra.mxu0 0.0
    %1739 = vmatpush.msra.mxu0 0.0
    %1740 = vmatpush.msra.mxu0 0.0
    %1741 = vmatpush.msra.mxu0 0.0
    %1742 = vmatpush.msra.mxu0 0.0
    %1743 = vmatpush.msra.mxu0 0.0
    %1744 = vmatpush.msra.mxu0 0.0
    %1745 = vmatpush.msra.mxu0 0.0
    %1746 = vmatpush.msra.mxu0 0.0
    %1747 = vmatpush.msra.mxu0 0.0
    %1748 = vmatpush.msra.mxu0 0.0
    %1749 = vmatpush.msra.mxu0 0.0
    %1750 = vmatpush.msra.mxu0 %v1728
    %1751 = vmatpush.msra.mxu0 %v1725
    %1752 = vmatmul.f32.gmra.mxu0 %v1731
    %v1753 = vpop.f32.mrf.mxu0
    %v1754 = vadd.f32 0.0, %v1753
    %1755 = vmatmul.f32.gmra.mxu0 %v1734
    %v1756 = vpop.f32.mrf.mxu0
    %v1757 = vadd.f32 0.0, %v1756
    %1758 = vdwg.mxu0
    %v1759 = vmul.f32 %v1754, %v1650
    %v1760 = vmul.f32 %v1757, %v1651
    %v1761 = vadd.f32 %v1759, %v1652
    %v1762 = vadd.f32 %v1760, %v1653
    %v1763 = vtanh.pop %v1761
    %v1764 = vtanh.pop %v1762
    %v1765 = vmul.f32 %v1638, 0.5
    %v1766 = vmul.f32 %v1765, 1.442695
    %v1767 = vpow.pop %v1766
    %s1768 = scalar_lea.vmem %s2, 1
    %v1769 = vld [vmem:[%s1768] sm:$0x1]
    %v1771 = vperm.slane %v1769, 0
    %1772 = vrot.lane.b32.xlu0 %v1771, 8
    %v1773 = vpop.permute.xlu0 %1772
    %v1775 = vmul.f32 %v1767, %v1773
    %1776 = vrot.lane.b32.xlu0 %v1638, 8
    %v1777 = vpop.permute.xlu0 %1776
    %v1779 = vadd.f32 %v1775, %v1777
    %s1780 = scalar_lea.vmem %s1, 16
    %v1781 = vld [vmem:[%s1780] sm:$0xff]
    %v1782 = vld [vmem:[%s1780 + $0x8] sm:$0xff]
    %1784 = vrot.lane.b32.xlu0 %v1779, 120
    %v1785 = vpop.permute.xlu0 %1784
    %v1786 = vsel %vm1677, %v1785, 0
    %1788 = vmatpush.msra.mxu0 0.0
    %1789 = vmatpush.msra.mxu0 0.0
    %1790 = vmatpush.msra.mxu0 0.0
    %1791 = vmatpush.msra.mxu0 0.0
    %1792 = vmatpush.msra.mxu0 0.0
    %1793 = vmatpush.msra.mxu0 0.0
    %1794 = vmatpush.msra.mxu0 0.0
    %1795 = vmatpush.msra.mxu0 0.0
    %1796 = vmatpush.msra.mxu0 0.0
    %1797 = vmatpush.msra.mxu0 0.0
    %1798 = vmatpush.msra.mxu0 0.0
    %1799 = vmatpush.msra.mxu0 0.0
    %1800 = vmatpush.msra.mxu0 0.0
    %1801 = vmatpush.msra.mxu0 0.0
    %1802 = vmatpush.msra.mxu0 0.0
    %1803 = vmatpush.msra.mxu0 %v1648
    %1804 = vmatmul.f32.gmra.mxu0 %v1786
    %v1805 = vpop.f32.mrf.mxu0
    %v1806 = vadd.f32 0.0, %v1805
    %1807 = vdwg.mxu0
    %v1808 = vperm.slane %v1806, 0
    %v1810 = vsel %vm1677, %v1781, 0
    %v1813 = vsel %vm1677, %v1782, 0
    %1815 = vmatpush.msra.mxu0 0.0
    %1816 = vmatpush.msra.mxu0 0.0
    %1817 = vmatpush.msra.mxu0 0.0
    %1818 = vmatpush.msra.mxu0 0.0
    %1819 = vmatpush.msra.mxu0 0.0
    %1820 = vmatpush.msra.mxu0 0.0
    %1821 = vmatpush.msra.mxu0 0.0
    %1822 = vmatpush.msra.mxu0 0.0
    %1823 = vmatpush.msra.mxu0 0.0
    %1824 = vmatpush.msra.mxu0 0.0
    %1825 = vmatpush.msra.mxu0 0.0
    %1826 = vmatpush.msra.mxu0 0.0
    %1827 = vmatpush.msra.mxu0 0.0
    %1828 = vmatpush.msra.mxu0 0.0
    %1829 = vmatpush.msra.mxu0 0.0
    %1830 = vmatpush.msra.mxu0 %v1647
    %1831 = vmatmul.f32.gmra.mxu0 %v1810
    %v1832 = vpop.f32.mrf.mxu0
    %v1833 = vadd.f32 %v1808, %v1832
    %1834 = vmatmul.f32.gmra.mxu0 %v1813
    %v1835 = vpop.f32.mrf.mxu0
    %v1836 = vadd.f32 %v1808, %v1835
    %1837 = vdwg.mxu0
    %1838 = vmatpush.msra.mxu0 0.0
    %1839 = vmatpush.msra.mxu0 0.0
    %1840 = vmatpush.msra.mxu0 0.0
    %1841 = vmatpush.msra.mxu0 0.0
    %1842 = vmatpush.msra.mxu0 0.0
    %1843 = vmatpush.msra.mxu0 0.0
    %1844 = vmatpush.msra.mxu0 0.0
    %1845 = vmatpush.msra.mxu0 0.0
    %1846 = vmatpush.msra.mxu0 0.0
    %1847 = vmatpush.msra.mxu0 0.0
    %1848 = vmatpush.msra.mxu0 0.0
    %1849 = vmatpush.msra.mxu0 0.0
    %1850 = vmatpush.msra.mxu0 0.0
    %1851 = vmatpush.msra.mxu0 0.0
    %1852 = vmatpush.msra.mxu0 %v1836
    %1853 = vmatpush.msra.mxu0 %v1833
    %1854 = vmatmul.f32.gmra.mxu0 %v1731
    %v1855 = vpop.f32.mrf.mxu0
    %v1856 = vadd.f32 0.0, %v1855
    %1857 = vmatmul.f32.gmra.mxu0 %v1734
    %v1858 = vpop.f32.mrf.mxu0
    %v1859 = vadd.f32 0.0, %v1858
    %1860 = vdwg.mxu0
    %v1861 = vmul.f32 %v1856, %v1650
    %v1862 = vmul.f32 %v1859, %v1651
    %v1863 = vadd.f32 %v1861, %v1652
    %v1864 = vadd.f32 %v1862, %v1653
    %v1865 = vtanh.pop %v1863
    %v1866 = vtanh.pop %v1864
    %s1867 = scalar_lea.vmem [#allocation7], 256
    %v1868 = vld [vmem:[%s1867] sm:$0xff]
    %v1869 = vld [vmem:[%s1867 + $0x8] sm:$0xff]
    %v1870 = vld [vmem:[%s1867 + $0x10] sm:$0xff]
    %v1871 = vld [vmem:[%s1867 + $0x18] sm:$0xff]
    %s1872 = scalar_lea.vmem [#allocation6], 256
    %v1873 = vld [vmem:[%s1872] sm:$0xff]
    %v1874 = vld [vmem:[%s1872 + $0x8] sm:$0xff]
    %v1875 = vld [vmem:[%s1872 + $0x10] sm:$0xff]
    %v1876 = vld [vmem:[%s1872 + $0x18] sm:$0xff]
    %s1877 = scalar_lea.vmem %s8, 128
    %v1878 = vld [vmem:[%s1877] sm:$0xff]
    %v1879 = vld [vmem:[%s1877 + $0x8] sm:$0xff]
    %s1880 = scalar_lea.vmem [#allocation7], 288
    %v1881 = vld [vmem:[%s1880] sm:$0xff]
    %v1882 = vld [vmem:[%s1880 + $0x8] sm:$0xff]
    %v1883 = vld [vmem:[%s1880 + $0x10] sm:$0xff]
    %v1884 = vld [vmem:[%s1880 + $0x18] sm:$0xff]
    %s1885 = scalar_lea.vmem [#allocation6], 288
    %v1886 = vld [vmem:[%s1885] sm:$0xff]
    %v1887 = vld [vmem:[%s1885 + $0x8] sm:$0xff]
    %v1888 = vld [vmem:[%s1885 + $0x10] sm:$0xff]
    %v1889 = vld [vmem:[%s1885 + $0x18] sm:$0xff]
    %s1890 = scalar_lea.vmem %s8, 144
    %v1891 = vld [vmem:[%s1890] sm:$0xff]
    %v1892 = vld [vmem:[%s1890 + $0x8] sm:$0xff]
    %v1894 = vsel %vm304, %v1763, 0
    %v1897 = vsel %vm304, %v1764, 0
    %1899 = vmatpush.msra.mxu0 0.0
    %1900 = vmatpush.msra.mxu0 0.0
    %1901 = vmatpush.msra.mxu0 0.0
    %1902 = vmatpush.msra.mxu0 0.0
    %1903 = vmatpush.msra.mxu0 0.0
    %1904 = vmatpush.msra.mxu0 0.0
    %1905 = vmatpush.msra.mxu0 0.0
    %1906 = vmatpush.msra.mxu0 0.0
    %1907 = vmatpush.msra.mxu0 0.0
    %1908 = vmatpush.msra.mxu0 0.0
    %1909 = vmatpush.msra.mxu0 0.0
    %1910 = vmatpush.msra.mxu0 0.0
    %1911 = vmatpush.msra.mxu0 %v1876
    %1912 = vmatpush.msra.mxu0 %v1875
    %1913 = vmatpush.msra.mxu0 %v1874
    %1914 = vmatpush.msra.mxu0 %v1873
    %1915 = vmatmul.f32.gmra.mxu0 %v1894
    %v1916 = vpop.f32.mrf.mxu0
    %v1917 = vadd.f32 0.0, %v1916
    %1918 = vmatmul.f32.gmra.mxu0 %v1897
    %v1919 = vpop.f32.mrf.mxu0
    %v1920 = vadd.f32 0.0, %v1919
    %1921 = vdwg.mxu0
    %v1923 = vsel %vm155, %v1878, 0
    %v1926 = vsel %vm155, %v1879, 0
    %1928 = vmatpush.msra.mxu0 0.0
    %1929 = vmatpush.msra.mxu0 0.0
    %1930 = vmatpush.msra.mxu0 0.0
    %1931 = vmatpush.msra.mxu0 0.0
    %1932 = vmatpush.msra.mxu0 0.0
    %1933 = vmatpush.msra.mxu0 0.0
    %1934 = vmatpush.msra.mxu0 0.0
    %1935 = vmatpush.msra.mxu0 0.0
    %1936 = vmatpush.msra.mxu0 0.0
    %1937 = vmatpush.msra.mxu0 0.0
    %1938 = vmatpush.msra.mxu0 0.0
    %1939 = vmatpush.msra.mxu0 0.0
    %1940 = vmatpush.msra.mxu0 0.0
    %1941 = vmatpush.msra.mxu0 0.0
    %1942 = vmatpush.msra.mxu0 %v1920
    %1943 = vmatpush.msra.mxu0 %v1917
    %1944 = vmatmul.f32.gmra.mxu0 %v1923
    %v1945 = vpop.f32.mrf.mxu0
    %v1946 = vadd.f32 0.0, %v1945
    %1947 = vmatmul.f32.gmra.mxu0 %v1926
    %v1948 = vpop.f32.mrf.mxu0
    %v1949 = vadd.f32 0.0, %v1948
    %1950 = vdwg.mxu0
    %v1951 = vmul.f32 %v1946, %v1868
    %v1952 = vmul.f32 %v1949, %v1869
    %v1953 = vadd.f32 %v1951, %v1870
    %v1954 = vadd.f32 %v1952, %v1871
    %v1955 = vtanh.pop %v1953
    %v1956 = vtanh.pop %v1954
    %v1958 = vsel %vm304, %v1865, 0
    %v1961 = vsel %vm304, %v1866, 0
    %1963 = vmatpush.msra.mxu0 0.0
    %1964 = vmatpush.msra.mxu0 0.0
    %1965 = vmatpush.msra.mxu0 0.0
    %1966 = vmatpush.msra.mxu0 0.0
    %1967 = vmatpush.msra.mxu0 0.0
    %1968 = vmatpush.msra.mxu0 0.0
    %1969 = vmatpush.msra.mxu0 0.0
    %1970 = vmatpush.msra.mxu0 0.0
    %1971 = vmatpush.msra.mxu0 0.0
    %1972 = vmatpush.msra.mxu0 0.0
    %1973 = vmatpush.msra.mxu0 0.0
    %1974 = vmatpush.msra.mxu0 0.0
    %1975 = vmatpush.msra.mxu0 %v1876
    %1976 = vmatpush.msra.mxu0 %v1875
    %1977 = vmatpush.msra.mxu0 %v1874
    %1978 = vmatpush.msra.mxu0 %v1873
    %1979 = vmatmul.f32.gmra.mxu0 %v1958
    %v1980 = vpop.f32.mrf.mxu0
    %v1981 = vadd.f32 0.0, %v1980
    %1982 = vmatmul.f32.gmra.mxu0 %v1961
    %v1983 = vpop.f32.mrf.mxu0
    %v1984 = vadd.f32 0.0, %v1983
    %1985 = vdwg.mxu0
    %1986 = vmatpush.msra.mxu0 0.0
    %1987 = vmatpush.msra.mxu0 0.0
    %1988 = vmatpush.msra.mxu0 0.0
    %1989 = vmatpush.msra.mxu0 0.0
    %1990 = vmatpush.msra.mxu0 0.0
    %1991 = vmatpush.msra.mxu0 0.0
    %1992 = vmatpush.msra.mxu0 0.0
    %1993 = vmatpush.msra.mxu0 0.0
    %1994 = vmatpush.msra.mxu0 0.0
    %1995 = vmatpush.msra.mxu0 0.0
    %1996 = vmatpush.msra.mxu0 0.0
    %1997 = vmatpush.msra.mxu0 0.0
    %1998 = vmatpush.msra.mxu0 0.0
    %1999 = vmatpush.msra.mxu0 0.0
    %2000 = vmatpush.msra.mxu0 %v1984
    %2001 = vmatpush.msra.mxu0 %v1981
    %2002 = vmatmul.f32.gmra.mxu0 %v1923
    %v2003 = vpop.f32.mrf.mxu0
    %v2004 = vadd.f32 0.0, %v2003
    %2005 = vmatmul.f32.gmra.mxu0 %v1926
    %v2006 = vpop.f32.mrf.mxu0
    %v2007 = vadd.f32 0.0, %v2006
    %2008 = vdwg.mxu0
    %v2009 = vmul.f32 %v2004, %v1868
    %v2010 = vmul.f32 %v2007, %v1869
    %v2011 = vadd.f32 %v2009, %v1870
    %v2012 = vadd.f32 %v2010, %v1871
    %v2013 = vtanh.pop %v2011
    %v2014 = vtanh.pop %v2012
    %v2016 = vsel %vm304, %v1955, 0
    %v2019 = vsel %vm304, %v1956, 0
    %2021 = vmatpush.msra.mxu0 0.0
    %2022 = vmatpush.msra.mxu0 0.0
    %2023 = vmatpush.msra.mxu0 0.0
    %2024 = vmatpush.msra.mxu0 0.0
    %2025 = vmatpush.msra.mxu0 0.0
    %2026 = vmatpush.msra.mxu0 0.0
    %2027 = vmatpush.msra.mxu0 0.0
    %2028 = vmatpush.msra.mxu0 0.0
    %2029 = vmatpush.msra.mxu0 0.0
    %2030 = vmatpush.msra.mxu0 0.0
    %2031 = vmatpush.msra.mxu0 0.0
    %2032 = vmatpush.msra.mxu0 0.0
    %2033 = vmatpush.msra.mxu0 %v1889
    %2034 = vmatpush.msra.mxu0 %v1888
    %2035 = vmatpush.msra.mxu0 %v1887
    %2036 = vmatpush.msra.mxu0 %v1886
    %2037 = vmatmul.f32.gmra.mxu0 %v2016
    %v2038 = vpop.f32.mrf.mxu0
    %v2039 = vadd.f32 0.0, %v2038
    %2040 = vmatmul.f32.gmra.mxu0 %v2019
    %v2041 = vpop.f32.mrf.mxu0
    %v2042 = vadd.f32 0.0, %v2041
    %2043 = vdwg.mxu0
    %v2045 = vsel %vm155, %v1891, 0
    %v2048 = vsel %vm155, %v1892, 0
    %2050 = vmatpush.msra.mxu0 0.0
    %2051 = vmatpush.msra.mxu0 0.0
    %2052 = vmatpush.msra.mxu0 0.0
    %2053 = vmatpush.msra.mxu0 0.0
    %2054 = vmatpush.msra.mxu0 0.0
    %2055 = vmatpush.msra.mxu0 0.0
    %2056 = vmatpush.msra.mxu0 0.0
    %2057 = vmatpush.msra.mxu0 0.0
    %2058 = vmatpush.msra.mxu0 0.0
    %2059 = vmatpush.msra.mxu0 0.0
    %2060 = vmatpush.msra.mxu0 0.0
    %2061 = vmatpush.msra.mxu0 0.0
    %2062 = vmatpush.msra.mxu0 0.0
    %2063 = vmatpush.msra.mxu0 0.0
    %2064 = vmatpush.msra.mxu0 %v2042
    %2065 = vmatpush.msra.mxu0 %v2039
    %2066 = vmatmul.f32.gmra.mxu0 %v2045
    %v2067 = vpop.f32.mrf.mxu0
    %v2068 = vadd.f32 0.0, %v2067
    %2069 = vmatmul.f32.gmra.mxu0 %v2048
    %v2070 = vpop.f32.mrf.mxu0
    %v2071 = vadd.f32 0.0, %v2070
    %2072 = vdwg.mxu0
    %v2073 = vmul.f32 %v2068, %v1881
    %v2074 = vmul.f32 %v2071, %v1882
    %v2075 = vadd.f32 %v2073, %v1883
    %v2076 = vadd.f32 %v2074, %v1884
    %v2077 = vtanh.pop %v2075
    %v2078 = vtanh.pop %v2076
    %v2079 = vadd.f32 %v2077, %v1763
    %v2080 = vadd.f32 %v2078, %v1764
    %v2082 = vsel %vm304, %v2013, 0
    %v2085 = vsel %vm304, %v2014, 0
    %2087 = vmatpush.msra.mxu0 0.0
    %2088 = vmatpush.msra.mxu0 0.0
    %2089 = vmatpush.msra.mxu0 0.0
    %2090 = vmatpush.msra.mxu0 0.0
    %2091 = vmatpush.msra.mxu0 0.0
    %2092 = vmatpush.msra.mxu0 0.0
    %2093 = vmatpush.msra.mxu0 0.0
    %2094 = vmatpush.msra.mxu0 0.0
    %2095 = vmatpush.msra.mxu0 0.0
    %2096 = vmatpush.msra.mxu0 0.0
    %2097 = vmatpush.msra.mxu0 0.0
    %2098 = vmatpush.msra.mxu0 0.0
    %2099 = vmatpush.msra.mxu0 %v1889
    %2100 = vmatpush.msra.mxu0 %v1888
    %2101 = vmatpush.msra.mxu0 %v1887
    %2102 = vmatpush.msra.mxu0 %v1886
    %2103 = vmatmul.f32.gmra.mxu0 %v2082
    %v2104 = vpop.f32.mrf.mxu0
    %v2105 = vadd.f32 0.0, %v2104
    %2106 = vmatmul.f32.gmra.mxu0 %v2085
    %v2107 = vpop.f32.mrf.mxu0
    %v2108 = vadd.f32 0.0, %v2107
    %2109 = vdwg.mxu0
    %2110 = vmatpush.msra.mxu0 0.0
    %2111 = vmatpush.msra.mxu0 0.0
    %2112 = vmatpush.msra.mxu0 0.0
    %2113 = vmatpush.msra.mxu0 0.0
    %2114 = vmatpush.msra.mxu0 0.0
    %2115 = vmatpush.msra.mxu0 0.0
    %2116 = vmatpush.msra.mxu0 0.0
    %2117 = vmatpush.msra.mxu0 0.0
    %2118 = vmatpush.msra.mxu0 0.0
    %2119 = vmatpush.msra.mxu0 0.0
    %2120 = vmatpush.msra.mxu0 0.0
    %2121 = vmatpush.msra.mxu0 0.0
    %2122 = vmatpush.msra.mxu0 0.0
    %2123 = vmatpush.msra.mxu0 0.0
    %2124 = vmatpush.msra.mxu0 %v2108
    %2125 = vmatpush.msra.mxu0 %v2105
    %2126 = vmatmul.f32.gmra.mxu0 %v2045
    %v2127 = vpop.f32.mrf.mxu0
    %v2128 = vadd.f32 0.0, %v2127
    %2129 = vmatmul.f32.gmra.mxu0 %v2048
    %v2130 = vpop.f32.mrf.mxu0
    %v2131 = vadd.f32 0.0, %v2130
    %2132 = vdwg.mxu0
    %v2133 = vmul.f32 %v2128, %v1881
    %v2134 = vmul.f32 %v2131, %v1882
    %v2135 = vadd.f32 %v2133, %v1883
    %v2136 = vadd.f32 %v2134, %v1884
    %v2137 = vtanh.pop %v2135
    %v2138 = vtanh.pop %v2136
    %v2139 = vadd.f32 %v2137, %v1865
    %v2140 = vadd.f32 %v2138, %v1866
    %s2141 = scalar_lea.vmem [#allocation7], 320
    %v2142 = vld [vmem:[%s2141] sm:$0xff]
    %v2143 = vld [vmem:[%s2141 + $0x8] sm:$0xff]
    %v2144 = vld [vmem:[%s2141 + $0x10] sm:$0xff]
    %v2145 = vld [vmem:[%s2141 + $0x18] sm:$0xff]
    %s2146 = scalar_lea.vmem [#allocation6], 320
    %v2147 = vld [vmem:[%s2146] sm:$0xff]
    %v2148 = vld [vmem:[%s2146 + $0x8] sm:$0xff]
    %v2149 = vld [vmem:[%s2146 + $0x10] sm:$0xff]
    %v2150 = vld [vmem:[%s2146 + $0x18] sm:$0xff]
    %s2151 = scalar_lea.vmem %s8, 160
    %v2152 = vld [vmem:[%s2151] sm:$0xff]
    %v2153 = vld [vmem:[%s2151 + $0x8] sm:$0xff]
    %s2154 = scalar_lea.vmem [#allocation7], 352
    %v2155 = vld [vmem:[%s2154] sm:$0xff]
    %v2156 = vld [vmem:[%s2154 + $0x8] sm:$0xff]
    %v2157 = vld [vmem:[%s2154 + $0x10] sm:$0xff]
    %v2158 = vld [vmem:[%s2154 + $0x18] sm:$0xff]
    %s2159 = scalar_lea.vmem [#allocation6], 352
    %v2160 = vld [vmem:[%s2159] sm:$0xff]
    %v2161 = vld [vmem:[%s2159 + $0x8] sm:$0xff]
    %v2162 = vld [vmem:[%s2159 + $0x10] sm:$0xff]
    %v2163 = vld [vmem:[%s2159 + $0x18] sm:$0xff]
    %s2164 = scalar_lea.vmem %s8, 176
    %v2165 = vld [vmem:[%s2164] sm:$0xff]
    %v2166 = vld [vmem:[%s2164 + $0x8] sm:$0xff]
    %v2168 = vsel %vm304, %v2079, 0
    %v2171 = vsel %vm304, %v2080, 0
    %2173 = vmatpush.msra.mxu0 0.0
    %2174 = vmatpush.msra.mxu0 0.0
    %2175 = vmatpush.msra.mxu0 0.0
    %2176 = vmatpush.msra.mxu0 0.0
    %2177 = vmatpush.msra.mxu0 0.0
    %2178 = vmatpush.msra.mxu0 0.0
    %2179 = vmatpush.msra.mxu0 0.0
    %2180 = vmatpush.msra.mxu0 0.0
    %2181 = vmatpush.msra.mxu0 0.0
    %2182 = vmatpush.msra.mxu0 0.0
    %2183 = vmatpush.msra.mxu0 0.0
    %2184 = vmatpush.msra.mxu0 0.0
    %2185 = vmatpush.msra.mxu0 %v2150
    %2186 = vmatpush.msra.mxu0 %v2149
    %2187 = vmatpush.msra.mxu0 %v2148
    %2188 = vmatpush.msra.mxu0 %v2147
    %2189 = vmatmul.f32.gmra.mxu0 %v2168
    %v2190 = vpop.f32.mrf.mxu0
    %v2191 = vadd.f32 0.0, %v2190
    %2192 = vmatmul.f32.gmra.mxu0 %v2171
    %v2193 = vpop.f32.mrf.mxu0
    %v2194 = vadd.f32 0.0, %v2193
    %2195 = vdwg.mxu0
    %v2197 = vsel %vm155, %v2152, 0
    %v2200 = vsel %vm155, %v2153, 0
    %2202 = vmatpush.msra.mxu0 0.0
    %2203 = vmatpush.msra.mxu0 0.0
    %2204 = vmatpush.msra.mxu0 0.0
    %2205 = vmatpush.msra.mxu0 0.0
    %2206 = vmatpush.msra.mxu0 0.0
    %2207 = vmatpush.msra.mxu0 0.0
    %2208 = vmatpush.msra.mxu0 0.0
    %2209 = vmatpush.msra.mxu0 0.0
    %2210 = vmatpush.msra.mxu0 0.0
    %2211 = vmatpush.msra.mxu0 0.0
    %2212 = vmatpush.msra.mxu0 0.0
    %2213 = vmatpush.msra.mxu0 0.0
    %2214 = vmatpush.msra.mxu0 0.0
    %2215 = vmatpush.msra.mxu0 0.0
    %2216 = vmatpush.msra.mxu0 %v2194
    %2217 = vmatpush.msra.mxu0 %v2191
    %2218 = vmatmul.f32.gmra.mxu0 %v2197
    %v2219 = vpop.f32.mrf.mxu0
    %v2220 = vadd.f32 0.0, %v2219
    %2221 = vmatmul.f32.gmra.mxu0 %v2200
    %v2222 = vpop.f32.mrf.mxu0
    %v2223 = vadd.f32 0.0, %v2222
    %2224 = vdwg.mxu0
    %v2225 = vmul.f32 %v2220, %v2142
    %v2226 = vmul.f32 %v2223, %v2143
    %v2227 = vadd.f32 %v2225, %v2144
    %v2228 = vadd.f32 %v2226, %v2145
    %v2229 = vtanh.pop %v2227
    %v2230 = vtanh.pop %v2228
    %v2232 = vsel %vm304, %v2139, 0
    %v2235 = vsel %vm304, %v2140, 0
    %2237 = vmatpush.msra.mxu0 0.0
    %2238 = vmatpush.msra.mxu0 0.0
    %2239 = vmatpush.msra.mxu0 0.0
    %2240 = vmatpush.msra.mxu0 0.0
    %2241 = vmatpush.msra.mxu0 0.0
    %2242 = vmatpush.msra.mxu0 0.0
    %2243 = vmatpush.msra.mxu0 0.0
    %2244 = vmatpush.msra.mxu0 0.0
    %2245 = vmatpush.msra.mxu0 0.0
    %2246 = vmatpush.msra.mxu0 0.0
    %2247 = vmatpush.msra.mxu0 0.0
    %2248 = vmatpush.msra.mxu0 0.0
    %2249 = vmatpush.msra.mxu0 %v2150
    %2250 = vmatpush.msra.mxu0 %v2149
    %2251 = vmatpush.msra.mxu0 %v2148
    %2252 = vmatpush.msra.mxu0 %v2147
    %2253 = vmatmul.f32.gmra.mxu0 %v2232
    %v2254 = vpop.f32.mrf.mxu0
    %v2255 = vadd.f32 0.0, %v2254
    %2256 = vmatmul.f32.gmra.mxu0 %v2235
    %v2257 = vpop.f32.mrf.mxu0
    %v2258 = vadd.f32 0.0, %v2257
    %2259 = vdwg.mxu0
    %2260 = vmatpush.msra.mxu0 0.0
    %2261 = vmatpush.msra.mxu0 0.0
    %2262 = vmatpush.msra.mxu0 0.0
    %2263 = vmatpush.msra.mxu0 0.0
    %2264 = vmatpush.msra.mxu0 0.0
    %2265 = vmatpush.msra.mxu0 0.0
    %2266 = vmatpush.msra.mxu0 0.0
    %2267 = vmatpush.msra.mxu0 0.0
    %2268 = vmatpush.msra.mxu0 0.0
    %2269 = vmatpush.msra.mxu0 0.0
    %2270 = vmatpush.msra.mxu0 0.0
    %2271 = vmatpush.msra.mxu0 0.0
    %2272 = vmatpush.msra.mxu0 0.0
    %2273 = vmatpush.msra.mxu0 0.0
    %2274 = vmatpush.msra.mxu0 %v2258
    %2275 = vmatpush.msra.mxu0 %v2255
    %2276 = vmatmul.f32.gmra.mxu0 %v2197
    %v2277 = vpop.f32.mrf.mxu0
    %v2278 = vadd.f32 0.0, %v2277
    %2279 = vmatmul.f32.gmra.mxu0 %v2200
    %v2280 = vpop.f32.mrf.mxu0
    %v2281 = vadd.f32 0.0, %v2280
    %2282 = vdwg.mxu0
    %v2283 = vmul.f32 %v2278, %v2142
    %v2284 = vmul.f32 %v2281, %v2143
    %v2285 = vadd.f32 %v2283, %v2144
    %v2286 = vadd.f32 %v2284, %v2145
    %v2287 = vtanh.pop %v2285
    %v2288 = vtanh.pop %v2286
    %v2290 = vsel %vm304, %v2229, 0
    %v2293 = vsel %vm304, %v2230, 0
    %2295 = vmatpush.msra.mxu0 0.0
    %2296 = vmatpush.msra.mxu0 0.0
    %2297 = vmatpush.msra.mxu0 0.0
    %2298 = vmatpush.msra.mxu0 0.0
    %2299 = vmatpush.msra.mxu0 0.0
    %2300 = vmatpush.msra.mxu0 0.0
    %2301 = vmatpush.msra.mxu0 0.0
    %2302 = vmatpush.msra.mxu0 0.0
    %2303 = vmatpush.msra.mxu0 0.0
    %2304 = vmatpush.msra.mxu0 0.0
    %2305 = vmatpush.msra.mxu0 0.0
    %2306 = vmatpush.msra.mxu0 0.0
    %2307 = vmatpush.msra.mxu0 %v2163
    %2308 = vmatpush.msra.mxu0 %v2162
    %2309 = vmatpush.msra.mxu0 %v2161
    %2310 = vmatpush.msra.mxu0 %v2160
    %2311 = vmatmul.f32.gmra.mxu0 %v2290
    %v2312 = vpop.f32.mrf.mxu0
    %v2313 = vadd.f32 0.0, %v2312
    %2314 = vmatmul.f32.gmra.mxu0 %v2293
    %v2315 = vpop.f32.mrf.mxu0
    %v2316 = vadd.f32 0.0, %v2315
    %2317 = vdwg.mxu0
    %v2319 = vsel %vm155, %v2165, 0
    %v2322 = vsel %vm155, %v2166, 0
    %2324 = vmatpush.msra.mxu0 0.0
    %2325 = vmatpush.msra.mxu0 0.0
    %2326 = vmatpush.msra.mxu0 0.0
    %2327 = vmatpush.msra.mxu0 0.0
    %2328 = vmatpush.msra.mxu0 0.0
    %2329 = vmatpush.msra.mxu0 0.0
    %2330 = vmatpush.msra.mxu0 0.0
    %2331 = vmatpush.msra.mxu0 0.0
    %2332 = vmatpush.msra.mxu0 0.0
    %2333 = vmatpush.msra.mxu0 0.0
    %2334 = vmatpush.msra.mxu0 0.0
    %2335 = vmatpush.msra.mxu0 0.0
    %2336 = vmatpush.msra.mxu0 0.0
    %2337 = vmatpush.msra.mxu0 0.0
    %2338 = vmatpush.msra.mxu0 %v2316
    %2339 = vmatpush.msra.mxu0 %v2313
    %2340 = vmatmul.f32.gmra.mxu0 %v2319
    %v2341 = vpop.f32.mrf.mxu0
    %v2342 = vadd.f32 0.0, %v2341
    %2343 = vmatmul.f32.gmra.mxu0 %v2322
    %v2344 = vpop.f32.mrf.mxu0
    %v2345 = vadd.f32 0.0, %v2344
    %2346 = vdwg.mxu0
    %v2347 = vmul.f32 %v2342, %v2155
    %v2348 = vmul.f32 %v2345, %v2156
    %v2349 = vadd.f32 %v2347, %v2157
    %v2350 = vadd.f32 %v2348, %v2158
    %v2351 = vtanh.pop %v2349
    %v2352 = vtanh.pop %v2350
    %v2353 = vadd.f32 %v2351, %v2079
    %v2354 = vadd.f32 %v2352, %v2080
    %v2356 = vsel %vm304, %v2287, 0
    %v2359 = vsel %vm304, %v2288, 0
    %2361 = vmatpush.msra.mxu0 0.0
    %2362 = vmatpush.msra.mxu0 0.0
    %2363 = vmatpush.msra.mxu0 0.0
    %2364 = vmatpush.msra.mxu0 0.0
    %2365 = vmatpush.msra.mxu0 0.0
    %2366 = vmatpush.msra.mxu0 0.0
    %2367 = vmatpush.msra.mxu0 0.0
    %2368 = vmatpush.msra.mxu0 0.0
    %2369 = vmatpush.msra.mxu0 0.0
    %2370 = vmatpush.msra.mxu0 0.0
    %2371 = vmatpush.msra.mxu0 0.0
    %2372 = vmatpush.msra.mxu0 0.0
    %2373 = vmatpush.msra.mxu0 %v2163
    %2374 = vmatpush.msra.mxu0 %v2162
    %2375 = vmatpush.msra.mxu0 %v2161
    %2376 = vmatpush.msra.mxu0 %v2160
    %2377 = vmatmul.f32.gmra.mxu0 %v2356
    %v2378 = vpop.f32.mrf.mxu0
    %v2379 = vadd.f32 0.0, %v2378
    %2380 = vmatmul.f32.gmra.mxu0 %v2359
    %v2381 = vpop.f32.mrf.mxu0
    %v2382 = vadd.f32 0.0, %v2381
    %2383 = vdwg.mxu0
    %2384 = vmatpush.msra.mxu0 0.0
    %2385 = vmatpush.msra.mxu0 0.0
    %2386 = vmatpush.msra.mxu0 0.0
    %2387 = vmatpush.msra.mxu0 0.0
    %2388 = vmatpush.msra.mxu0 0.0
    %2389 = vmatpush.msra.mxu0 0.0
    %2390 = vmatpush.msra.mxu0 0.0
    %2391 = vmatpush.msra.mxu0 0.0
    %2392 = vmatpush.msra.mxu0 0.0
    %2393 = vmatpush.msra.mxu0 0.0
    %2394 = vmatpush.msra.mxu0 0.0
    %2395 = vmatpush.msra.mxu0 0.0
    %2396 = vmatpush.msra.mxu0 0.0
    %2397 = vmatpush.msra.mxu0 0.0
    %2398 = vmatpush.msra.mxu0 %v2382
    %2399 = vmatpush.msra.mxu0 %v2379
    %2400 = vmatmul.f32.gmra.mxu0 %v2319
    %v2401 = vpop.f32.mrf.mxu0
    %v2402 = vadd.f32 0.0, %v2401
    %2403 = vmatmul.f32.gmra.mxu0 %v2322
    %v2404 = vpop.f32.mrf.mxu0
    %v2405 = vadd.f32 0.0, %v2404
    %2406 = vdwg.mxu0
    %v2407 = vmul.f32 %v2402, %v2155
    %v2408 = vmul.f32 %v2405, %v2156
    %v2409 = vadd.f32 %v2407, %v2157
    %v2410 = vadd.f32 %v2408, %v2158
    %v2411 = vtanh.pop %v2409
    %v2412 = vtanh.pop %v2410
    %v2413 = vadd.f32 %v2411, %v2139
    %v2414 = vadd.f32 %v2412, %v2140
    %s2415 = scalar_lea.vmem [#allocation7], 384
    %v2416 = vld [vmem:[%s2415] sm:$0xff]
    %v2417 = vld [vmem:[%s2415 + $0x8] sm:$0xff]
    %v2418 = vld [vmem:[%s2415 + $0x10] sm:$0xff]
    %v2419 = vld [vmem:[%s2415 + $0x18] sm:$0xff]
    %s2420 = scalar_lea.vmem [#allocation6], 384
    %v2421 = vld [vmem:[%s2420] sm:$0xff]
    %v2422 = vld [vmem:[%s2420 + $0x8] sm:$0xff]
    %v2423 = vld [vmem:[%s2420 + $0x10] sm:$0xff]
    %v2424 = vld [vmem:[%s2420 + $0x18] sm:$0xff]
    %s2425 = scalar_lea.vmem %s8, 192
    %v2426 = vld [vmem:[%s2425] sm:$0xff]
    %v2427 = vld [vmem:[%s2425 + $0x8] sm:$0xff]
    %s2428 = scalar_lea.vmem [#allocation7], 416
    %v2429 = vld [vmem:[%s2428] sm:$0xff]
    %v2430 = vld [vmem:[%s2428 + $0x8] sm:$0xff]
    %v2431 = vld [vmem:[%s2428 + $0x10] sm:$0xff]
    %v2432 = vld [vmem:[%s2428 + $0x18] sm:$0xff]
    %s2433 = scalar_lea.vmem [#allocation6], 416
    %v2434 = vld [vmem:[%s2433] sm:$0xff]
    %v2435 = vld [vmem:[%s2433 + $0x8] sm:$0xff]
    %v2436 = vld [vmem:[%s2433 + $0x10] sm:$0xff]
    %v2437 = vld [vmem:[%s2433 + $0x18] sm:$0xff]
    %s2438 = scalar_lea.vmem %s8, 208
    %v2439 = vld [vmem:[%s2438] sm:$0xff]
    %v2440 = vld [vmem:[%s2438 + $0x8] sm:$0xff]
    %v2442 = vsel %vm304, %v2353, 0
    %v2445 = vsel %vm304, %v2354, 0
    %2447 = vmatpush.msra.mxu0 0.0
    %2448 = vmatpush.msra.mxu0 0.0
    %2449 = vmatpush.msra.mxu0 0.0
    %2450 = vmatpush.msra.mxu0 0.0
    %2451 = vmatpush.msra.mxu0 0.0
    %2452 = vmatpush.msra.mxu0 0.0
    %2453 = vmatpush.msra.mxu0 0.0
    %2454 = vmatpush.msra.mxu0 0.0
    %2455 = vmatpush.msra.mxu0 0.0
    %2456 = vmatpush.msra.mxu0 0.0
    %2457 = vmatpush.msra.mxu0 0.0
    %2458 = vmatpush.msra.mxu0 0.0
    %2459 = vmatpush.msra.mxu0 %v2424
    %2460 = vmatpush.msra.mxu0 %v2423
    %2461 = vmatpush.msra.mxu0 %v2422
    %2462 = vmatpush.msra.mxu0 %v2421
    %2463 = vmatmul.f32.gmra.mxu0 %v2442
    %v2464 = vpop.f32.mrf.mxu0
    %v2465 = vadd.f32 0.0, %v2464
    %2466 = vmatmul.f32.gmra.mxu0 %v2445
    %v2467 = vpop.f32.mrf.mxu0
    %v2468 = vadd.f32 0.0, %v2467
    %2469 = vdwg.mxu0
    %v2471 = vsel %vm155, %v2426, 0
    %v2474 = vsel %vm155, %v2427, 0
    %2476 = vmatpush.msra.mxu0 0.0
    %2477 = vmatpush.msra.mxu0 0.0
    %2478 = vmatpush.msra.mxu0 0.0
    %2479 = vmatpush.msra.mxu0 0.0
    %2480 = vmatpush.msra.mxu0 0.0
    %2481 = vmatpush.msra.mxu0 0.0
    %2482 = vmatpush.msra.mxu0 0.0
    %2483 = vmatpush.msra.mxu0 0.0
    %2484 = vmatpush.msra.mxu0 0.0
    %2485 = vmatpush.msra.mxu0 0.0
    %2486 = vmatpush.msra.mxu0 0.0
    %2487 = vmatpush.msra.mxu0 0.0
    %2488 = vmatpush.msra.mxu0 0.0
    %2489 = vmatpush.msra.mxu0 0.0
    %2490 = vmatpush.msra.mxu0 %v2468
    %2491 = vmatpush.msra.mxu0 %v2465
    %2492 = vmatmul.f32.gmra.mxu0 %v2471
    %v2493 = vpop.f32.mrf.mxu0
    %v2494 = vadd.f32 0.0, %v2493
    %2495 = vmatmul.f32.gmra.mxu0 %v2474
    %v2496 = vpop.f32.mrf.mxu0
    %v2497 = vadd.f32 0.0, %v2496
    %2498 = vdwg.mxu0
    %v2499 = vmul.f32 %v2494, %v2416
    %v2500 = vmul.f32 %v2497, %v2417
    %v2501 = vadd.f32 %v2499, %v2418
    %v2502 = vadd.f32 %v2500, %v2419
    %v2503 = vtanh.pop %v2501
    %v2504 = vtanh.pop %v2502
    %v2506 = vsel %vm304, %v2413, 0
    %v2509 = vsel %vm304, %v2414, 0
    %2511 = vmatpush.msra.mxu0 0.0
    %2512 = vmatpush.msra.mxu0 0.0
    %2513 = vmatpush.msra.mxu0 0.0
    %2514 = vmatpush.msra.mxu0 0.0
    %2515 = vmatpush.msra.mxu0 0.0
    %2516 = vmatpush.msra.mxu0 0.0
    %2517 = vmatpush.msra.mxu0 0.0
    %2518 = vmatpush.msra.mxu0 0.0
    %2519 = vmatpush.msra.mxu0 0.0
    %2520 = vmatpush.msra.mxu0 0.0
    %2521 = vmatpush.msra.mxu0 0.0
    %2522 = vmatpush.msra.mxu0 0.0
    %2523 = vmatpush.msra.mxu0 %v2424
    %2524 = vmatpush.msra.mxu0 %v2423
    %2525 = vmatpush.msra.mxu0 %v2422
    %2526 = vmatpush.msra.mxu0 %v2421
    %2527 = vmatmul.f32.gmra.mxu0 %v2506
    %v2528 = vpop.f32.mrf.mxu0
    %v2529 = vadd.f32 0.0, %v2528
    %2530 = vmatmul.f32.gmra.mxu0 %v2509
    %v2531 = vpop.f32.mrf.mxu0
    %v2532 = vadd.f32 0.0, %v2531
    %2533 = vdwg.mxu0
    %2534 = vmatpush.msra.mxu0 0.0
    %2535 = vmatpush.msra.mxu0 0.0
    %2536 = vmatpush.msra.mxu0 0.0
    %2537 = vmatpush.msra.mxu0 0.0
    %2538 = vmatpush.msra.mxu0 0.0
    %2539 = vmatpush.msra.mxu0 0.0
    %2540 = vmatpush.msra.mxu0 0.0
    %2541 = vmatpush.msra.mxu0 0.0
    %2542 = vmatpush.msra.mxu0 0.0
    %2543 = vmatpush.msra.mxu0 0.0
    %2544 = vmatpush.msra.mxu0 0.0
    %2545 = vmatpush.msra.mxu0 0.0
    %2546 = vmatpush.msra.mxu0 0.0
    %2547 = vmatpush.msra.mxu0 0.0
    %2548 = vmatpush.msra.mxu0 %v2532
    %2549 = vmatpush.msra.mxu0 %v2529
    %2550 = vmatmul.f32.gmra.mxu0 %v2471
    %v2551 = vpop.f32.mrf.mxu0
    %v2552 = vadd.f32 0.0, %v2551
    %2553 = vmatmul.f32.gmra.mxu0 %v2474
    %v2554 = vpop.f32.mrf.mxu0
    %v2555 = vadd.f32 0.0, %v2554
    %2556 = vdwg.mxu0
    %v2557 = vmul.f32 %v2552, %v2416
    %v2558 = vmul.f32 %v2555, %v2417
    %v2559 = vadd.f32 %v2557, %v2418
    %v2560 = vadd.f32 %v2558, %v2419
    %v2561 = vtanh.pop %v2559
    %v2562 = vtanh.pop %v2560
    %v2564 = vsel %vm304, %v2503, 0
    %v2567 = vsel %vm304, %v2504, 0
    %2569 = vmatpush.msra.mxu0 0.0
    %2570 = vmatpush.msra.mxu0 0.0
    %2571 = vmatpush.msra.mxu0 0.0
    %2572 = vmatpush.msra.mxu0 0.0
    %2573 = vmatpush.msra.mxu0 0.0
    %2574 = vmatpush.msra.mxu0 0.0
    %2575 = vmatpush.msra.mxu0 0.0
    %2576 = vmatpush.msra.mxu0 0.0
    %2577 = vmatpush.msra.mxu0 0.0
    %2578 = vmatpush.msra.mxu0 0.0
    %2579 = vmatpush.msra.mxu0 0.0
    %2580 = vmatpush.msra.mxu0 0.0
    %2581 = vmatpush.msra.mxu0 %v2437
    %2582 = vmatpush.msra.mxu0 %v2436
    %2583 = vmatpush.msra.mxu0 %v2435
    %2584 = vmatpush.msra.mxu0 %v2434
    %2585 = vmatmul.f32.gmra.mxu0 %v2564
    %v2586 = vpop.f32.mrf.mxu0
    %v2587 = vadd.f32 0.0, %v2586
    %2588 = vmatmul.f32.gmra.mxu0 %v2567
    %v2589 = vpop.f32.mrf.mxu0
    %v2590 = vadd.f32 0.0, %v2589
    %2591 = vdwg.mxu0
    %v2593 = vsel %vm155, %v2439, 0
    %v2596 = vsel %vm155, %v2440, 0
    %2598 = vmatpush.msra.mxu0 0.0
    %2599 = vmatpush.msra.mxu0 0.0
    %2600 = vmatpush.msra.mxu0 0.0
    %2601 = vmatpush.msra.mxu0 0.0
    %2602 = vmatpush.msra.mxu0 0.0
    %2603 = vmatpush.msra.mxu0 0.0
    %2604 = vmatpush.msra.mxu0 0.0
    %2605 = vmatpush.msra.mxu0 0.0
    %2606 = vmatpush.msra.mxu0 0.0
    %2607 = vmatpush.msra.mxu0 0.0
    %2608 = vmatpush.msra.mxu0 0.0
    %2609 = vmatpush.msra.mxu0 0.0
    %2610 = vmatpush.msra.mxu0 0.0
    %2611 = vmatpush.msra.mxu0 0.0
    %2612 = vmatpush.msra.mxu0 %v2590
    %2613 = vmatpush.msra.mxu0 %v2587
    %2614 = vmatmul.f32.gmra.mxu0 %v2593
    %v2615 = vpop.f32.mrf.mxu0
    %v2616 = vadd.f32 0.0, %v2615
    %2617 = vmatmul.f32.gmra.mxu0 %v2596
    %v2618 = vpop.f32.mrf.mxu0
    %v2619 = vadd.f32 0.0, %v2618
    %2620 = vdwg.mxu0
    %v2621 = vmul.f32 %v2616, %v2429
    %v2622 = vmul.f32 %v2619, %v2430
    %v2623 = vadd.f32 %v2621, %v2431
    %v2624 = vadd.f32 %v2622, %v2432
    %v2625 = vtanh.pop %v2623
    %v2626 = vtanh.pop %v2624
    %v2627 = vadd.f32 %v2625, %v2353
    %v2628 = vadd.f32 %v2626, %v2354
    %v2630 = vsel %vm304, %v2561, 0
    %v2633 = vsel %vm304, %v2562, 0
    %2635 = vmatpush.msra.mxu0 0.0
    %2636 = vmatpush.msra.mxu0 0.0
    %2637 = vmatpush.msra.mxu0 0.0
    %2638 = vmatpush.msra.mxu0 0.0
    %2639 = vmatpush.msra.mxu0 0.0
    %2640 = vmatpush.msra.mxu0 0.0
    %2641 = vmatpush.msra.mxu0 0.0
    %2642 = vmatpush.msra.mxu0 0.0
    %2643 = vmatpush.msra.mxu0 0.0
    %2644 = vmatpush.msra.mxu0 0.0
    %2645 = vmatpush.msra.mxu0 0.0
    %2646 = vmatpush.msra.mxu0 0.0
    %2647 = vmatpush.msra.mxu0 %v2437
    %2648 = vmatpush.msra.mxu0 %v2436
    %2649 = vmatpush.msra.mxu0 %v2435
    %2650 = vmatpush.msra.mxu0 %v2434
    %2651 = vmatmul.f32.gmra.mxu0 %v2630
    %v2652 = vpop.f32.mrf.mxu0
    %v2653 = vadd.f32 0.0, %v2652
    %2654 = vmatmul.f32.gmra.mxu0 %v2633
    %v2655 = vpop.f32.mrf.mxu0
    %v2656 = vadd.f32 0.0, %v2655
    %2657 = vdwg.mxu0
    %2658 = vmatpush.msra.mxu0 0.0
    %2659 = vmatpush.msra.mxu0 0.0
    %2660 = vmatpush.msra.mxu0 0.0
    %2661 = vmatpush.msra.mxu0 0.0
    %2662 = vmatpush.msra.mxu0 0.0
    %2663 = vmatpush.msra.mxu0 0.0
    %2664 = vmatpush.msra.mxu0 0.0
    %2665 = vmatpush.msra.mxu0 0.0
    %2666 = vmatpush.msra.mxu0 0.0
    %2667 = vmatpush.msra.mxu0 0.0
    %2668 = vmatpush.msra.mxu0 0.0
    %2669 = vmatpush.msra.mxu0 0.0
    %2670 = vmatpush.msra.mxu0 0.0
    %2671 = vmatpush.msra.mxu0 0.0
    %2672 = vmatpush.msra.mxu0 %v2656
    %2673 = vmatpush.msra.mxu0 %v2653
    %2674 = vmatmul.f32.gmra.mxu0 %v2593
    %v2675 = vpop.f32.mrf.mxu0
    %v2676 = vadd.f32 0.0, %v2675
    %2677 = vmatmul.f32.gmra.mxu0 %v2596
    %v2678 = vpop.f32.mrf.mxu0
    %v2679 = vadd.f32 0.0, %v2678
    %2680 = vdwg.mxu0
    %v2681 = vmul.f32 %v2676, %v2429
    %v2682 = vmul.f32 %v2679, %v2430
    %v2683 = vadd.f32 %v2681, %v2431
    %v2684 = vadd.f32 %v2682, %v2432
    %v2685 = vtanh.pop %v2683
    %v2686 = vtanh.pop %v2684
    %v2687 = vadd.f32 %v2685, %v2413
    %v2688 = vadd.f32 %v2686, %v2414
    %s2689 = scalar_lea.vmem [#allocation7], 448
    %v2690 = vld [vmem:[%s2689] sm:$0xff]
    %v2691 = vld [vmem:[%s2689 + $0x8] sm:$0xff]
    %v2692 = vld [vmem:[%s2689 + $0x10] sm:$0xff]
    %v2693 = vld [vmem:[%s2689 + $0x18] sm:$0xff]
    %s2694 = scalar_lea.vmem [#allocation6], 448
    %v2695 = vld [vmem:[%s2694] sm:$0xff]
    %v2696 = vld [vmem:[%s2694 + $0x8] sm:$0xff]
    %v2697 = vld [vmem:[%s2694 + $0x10] sm:$0xff]
    %v2698 = vld [vmem:[%s2694 + $0x18] sm:$0xff]
    %s2699 = scalar_lea.vmem %s8, 224
    %v2700 = vld [vmem:[%s2699] sm:$0xff]
    %v2701 = vld [vmem:[%s2699 + $0x8] sm:$0xff]
    %s2702 = scalar_lea.vmem [#allocation7], 480
    %v2703 = vld [vmem:[%s2702] sm:$0xff]
    %v2704 = vld [vmem:[%s2702 + $0x8] sm:$0xff]
    %v2705 = vld [vmem:[%s2702 + $0x10] sm:$0xff]
    %v2706 = vld [vmem:[%s2702 + $0x18] sm:$0xff]
    %s2707 = scalar_lea.vmem [#allocation6], 480
    %v2708 = vld [vmem:[%s2707] sm:$0xff]
    %v2709 = vld [vmem:[%s2707 + $0x8] sm:$0xff]
    %v2710 = vld [vmem:[%s2707 + $0x10] sm:$0xff]
    %v2711 = vld [vmem:[%s2707 + $0x18] sm:$0xff]
    %s2712 = scalar_lea.vmem %s8, 240
    %v2713 = vld [vmem:[%s2712] sm:$0xff]
    %v2714 = vld [vmem:[%s2712 + $0x8] sm:$0xff]
    %v2716 = vsel %vm304, %v2627, 0
    %v2719 = vsel %vm304, %v2628, 0
    %2721 = vmatpush.msra.mxu0 0.0
    %2722 = vmatpush.msra.mxu0 0.0
    %2723 = vmatpush.msra.mxu0 0.0
    %2724 = vmatpush.msra.mxu0 0.0
    %2725 = vmatpush.msra.mxu0 0.0
    %2726 = vmatpush.msra.mxu0 0.0
    %2727 = vmatpush.msra.mxu0 0.0
    %2728 = vmatpush.msra.mxu0 0.0
    %2729 = vmatpush.msra.mxu0 0.0
    %2730 = vmatpush.msra.mxu0 0.0
    %2731 = vmatpush.msra.mxu0 0.0
    %2732 = vmatpush.msra.mxu0 0.0
    %2733 = vmatpush.msra.mxu0 %v2698
    %2734 = vmatpush.msra.mxu0 %v2697
    %2735 = vmatpush.msra.mxu0 %v2696
    %2736 = vmatpush.msra.mxu0 %v2695
    %2737 = vmatmul.f32.gmra.mxu0 %v2716
    %v2738 = vpop.f32.mrf.mxu0
    %v2739 = vadd.f32 0.0, %v2738
    %2740 = vmatmul.f32.gmra.mxu0 %v2719
    %v2741 = vpop.f32.mrf.mxu0
    %v2742 = vadd.f32 0.0, %v2741
    %2743 = vdwg.mxu0
    %v2745 = vsel %vm155, %v2700, 0
    %v2748 = vsel %vm155, %v2701, 0
    %2750 = vmatpush.msra.mxu0 0.0
    %2751 = vmatpush.msra.mxu0 0.0
    %2752 = vmatpush.msra.mxu0 0.0
    %2753 = vmatpush.msra.mxu0 0.0
    %2754 = vmatpush.msra.mxu0 0.0
    %2755 = vmatpush.msra.mxu0 0.0
    %2756 = vmatpush.msra.mxu0 0.0
    %2757 = vmatpush.msra.mxu0 0.0
    %2758 = vmatpush.msra.mxu0 0.0
    %2759 = vmatpush.msra.mxu0 0.0
    %2760 = vmatpush.msra.mxu0 0.0
    %2761 = vmatpush.msra.mxu0 0.0
    %2762 = vmatpush.msra.mxu0 0.0
    %2763 = vmatpush.msra.mxu0 0.0
    %2764 = vmatpush.msra.mxu0 %v2742
    %2765 = vmatpush.msra.mxu0 %v2739
    %2766 = vmatmul.f32.gmra.mxu0 %v2745
    %v2767 = vpop.f32.mrf.mxu0
    %v2768 = vadd.f32 0.0, %v2767
    %2769 = vmatmul.f32.gmra.mxu0 %v2748
    %v2770 = vpop.f32.mrf.mxu0
    %v2771 = vadd.f32 0.0, %v2770
    %2772 = vdwg.mxu0
    %v2773 = vmul.f32 %v2768, %v2690
    %v2774 = vmul.f32 %v2771, %v2691
    %v2775 = vadd.f32 %v2773, %v2692
    %v2776 = vadd.f32 %v2774, %v2693
    %v2777 = vtanh.pop %v2775
    %v2778 = vtanh.pop %v2776
    %v2780 = vsel %vm304, %v2687, 0
    %v2783 = vsel %vm304, %v2688, 0
    %2785 = vmatpush.msra.mxu0 0.0
    %2786 = vmatpush.msra.mxu0 0.0
    %2787 = vmatpush.msra.mxu0 0.0
    %2788 = vmatpush.msra.mxu0 0.0
    %2789 = vmatpush.msra.mxu0 0.0
    %2790 = vmatpush.msra.mxu0 0.0
    %2791 = vmatpush.msra.mxu0 0.0
    %2792 = vmatpush.msra.mxu0 0.0
    %2793 = vmatpush.msra.mxu0 0.0
    %2794 = vmatpush.msra.mxu0 0.0
    %2795 = vmatpush.msra.mxu0 0.0
    %2796 = vmatpush.msra.mxu0 0.0
    %2797 = vmatpush.msra.mxu0 %v2698
    %2798 = vmatpush.msra.mxu0 %v2697
    %2799 = vmatpush.msra.mxu0 %v2696
    %2800 = vmatpush.msra.mxu0 %v2695
    %2801 = vmatmul.f32.gmra.mxu0 %v2780
    %v2802 = vpop.f32.mrf.mxu0
    %v2803 = vadd.f32 0.0, %v2802
    %2804 = vmatmul.f32.gmra.mxu0 %v2783
    %v2805 = vpop.f32.mrf.mxu0
    %v2806 = vadd.f32 0.0, %v2805
    %2807 = vdwg.mxu0
    %2808 = vmatpush.msra.mxu0 0.0
    %2809 = vmatpush.msra.mxu0 0.0
    %2810 = vmatpush.msra.mxu0 0.0
    %2811 = vmatpush.msra.mxu0 0.0
    %2812 = vmatpush.msra.mxu0 0.0
    %2813 = vmatpush.msra.mxu0 0.0
    %2814 = vmatpush.msra.mxu0 0.0
    %2815 = vmatpush.msra.mxu0 0.0
    %2816 = vmatpush.msra.mxu0 0.0
    %2817 = vmatpush.msra.mxu0 0.0
    %2818 = vmatpush.msra.mxu0 0.0
    %2819 = vmatpush.msra.mxu0 0.0
    %2820 = vmatpush.msra.mxu0 0.0
    %2821 = vmatpush.msra.mxu0 0.0
    %2822 = vmatpush.msra.mxu0 %v2806
    %2823 = vmatpush.msra.mxu0 %v2803
    %2824 = vmatmul.f32.gmra.mxu0 %v2745
    %v2825 = vpop.f32.mrf.mxu0
    %v2826 = vadd.f32 0.0, %v2825
    %2827 = vmatmul.f32.gmra.mxu0 %v2748
    %v2828 = vpop.f32.mrf.mxu0
    %v2829 = vadd.f32 0.0, %v2828
    %2830 = vdwg.mxu0
    %v2831 = vmul.f32 %v2826, %v2690
    %v2832 = vmul.f32 %v2829, %v2691
    %v2833 = vadd.f32 %v2831, %v2692
    %v2834 = vadd.f32 %v2832, %v2693
    %v2835 = vtanh.pop %v2833
    %v2836 = vtanh.pop %v2834
    %v2838 = vsel %vm304, %v2777, 0
    %v2841 = vsel %vm304, %v2778, 0
    %2843 = vmatpush.msra.mxu0 0.0
    %2844 = vmatpush.msra.mxu0 0.0
    %2845 = vmatpush.msra.mxu0 0.0
    %2846 = vmatpush.msra.mxu0 0.0
    %2847 = vmatpush.msra.mxu0 0.0
    %2848 = vmatpush.msra.mxu0 0.0
    %2849 = vmatpush.msra.mxu0 0.0
    %2850 = vmatpush.msra.mxu0 0.0
    %2851 = vmatpush.msra.mxu0 0.0
    %2852 = vmatpush.msra.mxu0 0.0
    %2853 = vmatpush.msra.mxu0 0.0
    %2854 = vmatpush.msra.mxu0 0.0
    %2855 = vmatpush.msra.mxu0 %v2711
    %2856 = vmatpush.msra.mxu0 %v2710
    %2857 = vmatpush.msra.mxu0 %v2709
    %2858 = vmatpush.msra.mxu0 %v2708
    %2859 = vmatmul.f32.gmra.mxu0 %v2838
    %v2860 = vpop.f32.mrf.mxu0
    %v2861 = vadd.f32 0.0, %v2860
    %2862 = vmatmul.f32.gmra.mxu0 %v2841
    %v2863 = vpop.f32.mrf.mxu0
    %v2864 = vadd.f32 0.0, %v2863
    %2865 = vdwg.mxu0
    %v2867 = vsel %vm155, %v2713, 0
    %v2870 = vsel %vm155, %v2714, 0
    %2872 = vmatpush.msra.mxu0 0.0
    %2873 = vmatpush.msra.mxu0 0.0
    %2874 = vmatpush.msra.mxu0 0.0
    %2875 = vmatpush.msra.mxu0 0.0
    %2876 = vmatpush.msra.mxu0 0.0
    %2877 = vmatpush.msra.mxu0 0.0
    %2878 = vmatpush.msra.mxu0 0.0
    %2879 = vmatpush.msra.mxu0 0.0
    %2880 = vmatpush.msra.mxu0 0.0
    %2881 = vmatpush.msra.mxu0 0.0
    %2882 = vmatpush.msra.mxu0 0.0
    %2883 = vmatpush.msra.mxu0 0.0
    %2884 = vmatpush.msra.mxu0 0.0
    %2885 = vmatpush.msra.mxu0 0.0
    %2886 = vmatpush.msra.mxu0 %v2864
    %2887 = vmatpush.msra.mxu0 %v2861
    %2888 = vmatmul.f32.gmra.mxu0 %v2867
    %v2889 = vpop.f32.mrf.mxu0
    %v2890 = vadd.f32 0.0, %v2889
    %2891 = vmatmul.f32.gmra.mxu0 %v2870
    %v2892 = vpop.f32.mrf.mxu0
    %v2893 = vadd.f32 0.0, %v2892
    %2894 = vdwg.mxu0
    %v2895 = vmul.f32 %v2890, %v2703
    %v2896 = vmul.f32 %v2893, %v2704
    %v2897 = vadd.f32 %v2895, %v2705
    %v2898 = vadd.f32 %v2896, %v2706
    %v2899 = vtanh.pop %v2897
    %v2900 = vtanh.pop %v2898
    %v2901 = vadd.f32 %v2899, %v2627
    %v2902 = vadd.f32 %v2900, %v2628
    %v2904 = vsel %vm304, %v2835, 0
    %v2907 = vsel %vm304, %v2836, 0
    %2909 = vmatpush.msra.mxu0 0.0
    %2910 = vmatpush.msra.mxu0 0.0
    %2911 = vmatpush.msra.mxu0 0.0
    %2912 = vmatpush.msra.mxu0 0.0
    %2913 = vmatpush.msra.mxu0 0.0
    %2914 = vmatpush.msra.mxu0 0.0
    %2915 = vmatpush.msra.mxu0 0.0
    %2916 = vmatpush.msra.mxu0 0.0
    %2917 = vmatpush.msra.mxu0 0.0
    %2918 = vmatpush.msra.mxu0 0.0
    %2919 = vmatpush.msra.mxu0 0.0
    %2920 = vmatpush.msra.mxu0 0.0
    %2921 = vmatpush.msra.mxu0 %v2711
    %2922 = vmatpush.msra.mxu0 %v2710
    %2923 = vmatpush.msra.mxu0 %v2709
    %2924 = vmatpush.msra.mxu0 %v2708
    %2925 = vmatmul.f32.gmra.mxu0 %v2904
    %v2926 = vpop.f32.mrf.mxu0
    %v2927 = vadd.f32 0.0, %v2926
    %2928 = vmatmul.f32.gmra.mxu0 %v2907
    %v2929 = vpop.f32.mrf.mxu0
    %v2930 = vadd.f32 0.0, %v2929
    %2931 = vdwg.mxu0
    %2932 = vmatpush.msra.mxu0 0.0
    %2933 = vmatpush.msra.mxu0 0.0
    %2934 = vmatpush.msra.mxu0 0.0
    %2935 = vmatpush.msra.mxu0 0.0
    %2936 = vmatpush.msra.mxu0 0.0
    %2937 = vmatpush.msra.mxu0 0.0
    %2938 = vmatpush.msra.mxu0 0.0
    %2939 = vmatpush.msra.mxu0 0.0
    %2940 = vmatpush.msra.mxu0 0.0
    %2941 = vmatpush.msra.mxu0 0.0
    %2942 = vmatpush.msra.mxu0 0.0
    %2943 = vmatpush.msra.mxu0 0.0
    %2944 = vmatpush.msra.mxu0 0.0
    %2945 = vmatpush.msra.mxu0 0.0
    %2946 = vmatpush.msra.mxu0 %v2930
    %2947 = vmatpush.msra.mxu0 %v2927
    %2948 = vmatmul.f32.gmra.mxu0 %v2867
    %v2949 = vpop.f32.mrf.mxu0
    %v2950 = vadd.f32 0.0, %v2949
    %2951 = vmatmul.f32.gmra.mxu0 %v2870
    %v2952 = vpop.f32.mrf.mxu0
    %v2953 = vadd.f32 0.0, %v2952
    %2954 = vdwg.mxu0
    %v2955 = vmul.f32 %v2950, %v2703
    %v2956 = vmul.f32 %v2953, %v2704
    %v2957 = vadd.f32 %v2955, %v2705
    %v2958 = vadd.f32 %v2956, %v2706
    %v2959 = vtanh.pop %v2957
    %v2960 = vtanh.pop %v2958
    %v2961 = vadd.f32 %v2959, %v2687
    %v2962 = vadd.f32 %v2960, %v2688
    %v2963 = vld [vmem:[%s5] sm:$0xff]
    %v2964 = vld [vmem:[%s5 + $0x8] sm:$0xff]
    %v2965 = vld [vmem:[%s5 + $0x10] sm:$0xff]
    %v2966 = vld [vmem:[%s5 + $0x18] sm:$0xff]
    %s2967 = scalar_lea.vmem %s7, 32
    %v2968 = vld [vmem:[%s2967] sm:$0xff]
    %v2969 = vld [vmem:[%s2967 + $0x8] sm:$0xff]
    %v2970 = vld [vmem:[#allocation10] sm:$0x1]
    %v2972 = vsel %vm304, %v2901, 0
    %v2975 = vsel %vm304, %v2902, 0
    %2977 = vmatpush.msra.mxu0 0.0
    %2978 = vmatpush.msra.mxu0 0.0
    %2979 = vmatpush.msra.mxu0 0.0
    %2980 = vmatpush.msra.mxu0 0.0
    %2981 = vmatpush.msra.mxu0 0.0
    %2982 = vmatpush.msra.mxu0 0.0
    %2983 = vmatpush.msra.mxu0 0.0
    %2984 = vmatpush.msra.mxu0 0.0
    %2985 = vmatpush.msra.mxu0 0.0
    %2986 = vmatpush.msra.mxu0 0.0
    %2987 = vmatpush.msra.mxu0 0.0
    %2988 = vmatpush.msra.mxu0 0.0
    %2989 = vmatpush.msra.mxu0 %v2966
    %2990 = vmatpush.msra.mxu0 %v2965
    %2991 = vmatpush.msra.mxu0 %v2964
    %2992 = vmatpush.msra.mxu0 %v2963
    %2993 = vmatmul.f32.gmra.mxu0 %v2972
    %v2994 = vpop.f32.mrf.mxu0
    %v2995 = vadd.f32 0.0, %v2994
    %2996 = vmatmul.f32.gmra.mxu0 %v2975
    %v2997 = vpop.f32.mrf.mxu0
    %v2998 = vadd.f32 0.0, %v2997
    %2999 = vdwg.mxu0
    %v3001 = vperm.slane %v2970, 0
    %v3004 = vsel %vm155, %v2968, 0
    %v3007 = vsel %vm155, %v2969, 0
    %3009 = vmatpush.msra.mxu0 0.0
    %3010 = vmatpush.msra.mxu0 0.0
    %3011 = vmatpush.msra.mxu0 0.0
    %3012 = vmatpush.msra.mxu0 0.0
    %3013 = vmatpush.msra.mxu0 0.0
    %3014 = vmatpush.msra.mxu0 0.0
    %3015 = vmatpush.msra.mxu0 0.0
    %3016 = vmatpush.msra.mxu0 0.0
    %3017 = vmatpush.msra.mxu0 0.0
    %3018 = vmatpush.msra.mxu0 0.0
    %3019 = vmatpush.msra.mxu0 0.0
    %3020 = vmatpush.msra.mxu0 0.0
    %3021 = vmatpush.msra.mxu0 0.0
    %3022 = vmatpush.msra.mxu0 0.0
    %3023 = vmatpush.msra.mxu0 %v2998
    %3024 = vmatpush.msra.mxu0 %v2995
    %3025 = vmatmul.f32.gmra.mxu0 %v3004
    %v3026 = vpop.f32.mrf.mxu0
    %v3027 = vadd.f32 %v3001, %v3026
    %3028 = vmatmul.f32.gmra.mxu0 %v3007
    %v3029 = vpop.f32.mrf.mxu0
    %v3030 = vadd.f32 %v3001, %v3029
    %3031 = vdwg.mxu0
    %v3032 = vadd.f32 %v3027, %v1672
    %v3033 = vadd.f32 %v3030, %v1673
    %3034 = vst.msk [vmem:[%s16] sm:$0xff] %vm1677, %v3032
    %3035 = vst.msk [vmem:[%s16 + $0x8] sm:$0xff] %vm1677, %v3033
    %v3037 = vsel %vm304, %v2961, 0
    %v3040 = vsel %vm304, %v2962, 0
    %3042 = vmatpush.msra.mxu0 0.0
    %3043 = vmatpush.msra.mxu0 0.0
    %3044 = vmatpush.msra.mxu0 0.0
    %3045 = vmatpush.msra.mxu0 0.0
    %3046 = vmatpush.msra.mxu0 0.0
    %3047 = vmatpush.msra.mxu0 0.0
    %3048 = vmatpush.msra.mxu0 0.0
    %3049 = vmatpush.msra.mxu0 0.0
    %3050 = vmatpush.msra.mxu0 0.0
    %3051 = vmatpush.msra.mxu0 0.0
    %3052 = vmatpush.msra.mxu0 0.0
    %3053 = vmatpush.msra.mxu0 0.0
    %3054 = vmatpush.msra.mxu0 %v2966
    %3055 = vmatpush.msra.mxu0 %v2965
    %3056 = vmatpush.msra.mxu0 %v2964
    %3057 = vmatpush.msra.mxu0 %v2963
    %3058 = vmatmul.f32.gmra.mxu0 %v3037
    %v3059 = vpop.f32.mrf.mxu0
    %v3060 = vadd.f32 0.0, %v3059
    %3061 = vmatmul.f32.gmra.mxu0 %v3040
    %v3062 = vpop.f32.mrf.mxu0
    %v3063 = vadd.f32 0.0, %v3062
    %3064 = vdwg.mxu0
    %3065 = vmatpush.msra.mxu0 0.0
    %3066 = vmatpush.msra.mxu0 0.0
    %3067 = vmatpush.msra.mxu0 0.0
    %3068 = vmatpush.msra.mxu0 0.0
    %3069 = vmatpush.msra.mxu0 0.0
    %3070 = vmatpush.msra.mxu0 0.0
    %3071 = vmatpush.msra.mxu0 0.0
    %3072 = vmatpush.msra.mxu0 0.0
    %3073 = vmatpush.msra.mxu0 0.0
    %3074 = vmatpush.msra.mxu0 0.0
    %3075 = vmatpush.msra.mxu0 0.0
    %3076 = vmatpush.msra.mxu0 0.0
    %3077 = vmatpush.msra.mxu0 0.0
    %3078 = vmatpush.msra.mxu0 0.0
    %3079 = vmatpush.msra.mxu0 %v3063
    %3080 = vmatpush.msra.mxu0 %v3060
    %3081 = vmatmul.f32.gmra.mxu0 %v3004
    %v3082 = vpop.f32.mrf.mxu0
    %v3083 = vadd.f32 %v3001, %v3082
    %3084 = vmatmul.f32.gmra.mxu0 %v3007
    %v3085 = vpop.f32.mrf.mxu0
    %v3086 = vadd.f32 %v3001, %v3085
    %3087 = vdwg.mxu0
    %v3088 = vld [vmem:[%s1780] sm:$0xff]
    %v3089 = vld [vmem:[%s1780 + $0x8] sm:$0xff]
    %v3090 = vadd.f32 %v3083, %v3088
    %v3091 = vadd.f32 %v3086, %v3089
    %s3092 = scalar_lea.vmem %s16, 16
    %3093 = vst.msk [vmem:[%s3092] sm:$0xff] %vm1677, %v3090
    %3094 = vst.msk [vmem:[%s3092 + $0x8] sm:$0xff] %vm1677, %v3091
    // Predicated region
    $region90: #{cvae_forward.1} parent=1 // pred_check
      _
    $region91: #{cvae_forward.1} parent=1 // pred_check_branch
      %3096 = sbr.rel (0) target = $region93
    $region92: #{cvae_forward.1} parent=1 // pred_region
      _
    $region93: #{cvae_forward.1} parent=1 // pred_fallthru
      _
    // Predicated region
    $region94: #{cvae_forward.1} parent=1 // pred_check
      _
    $region95: #{cvae_forward.1} parent=1 // pred_check_branch
      %3098 = sbr.rel (0) target = $region97
    $region96: #{cvae_forward.1} parent=1 // pred_region
      _
    $region97: #{cvae_forward.1} parent=1 // pred_fallthru
      _
    // Predicated region
    $region98: #{cvae_forward.1} parent=1 // pred_check
      _
    $region99: #{cvae_forward.1} parent=1 // pred_check_branch
      %3100 = sbr.rel (0) target = $region101
    $region100: #{cvae_forward.1} parent=1 // pred_region
      _
    $region101: #{cvae_forward.1} parent=1 // pred_fallthru
      _
    // Predicated region
    $region102: #{cvae_forward.1} parent=1 // pred_check
      _
    $region103: #{cvae_forward.1} parent=1 // pred_check_branch
      %3102 = sbr.rel (0) target = $region105
    $region104: #{cvae_forward.1} parent=1 // pred_region
      _
    $region105: #{cvae_forward.1} parent=1 // pred_fallthru
      _
    %3103 = vsyncpa [#allocation3], 1
    %3104 = vsyncpa [#allocation5], 1
    %3105 = vsyncpa [#allocation8], 1
    %3106 = vsyncpa [#allocation11], 1

</llo_original>
